<compile_context>
chip_gen: v6e
topology: v6e:2x2x1
jax: 0.10.0
libtpu: 0.0.40
codegen_flags: <defaults>
</compile_context>

<pallas_src>
import functools

import jax
import jax.numpy as jnp
from jax import lax
from jax.experimental import pallas as pl
from jax.experimental.pallas import tpu as pltpu


def srcnn_fused_kernel(xs_ref, w1_ref, b1_ref, w2_ref, b2_ref, w3_ref, b3_ref,
                       o_ref, cols1_ref, hpad_ref, cols3_ref,
                       *, H, W, f1, f3, pad_l, pad_r):
    """Fused SRCNN forward for one batch element.

    xs_ref   : (1, H + f1 - 1, W, f1*Cin)   kx-shift-stacked, spatially padded input
    w1_ref   : (f1*f1*Cin, n1)              conv1 weights, row index ky*(f1*Cin)+kx*Cin+c
    b1_ref   : (1, n1)            f32
    w2_ref   : (n1, n2)                     conv2 (1x1) weights
    b2_ref   : (n2, 1)            f32
    w3_ref   : (f3*f3*n2, cout)             conv3 weights, row index (ky*f3+kx)*n2+c
    b3_ref   : (cout, 1)          f32
    o_ref    : (1, cout, H*W)               lane-dense transposed output block
    cols1_ref: VMEM (H*W, f1*f1*Cin)        conv1 im2col scratch
    hpad_ref : VMEM (n2, pad_l + H*W + pad_r)  flat zero-padded conv2 output (ch x pixels)
    cols3_ref: VMEM (f3*f3*n2, H*W)         conv3 im2col scratch (K on sublanes)
    """
    HW = H * W
    p3 = f3 // 2
    k1 = xs_ref.shape[-1]                 # f1 * Cin
    n2 = hpad_ref.shape[0]
    cdt = cols1_ref.dtype                 # MXU compute dtype (bf16 by default)

    # ---- conv1 im2col: ky-stack the (already kx-stacked) input into VMEM -------------
    for ky in range(f1):                  # static unroll; slab dies at each scratch store
        cols1_ref[:, ky * k1:(ky + 1) * k1] = xs_ref[0, ky:ky + H].reshape(HW, k1)

    # ---- conv1: ONE matmul, K = f1*f1*Cin, f32 accumulate + bias + ReLU ---------------
    h1 = jnp.dot(cols1_ref[...], w1_ref[...], preferred_element_type=jnp.float32)
    h1 = jnp.maximum(h1 + b1_ref[...], 0.0).astype(cdt)            # (HW, n1)

    # ---- conv2 (1x1), computed transposed -> everything downstream is lane-dense ------
    # (n1, n2) contracted on dim 0 against h1's n1 dim  ->  (n2, HW)
    h2t = lax.dot_general(w2_ref[...], h1, (((0,), (1,)), ((), ())),
                          preferred_element_type=jnp.float32)
    h2t = jnp.maximum(h2t + b2_ref[...], 0.0).astype(cdt)          # (n2, HW)

    # ---- conv3 staging: flat padded (channels, pixels) buffer -------------------------
    # Only the two pad regions are re-zeroed each grid step (lane-aligned stores);
    # the interior write at lane offset pad_l (multiple of 128) is an unmasked store.
    hpad_ref[:, :pad_l] = jnp.zeros((n2, pad_l), cdt)
    hpad_ref[:, pad_l + HW:] = jnp.zeros((n2, pad_r), cdt)
    hpad_ref[:, pad_l:pad_l + HW] = h2t

    # Horizontal validity masks (one lane mask per kx), hoisted out of the tap loop.
    wpos = lax.broadcasted_iota(jnp.int32, (1, HW), 1) % W
    masks = [(wpos >= p3 - kx) & (wpos < W + p3 - kx) for kx in range(f3)]

    # Build the full conv3 im2col (K = f3*f3*n2) via static flat lane shifts; the
    # vertical halo falls into the zero pads automatically, the horizontal wrap is masked.
    for ky in range(f3):
        for kx in range(f3):
            base = pad_l + (ky - p3) * W + (kx - p3)
            slab = hpad_ref[:, base:base + HW]                     # (n2, HW)
            if kx != p3:
                slab = jnp.where(masks[kx], slab, jnp.zeros_like(slab))
            i = ky * f3 + kx
            cols3_ref[i * n2:(i + 1) * n2, :] = slab               # sublane-aligned store

    # ---- conv3: ONE matmul, K = f3*f3*n2, transposed (cout, HW) lane-dense output -----
    out_t = lax.dot_general(w3_ref[...], cols3_ref[...], (((0,), (0,)), ((), ())),
                            preferred_element_type=jnp.float32)    # (cout, HW)
    o_ref[0] = (out_t + b3_ref[...]).astype(o_ref.dtype)


def srcnn_pallas(x_nchw, params, *, mxu_dtype=jnp.bfloat16):
    """SRCNN forward. Input/output are NCHW like the PyTorch module."""
    w1, b1 = params["conv1"]
    w2, b2 = params["conv2"]
    w3, b3 = params["conv3"]
    N, C, H, W = x_nchw.shape
    f1, _, _, n1 = w1.shape
    f3, _, n2, cout = w3.shape
    p1, p3 = f1 // 2, f3 // 2
    HW = H * W

    # Flat-buffer padding for conv3: must cover p3*W + p3 lanes of halo on each side;
    # rounded up to a lane group so the interior write is 128-aligned.
    halo = p3 * W + p3
    pad_l = ((halo + 127) // 128) * 128
    pad_r = pad_l

    # NCHW -> NHWC, pad once (conv1 halo), then kx-shift stack (9x HBM, layout plumbing).
    x = jnp.transpose(x_nchw, (0, 2, 3, 1))
    x_pad = jnp.pad(x, ((0, 0), (p1, p1), (p1, p1), (0, 0)))
    xs = jnp.concatenate([x_pad[:, :, kx:kx + W, :] for kx in range(f1)], axis=-1)
    xs = xs.astype(mxu_dtype)

    w1r = w1.reshape(f1 * f1 * C, n1).astype(mxu_dtype)
    w2r = w2.reshape(n1, n2).astype(mxu_dtype)
    w3r = w3.reshape(f3 * f3 * n2, cout).astype(mxu_dtype)
    b1r = b1.reshape(1, n1).astype(jnp.float32)
    b2r = b2.reshape(n2, 1).astype(jnp.float32)
    b3r = b3.reshape(cout, 1).astype(jnp.float32)

    kernel = functools.partial(srcnn_fused_kernel, H=H, W=W, f1=f1, f3=f3,
                               pad_l=pad_l, pad_r=pad_r)

    out = pl.pallas_call(
        kernel,
        out_shape=jax.ShapeDtypeStruct((N, cout, HW), x_nchw.dtype),
        grid=(N,),
        in_specs=[
            pl.BlockSpec((1, H + 2 * p1, W, f1 * C), lambda n: (n, 0, 0, 0)),
            pl.BlockSpec((f1 * f1 * C, n1), lambda n: (0, 0)),
            pl.BlockSpec((1, n1), lambda n: (0, 0)),
            pl.BlockSpec((n1, n2), lambda n: (0, 0)),
            pl.BlockSpec((n2, 1), lambda n: (0, 0)),
            pl.BlockSpec((f3 * f3 * n2, cout), lambda n: (0, 0)),
            pl.BlockSpec((cout, 1), lambda n: (0, 0)),
        ],
        out_specs=pl.BlockSpec((1, cout, HW), lambda n: (n, 0, 0)),
        scratch_shapes=[
            pltpu.VMEM((HW, f1 * f1 * C), mxu_dtype),              # conv1 im2col
            pltpu.VMEM((n2, pad_l + HW + pad_r), mxu_dtype),       # padded conv2 output
            pltpu.VMEM((f3 * f3 * n2, HW), mxu_dtype),             # conv3 im2col
        ],
        compiler_params=pltpu.CompilerParams(
            dimension_semantics=("parallel",),
            vmem_limit_bytes=64 * 1024 * 1024),
    )(xs, w1r, b1r, w2r, b2r, w3r, b3r)

    # (N, cout, H*W) -> NCHW directly (lane-dense output block, no transpose needed).
    return out.reshape(N, cout, H, W)


srcnn_forward = jax.jit(srcnn_pallas)


def init_srcnn_params(key, channels, f1=9, f2=1, f3=5, n1=64, n2=32):
    """PyTorch-Conv2d-like init (U[-1/sqrt(fan_in), +1/sqrt(fan_in)]); weights (kh,kw,Cin,Cout)."""
    def conv_init(k, kh, kw, cin, cout):
        kw_key, kb_key = jax.random.split(k)
        bound = 1.0 / jnp.sqrt(cin * kh * kw)
        w = jax.random.uniform(kw_key, (kh, kw, cin, cout), jnp.float32, -bound, bound)
        b = jax.random.uniform(kb_key, (cout,), jnp.float32, -bound, bound)
        return w, b

    k1, k2, k3 = jax.random.split(key, 3)
    return {
        "conv1": conv_init(k1, f1, f1, channels, n1),
        "conv2": conv_init(k2, f2, f2, n1, n2),
        "conv3": conv_init(k3, f3, f3, n2, channels),
    }


def _reference_forward(x_nchw, params):
    """Pure-JAX f32 reference (lax convs) for a correctness check."""
    def conv(x, w, b, relu):
        w_oihw = jnp.transpose(w, (3, 2, 0, 1))
        kh, kw = w.shape[0], w.shape[1]
        y = lax.conv_general_dilated(
            x, w_oihw, window_strides=(1, 1),
            padding=((kh // 2, kh // 2), (kw // 2, kw // 2)),
            dimension_numbers=("NCHW", "OIHW", "NCHW"))
        y = y + b.reshape(1, -1, 1, 1)
        return jnp.maximum(y, 0.0) if relu else y

    x = conv(x_nchw, *params["conv1"], True)
    x = conv(x, *params["conv2"], True)
    return conv(x, *params["conv3"], False)


if __name__ == "__main__":
    channels, scale_factor = 4, 2   # scale_factor unused in forward (as in the PyTorch module)
    N, H, W = 2, 16, 16

    key = jax.random.PRNGKey(0)
    k_x, k_p = jax.random.split(key)
    x = jax.random.normal(k_x, (N, channels, H, W), jnp.float32)
    params = init_srcnn_params(k_p, channels)

    out = jax.block_until_ready(srcnn_forward(x, params))
    ref = _reference_forward(x, params)

    assert out.shape == (N, channels, H, W)
    # bf16 MXU path with f32 accumulation -> relaxed tolerance vs the f32 lax reference.
    assert jnp.allclose(out, ref, atol=2e-2, rtol=2e-2), "mismatch vs lax reference"

    print("KERNEL_OK")
</pallas_src>

<mosaic_0001>
module attributes {stable_mosaic.version = 11 : i64} {
  func.func @srcnn_fused_kernel(%arg0: i32, %arg1: memref<1x24x16x36xbf16, #tpu.memory_space<vmem>>, %arg2: memref<324x64xbf16, #tpu.memory_space<vmem>>, %arg3: memref<1x64xf32, #tpu.memory_space<vmem>>, %arg4: memref<64x32xbf16, #tpu.memory_space<vmem>>, %arg5: memref<32x1xf32, #tpu.memory_space<vmem>>, %arg6: memref<800x4xbf16, #tpu.memory_space<vmem>>, %arg7: memref<4x1xf32, #tpu.memory_space<vmem>>, %arg8: memref<1x4x256xf32, #tpu.memory_space<vmem>>, %arg9: memref<256x324xbf16, #tpu.memory_space<vmem>>, %arg10: memref<32x512xbf16, #tpu.memory_space<vmem>>, %arg11: memref<800x256xbf16, #tpu.memory_space<vmem>>) attributes {dimension_semantics = [#tpu.dimension_semantics<parallel>], iteration_bounds = array<i64: 2>, scalar_prefetch = 0 : i64, scratch_operands = 3 : i64, tpu.core_type = #tpu.core_type<tc>, window_params = [{transform_indices = @transform_0, window_bounds = array<i64: 1, 24, 16, 36>}, {pipeline_mode = #tpu.pipeline_mode<synchronous>, transform_indices = @transform_1, window_bounds = array<i64: 324, 64>}, {pipeline_mode = #tpu.pipeline_mode<synchronous>, transform_indices = @transform_2, window_bounds = array<i64: 1, 64>}, {pipeline_mode = #tpu.pipeline_mode<synchronous>, transform_indices = @transform_3, window_bounds = array<i64: 64, 32>}, {pipeline_mode = #tpu.pipeline_mode<synchronous>, transform_indices = @transform_4, window_bounds = array<i64: 32, 1>}, {pipeline_mode = #tpu.pipeline_mode<synchronous>, transform_indices = @transform_5, window_bounds = array<i64: 800, 4>}, {pipeline_mode = #tpu.pipeline_mode<synchronous>, transform_indices = @transform_6, window_bounds = array<i64: 4, 1>}, {transform_indices = @transform_7, window_bounds = array<i64: 1, 4, 256>}]} {
    %c0 = arith.constant 0 : index
    %c0_0 = arith.constant 0 : index
    %c0_1 = arith.constant 0 : index
    %c0_2 = arith.constant 0 : index
    %0 = vector.load %arg1[%c0, %c0_0, %c0_1, %c0_2] : memref<1x24x16x36xbf16, #tpu.memory_space<vmem>>, vector<1x16x16x36xbf16>
    %1 = vector.shape_cast %0 : vector<1x16x16x36xbf16> to vector<16x16x36xbf16>
    %2 = vector.shape_cast %1 : vector<16x16x36xbf16> to vector<256x36xbf16>
    %c0_3 = arith.constant 0 : index
    %c0_4 = arith.constant 0 : index
    %3 = vector.load %arg9[%c0_3, %c0_4] : memref<256x324xbf16, #tpu.memory_space<vmem>>, vector<256x36xbf16>
    tpu.vector_store %arg9[%c0_3, %c0_4], %2 {strides = array<i32>} : memref<256x324xbf16, #tpu.memory_space<vmem>>, vector<256x36xbf16>,
    %c0_5 = arith.constant 0 : index
    %c1 = arith.constant 1 : index
    %c0_6 = arith.constant 0 : index
    %c0_7 = arith.constant 0 : index
    %4 = vector.load %arg1[%c0_5, %c1, %c0_6, %c0_7] : memref<1x24x16x36xbf16, #tpu.memory_space<vmem>>, vector<1x16x16x36xbf16>
    %5 = vector.shape_cast %4 : vector<1x16x16x36xbf16> to vector<16x16x36xbf16>
    %6 = vector.shape_cast %5 : vector<16x16x36xbf16> to vector<256x36xbf16>
    %c0_8 = arith.constant 0 : index
    %c36 = arith.constant 36 : index
    %7 = vector.load %arg9[%c0_8, %c36] : memref<256x324xbf16, #tpu.memory_space<vmem>>, vector<256x36xbf16>
    tpu.vector_store %arg9[%c0_8, %c36], %6 {strides = array<i32>} : memref<256x324xbf16, #tpu.memory_space<vmem>>, vector<256x36xbf16>,
    %c0_9 = arith.constant 0 : index
    %c2 = arith.constant 2 : index
    %c0_10 = arith.constant 0 : index
    %c0_11 = arith.constant 0 : index
    %8 = vector.load %arg1[%c0_9, %c2, %c0_10, %c0_11] : memref<1x24x16x36xbf16, #tpu.memory_space<vmem>>, vector<1x16x16x36xbf16>
    %9 = vector.shape_cast %8 : vector<1x16x16x36xbf16> to vector<16x16x36xbf16>
    %10 = vector.shape_cast %9 : vector<16x16x36xbf16> to vector<256x36xbf16>
    %c0_12 = arith.constant 0 : index
    %c72 = arith.constant 72 : index
    %11 = vector.load %arg9[%c0_12, %c72] : memref<256x324xbf16, #tpu.memory_space<vmem>>, vector<256x36xbf16>
    tpu.vector_store %arg9[%c0_12, %c72], %10 {strides = array<i32>} : memref<256x324xbf16, #tpu.memory_space<vmem>>, vector<256x36xbf16>,
    %c0_13 = arith.constant 0 : index
    %c3 = arith.constant 3 : index
    %c0_14 = arith.constant 0 : index
    %c0_15 = arith.constant 0 : index
    %12 = vector.load %arg1[%c0_13, %c3, %c0_14, %c0_15] : memref<1x24x16x36xbf16, #tpu.memory_space<vmem>>, vector<1x16x16x36xbf16>
    %13 = vector.shape_cast %12 : vector<1x16x16x36xbf16> to vector<16x16x36xbf16>
    %14 = vector.shape_cast %13 : vector<16x16x36xbf16> to vector<256x36xbf16>
    %c0_16 = arith.constant 0 : index
    %c108 = arith.constant 108 : index
    %15 = vector.load %arg9[%c0_16, %c108] : memref<256x324xbf16, #tpu.memory_space<vmem>>, vector<256x36xbf16>
    tpu.vector_store %arg9[%c0_16, %c108], %14 {strides = array<i32>} : memref<256x324xbf16, #tpu.memory_space<vmem>>, vector<256x36xbf16>,
    %c0_17 = arith.constant 0 : index
    %c4 = arith.constant 4 : index
    %c0_18 = arith.constant 0 : index
    %c0_19 = arith.constant 0 : index
    %16 = vector.load %arg1[%c0_17, %c4, %c0_18, %c0_19] : memref<1x24x16x36xbf16, #tpu.memory_space<vmem>>, vector<1x16x16x36xbf16>
    %17 = vector.shape_cast %16 : vector<1x16x16x36xbf16> to vector<16x16x36xbf16>
    %18 = vector.shape_cast %17 : vector<16x16x36xbf16> to vector<256x36xbf16>
    %c0_20 = arith.constant 0 : index
    %c144 = arith.constant 144 : index
    %19 = vector.load %arg9[%c0_20, %c144] : memref<256x324xbf16, #tpu.memory_space<vmem>>, vector<256x36xbf16>
    tpu.vector_store %arg9[%c0_20, %c144], %18 {strides = array<i32>} : memref<256x324xbf16, #tpu.memory_space<vmem>>, vector<256x36xbf16>,
    %c0_21 = arith.constant 0 : index
    %c5 = arith.constant 5 : index
    %c0_22 = arith.constant 0 : index
    %c0_23 = arith.constant 0 : index
    %20 = vector.load %arg1[%c0_21, %c5, %c0_22, %c0_23] : memref<1x24x16x36xbf16, #tpu.memory_space<vmem>>, vector<1x16x16x36xbf16>
    %21 = vector.shape_cast %20 : vector<1x16x16x36xbf16> to vector<16x16x36xbf16>
    %22 = vector.shape_cast %21 : vector<16x16x36xbf16> to vector<256x36xbf16>
    %c0_24 = arith.constant 0 : index
    %c180 = arith.constant 180 : index
    %23 = vector.load %arg9[%c0_24, %c180] : memref<256x324xbf16, #tpu.memory_space<vmem>>, vector<256x36xbf16>
    tpu.vector_store %arg9[%c0_24, %c180], %22 {strides = array<i32>} : memref<256x324xbf16, #tpu.memory_space<vmem>>, vector<256x36xbf16>,
    %c0_25 = arith.constant 0 : index
    %c6 = arith.constant 6 : index
    %c0_26 = arith.constant 0 : index
    %c0_27 = arith.constant 0 : index
    %24 = vector.load %arg1[%c0_25, %c6, %c0_26, %c0_27] : memref<1x24x16x36xbf16, #tpu.memory_space<vmem>>, vector<1x16x16x36xbf16>
    %25 = vector.shape_cast %24 : vector<1x16x16x36xbf16> to vector<16x16x36xbf16>
    %26 = vector.shape_cast %25 : vector<16x16x36xbf16> to vector<256x36xbf16>
    %c0_28 = arith.constant 0 : index
    %c216 = arith.constant 216 : index
    %27 = vector.load %arg9[%c0_28, %c216] : memref<256x324xbf16, #tpu.memory_space<vmem>>, vector<256x36xbf16>
    tpu.vector_store %arg9[%c0_28, %c216], %26 {strides = array<i32>} : memref<256x324xbf16, #tpu.memory_space<vmem>>, vector<256x36xbf16>,
    %c0_29 = arith.constant 0 : index
    %c7 = arith.constant 7 : index
    %c0_30 = arith.constant 0 : index
    %c0_31 = arith.constant 0 : index
    %28 = vector.load %arg1[%c0_29, %c7, %c0_30, %c0_31] : memref<1x24x16x36xbf16, #tpu.memory_space<vmem>>, vector<1x16x16x36xbf16>
    %29 = vector.shape_cast %28 : vector<1x16x16x36xbf16> to vector<16x16x36xbf16>
    %30 = vector.shape_cast %29 : vector<16x16x36xbf16> to vector<256x36xbf16>
    %c0_32 = arith.constant 0 : index
    %c252 = arith.constant 252 : index
    %31 = vector.load %arg9[%c0_32, %c252] : memref<256x324xbf16, #tpu.memory_space<vmem>>, vector<256x36xbf16>
    tpu.vector_store %arg9[%c0_32, %c252], %30 {strides = array<i32>} : memref<256x324xbf16, #tpu.memory_space<vmem>>, vector<256x36xbf16>,
    %c0_33 = arith.constant 0 : index
    %c8 = arith.constant 8 : index
    %c0_34 = arith.constant 0 : index
    %c0_35 = arith.constant 0 : index
    %32 = vector.load %arg1[%c0_33, %c8, %c0_34, %c0_35] : memref<1x24x16x36xbf16, #tpu.memory_space<vmem>>, vector<1x16x16x36xbf16>
    %33 = vector.shape_cast %32 : vector<1x16x16x36xbf16> to vector<16x16x36xbf16>
    %34 = vector.shape_cast %33 : vector<16x16x36xbf16> to vector<256x36xbf16>
    %c0_36 = arith.constant 0 : index
    %c288 = arith.constant 288 : index
    %35 = vector.load %arg9[%c0_36, %c288] : memref<256x324xbf16, #tpu.memory_space<vmem>>, vector<256x36xbf16>
    tpu.vector_store %arg9[%c0_36, %c288], %34 {strides = array<i32>} : memref<256x324xbf16, #tpu.memory_space<vmem>>, vector<256x36xbf16>,
    %c0_37 = arith.constant 0 : index
    %c0_38 = arith.constant 0 : index
    %36 = vector.load %arg9[%c0_37, %c0_38] : memref<256x324xbf16, #tpu.memory_space<vmem>>, vector<256x324xbf16>
    %c0_39 = arith.constant 0 : index
    %c0_40 = arith.constant 0 : index
    %37 = vector.load %arg2[%c0_39, %c0_40] : memref<324x64xbf16, #tpu.memory_space<vmem>>, vector<324x64xbf16>
    %cst = arith.constant dense<0.000000e+00> : vector<256x64xf32>
    %38 = tpu.matmul %36, %37, %cst {dimension_numbers = #tpu.dot_dimension_numbers<[1], [0], [0], [1], [0, 0, 1, 1], [], []>} : vector<256x324xbf16>, vector<324x64xbf16>, vector<256x64xf32> -> vector<256x64xf32>
    %c0_41 = arith.constant 0 : index
    %c0_42 = arith.constant 0 : index
    %39 = vector.load %arg3[%c0_41, %c0_42] : memref<1x64xf32, #tpu.memory_space<vmem>>, vector<1x64xf32>
    %40 = vector.broadcast %39 : vector<1x64xf32> to vector<256x64xf32>
    %41 = arith.addf %38, %40 : vector<256x64xf32>
    %cst_43 = arith.constant 0.000000e+00 : f32
    %42 = vector.broadcast %cst_43 : f32 to vector<256x64xf32>
    %43 = arith.maximumf %41, %42 : vector<256x64xf32>
    %44 = arith.truncf %43 : vector<256x64xf32> to vector<256x64xbf16>
    %c0_44 = arith.constant 0 : index
    %c0_45 = arith.constant 0 : index
    %45 = vector.load %arg4[%c0_44, %c0_45] : memref<64x32xbf16, #tpu.memory_space<vmem>>, vector<64x32xbf16>
    %cst_46 = arith.constant dense<0.000000e+00> : vector<32x256xf32>
    %46 = tpu.matmul %45, %44, %cst_46 {dimension_numbers = #tpu.dot_dimension_numbers<[0], [1], [1], [0], [0, 1, 1, 0], [], []>} : vector<64x32xbf16>, vector<256x64xbf16>, vector<32x256xf32> -> vector<32x256xf32>
    %c0_47 = arith.constant 0 : index
    %c0_48 = arith.constant 0 : index
    %47 = vector.load %arg5[%c0_47, %c0_48] : memref<32x1xf32, #tpu.memory_space<vmem>>, vector<32x1xf32>
    %48 = vector.broadcast %47 : vector<32x1xf32> to vector<32x256xf32>
    %49 = arith.addf %46, %48 : vector<32x256xf32>
    %cst_49 = arith.constant 0.000000e+00 : f32
    %50 = vector.broadcast %cst_49 : f32 to vector<32x256xf32>
    %51 = arith.maximumf %49, %50 : vector<32x256xf32>
    %52 = arith.truncf %51 : vector<32x256xf32> to vector<32x256xbf16>
    %cst_50 = arith.constant 0.000000e+00 : bf16
    %53 = vector.broadcast %cst_50 : bf16 to vector<32x128xbf16>
    %c0_51 = arith.constant 0 : index
    %c0_52 = arith.constant 0 : index
    %54 = vector.load %arg10[%c0_51, %c0_52] : memref<32x512xbf16, #tpu.memory_space<vmem>>, vector<32x128xbf16>
    tpu.vector_store %arg10[%c0_51, %c0_52], %53 {strides = array<i32>} : memref<32x512xbf16, #tpu.memory_space<vmem>>, vector<32x128xbf16>,
    %cst_53 = arith.constant 0.000000e+00 : bf16
    %55 = vector.broadcast %cst_53 : bf16 to vector<32x128xbf16>
    %c0_54 = arith.constant 0 : index
    %c384 = arith.constant 384 : index
    %56 = vector.load %arg10[%c0_54, %c384] : memref<32x512xbf16, #tpu.memory_space<vmem>>, vector<32x128xbf16>
    tpu.vector_store %arg10[%c0_54, %c384], %55 {strides = array<i32>} : memref<32x512xbf16, #tpu.memory_space<vmem>>, vector<32x128xbf16>,
    %c0_55 = arith.constant 0 : index
    %c128 = arith.constant 128 : index
    %57 = vector.load %arg10[%c0_55, %c128] : memref<32x512xbf16, #tpu.memory_space<vmem>>, vector<32x256xbf16>
    tpu.vector_store %arg10[%c0_55, %c128], %52 {strides = array<i32>} : memref<32x512xbf16, #tpu.memory_space<vmem>>, vector<32x256xbf16>,
    %58 = tpu.iota {dimensions = array<i32: 1>} : vector<1x256xi32>
    %c16_i32 = arith.constant 16 : i32
    %c0_i32 = arith.constant 0 : i32
    %59 = arith.cmpi eq, %c16_i32, %c0_i32 : i32
    %c1_i32 = arith.constant 1 : i32
    %60 = arith.select %59, %c1_i32, %c16_i32 : i32
    %61 = vector.broadcast %60 : i32 to vector<1x256xi32>
    %62 = arith.remsi %58, %61 : vector<1x256xi32>
    %c0_i32_56 = arith.constant 0 : i32
    %63 = vector.broadcast %c0_i32_56 : i32 to vector<1x256xi32>
    %64 = arith.cmpi ne, %62, %63 : vector<1x256xi32>
    %c0_i32_57 = arith.constant 0 : i32
    %65 = vector.broadcast %c0_i32_57 : i32 to vector<1x256xi32>
    %66 = arith.cmpi slt, %62, %65 : vector<1x256xi32>
    %c0_i32_58 = arith.constant 0 : i32
    %67 = arith.cmpi slt, %60, %c0_i32_58 : i32
    %68 = vector.broadcast %67 : i1 to vector<1x256xi1>
    %69 = vector.broadcast %68 : vector<1x256xi1> to vector<1x256xi1>
    %70 = arith.xori %66, %69 : vector<1x256xi1>
    %71 = arith.andi %70, %64 : vector<1x256xi1>
    %72 = vector.broadcast %60 : i32 to vector<1x256xi32>
    %73 = arith.addi %62, %72 : vector<1x256xi32>
    %74 = arith.select %71, %73, %62 : vector<1x256xi1>, vector<1x256xi32>
    %c2_i32 = arith.constant 2 : i32
    %75 = vector.broadcast %c2_i32 : i32 to vector<1x256xi32>
    %76 = arith.cmpi sge, %74, %75 : vector<1x256xi32>
    %c18_i32 = arith.constant 18 : i32
    %77 = vector.broadcast %c18_i32 : i32 to vector<1x256xi32>
    %78 = arith.cmpi slt, %74, %77 : vector<1x256xi32>
    %79 = arith.andi %76, %78 : vector<1x256xi1>
    %c1_i32_59 = arith.constant 1 : i32
    %80 = vector.broadcast %c1_i32_59 : i32 to vector<1x256xi32>
    %81 = arith.cmpi sge, %74, %80 : vector<1x256xi32>
    %c17_i32 = arith.constant 17 : i32
    %82 = vector.broadcast %c17_i32 : i32 to vector<1x256xi32>
    %83 = arith.cmpi slt, %74, %82 : vector<1x256xi32>
    %84 = arith.andi %81, %83 : vector<1x256xi1>
    %c-1_i32 = arith.constant -1 : i32
    %85 = vector.broadcast %c-1_i32 : i32 to vector<1x256xi32>
    %86 = arith.cmpi sge, %74, %85 : vector<1x256xi32>
    %c15_i32 = arith.constant 15 : i32
    %87 = vector.broadcast %c15_i32 : i32 to vector<1x256xi32>
    %88 = arith.cmpi slt, %74, %87 : vector<1x256xi32>
    %89 = arith.andi %86, %88 : vector<1x256xi1>
    %c-2_i32 = arith.constant -2 : i32
    %90 = vector.broadcast %c-2_i32 : i32 to vector<1x256xi32>
    %91 = arith.cmpi sge, %74, %90 : vector<1x256xi32>
    %c14_i32 = arith.constant 14 : i32
    %92 = vector.broadcast %c14_i32 : i32 to vector<1x256xi32>
    %93 = arith.cmpi slt, %74, %92 : vector<1x256xi32>
    %94 = arith.andi %91, %93 : vector<1x256xi1>
    %c0_60 = arith.constant 0 : index
    %c94 = arith.constant 94 : index
    %95 = vector.load %arg10[%c0_60, %c94] : memref<32x512xbf16, #tpu.memory_space<vmem>>, vector<32x256xbf16>
    %cst_61 = arith.constant 0.000000e+00 : bf16
    %96 = vector.broadcast %cst_61 : bf16 to vector<32x256xbf16>
    %97 = vector.shape_cast %79 : vector<1x256xi1> to vector<1x256xi1>
    %98 = vector.broadcast %97 : vector<1x256xi1> to vector<32x256xi1>
    %99 = arith.select %98, %95, %96 : vector<32x256xi1>, vector<32x256xbf16>
    %c0_62 = arith.constant 0 : index
    %c0_63 = arith.constant 0 : index
    %100 = vector.load %arg11[%c0_62, %c0_63] : memref<800x256xbf16, #tpu.memory_space<vmem>>, vector<32x256xbf16>
    tpu.vector_store %arg11[%c0_62, %c0_63], %99 {strides = array<i32>} : memref<800x256xbf16, #tpu.memory_space<vmem>>, vector<32x256xbf16>,
    %c0_64 = arith.constant 0 : index
    %c95 = arith.constant 95 : index
    %101 = vector.load %arg10[%c0_64, %c95] : memref<32x512xbf16, #tpu.memory_space<vmem>>, vector<32x256xbf16>
    %cst_65 = arith.constant 0.000000e+00 : bf16
    %102 = vector.broadcast %cst_65 : bf16 to vector<32x256xbf16>
    %103 = vector.shape_cast %84 : vector<1x256xi1> to vector<1x256xi1>
    %104 = vector.broadcast %103 : vector<1x256xi1> to vector<32x256xi1>
    %105 = arith.select %104, %101, %102 : vector<32x256xi1>, vector<32x256xbf16>
    %c32 = arith.constant 32 : index
    %c0_66 = arith.constant 0 : index
    %106 = vector.load %arg11[%c32, %c0_66] : memref<800x256xbf16, #tpu.memory_space<vmem>>, vector<32x256xbf16>
    tpu.vector_store %arg11[%c32, %c0_66], %105 {strides = array<i32>} : memref<800x256xbf16, #tpu.memory_space<vmem>>, vector<32x256xbf16>,
    %c0_67 = arith.constant 0 : index
    %c96 = arith.constant 96 : index
    %107 = vector.load %arg10[%c0_67, %c96] : memref<32x512xbf16, #tpu.memory_space<vmem>>, vector<32x256xbf16>
    %c64 = arith.constant 64 : index
    %c0_68 = arith.constant 0 : index
    %108 = vector.load %arg11[%c64, %c0_68] : memref<800x256xbf16, #tpu.memory_space<vmem>>, vector<32x256xbf16>
    tpu.vector_store %arg11[%c64, %c0_68], %107 {strides = array<i32>} : memref<800x256xbf16, #tpu.memory_space<vmem>>, vector<32x256xbf16>,
    %c0_69 = arith.constant 0 : index
    %c97 = arith.constant 97 : index
    %109 = vector.load %arg10[%c0_69, %c97] : memref<32x512xbf16, #tpu.memory_space<vmem>>, vector<32x256xbf16>
    %cst_70 = arith.constant 0.000000e+00 : bf16
    %110 = vector.broadcast %cst_70 : bf16 to vector<32x256xbf16>
    %111 = vector.shape_cast %89 : vector<1x256xi1> to vector<1x256xi1>
    %112 = vector.broadcast %111 : vector<1x256xi1> to vector<32x256xi1>
    %113 = arith.select %112, %109, %110 : vector<32x256xi1>, vector<32x256xbf16>
    %c96_71 = arith.constant 96 : index
    %c0_72 = arith.constant 0 : index
    %114 = vector.load %arg11[%c96_71, %c0_72] : memref<800x256xbf16, #tpu.memory_space<vmem>>, vector<32x256xbf16>
    tpu.vector_store %arg11[%c96_71, %c0_72], %113 {strides = array<i32>} : memref<800x256xbf16, #tpu.memory_space<vmem>>, vector<32x256xbf16>,
    %c0_73 = arith.constant 0 : index
    %c98 = arith.constant 98 : index
    %115 = vector.load %arg10[%c0_73, %c98] : memref<32x512xbf16, #tpu.memory_space<vmem>>, vector<32x256xbf16>
    %cst_74 = arith.constant 0.000000e+00 : bf16
    %116 = vector.broadcast %cst_74 : bf16 to vector<32x256xbf16>
    %117 = vector.shape_cast %94 : vector<1x256xi1> to vector<1x256xi1>
    %118 = vector.broadcast %117 : vector<1x256xi1> to vector<32x256xi1>
    %119 = arith.select %118, %115, %116 : vector<32x256xi1>, vector<32x256xbf16>
    %c128_75 = arith.constant 128 : index
    %c0_76 = arith.constant 0 : index
    %120 = vector.load %arg11[%c128_75, %c0_76] : memref<800x256xbf16, #tpu.memory_space<vmem>>, vector<32x256xbf16>
    tpu.vector_store %arg11[%c128_75, %c0_76], %119 {strides = array<i32>} : memref<800x256xbf16, #tpu.memory_space<vmem>>, vector<32x256xbf16>,
    %c0_77 = arith.constant 0 : index
    %c110 = arith.constant 110 : index
    %121 = vector.load %arg10[%c0_77, %c110] : memref<32x512xbf16, #tpu.memory_space<vmem>>, vector<32x256xbf16>
    %cst_78 = arith.constant 0.000000e+00 : bf16
    %122 = vector.broadcast %cst_78 : bf16 to vector<32x256xbf16>
    %123 = vector.shape_cast %79 : vector<1x256xi1> to vector<1x256xi1>
    %124 = vector.broadcast %123 : vector<1x256xi1> to vector<32x256xi1>
    %125 = arith.select %124, %121, %122 : vector<32x256xi1>, vector<32x256xbf16>
    %c160 = arith.constant 160 : index
    %c0_79 = arith.constant 0 : index
    %126 = vector.load %arg11[%c160, %c0_79] : memref<800x256xbf16, #tpu.memory_space<vmem>>, vector<32x256xbf16>
    tpu.vector_store %arg11[%c160, %c0_79], %125 {strides = array<i32>} : memref<800x256xbf16, #tpu.memory_space<vmem>>, vector<32x256xbf16>,
    %c0_80 = arith.constant 0 : index
    %c111 = arith.constant 111 : index
    %127 = vector.load %arg10[%c0_80, %c111] : memref<32x512xbf16, #tpu.memory_space<vmem>>, vector<32x256xbf16>
    %cst_81 = arith.constant 0.000000e+00 : bf16
    %128 = vector.broadcast %cst_81 : bf16 to vector<32x256xbf16>
    %129 = vector.shape_cast %84 : vector<1x256xi1> to vector<1x256xi1>
    %130 = vector.broadcast %129 : vector<1x256xi1> to vector<32x256xi1>
    %131 = arith.select %130, %127, %128 : vector<32x256xi1>, vector<32x256xbf16>
    %c192 = arith.constant 192 : index
    %c0_82 = arith.constant 0 : index
    %132 = vector.load %arg11[%c192, %c0_82] : memref<800x256xbf16, #tpu.memory_space<vmem>>, vector<32x256xbf16>
    tpu.vector_store %arg11[%c192, %c0_82], %131 {strides = array<i32>} : memref<800x256xbf16, #tpu.memory_space<vmem>>, vector<32x256xbf16>,
    %c0_83 = arith.constant 0 : index
    %c112 = arith.constant 112 : index
    %133 = vector.load %arg10[%c0_83, %c112] : memref<32x512xbf16, #tpu.memory_space<vmem>>, vector<32x256xbf16>
    %c224 = arith.constant 224 : index
    %c0_84 = arith.constant 0 : index
    %134 = vector.load %arg11[%c224, %c0_84] : memref<800x256xbf16, #tpu.memory_space<vmem>>, vector<32x256xbf16>
    tpu.vector_store %arg11[%c224, %c0_84], %133 {strides = array<i32>} : memref<800x256xbf16, #tpu.memory_space<vmem>>, vector<32x256xbf16>,
    %c0_85 = arith.constant 0 : index
    %c113 = arith.constant 113 : index
    %135 = vector.load %arg10[%c0_85, %c113] : memref<32x512xbf16, #tpu.memory_space<vmem>>, vector<32x256xbf16>
    %cst_86 = arith.constant 0.000000e+00 : bf16
    %136 = vector.broadcast %cst_86 : bf16 to vector<32x256xbf16>
    %137 = vector.shape_cast %89 : vector<1x256xi1> to vector<1x256xi1>
    %138 = vector.broadcast %137 : vector<1x256xi1> to vector<32x256xi1>
    %139 = arith.select %138, %135, %136 : vector<32x256xi1>, vector<32x256xbf16>
    %c256 = arith.constant 256 : index
    %c0_87 = arith.constant 0 : index
    %140 = vector.load %arg11[%c256, %c0_87] : memref<800x256xbf16, #tpu.memory_space<vmem>>, vector<32x256xbf16>
    tpu.vector_store %arg11[%c256, %c0_87], %139 {strides = array<i32>} : memref<800x256xbf16, #tpu.memory_space<vmem>>, vector<32x256xbf16>,
    %c0_88 = arith.constant 0 : index
    %c114 = arith.constant 114 : index
    %141 = vector.load %arg10[%c0_88, %c114] : memref<32x512xbf16, #tpu.memory_space<vmem>>, vector<32x256xbf16>
    %cst_89 = arith.constant 0.000000e+00 : bf16
    %142 = vector.broadcast %cst_89 : bf16 to vector<32x256xbf16>
    %143 = vector.shape_cast %94 : vector<1x256xi1> to vector<1x256xi1>
    %144 = vector.broadcast %143 : vector<1x256xi1> to vector<32x256xi1>
    %145 = arith.select %144, %141, %142 : vector<32x256xi1>, vector<32x256xbf16>
    %c288_90 = arith.constant 288 : index
    %c0_91 = arith.constant 0 : index
    %146 = vector.load %arg11[%c288_90, %c0_91] : memref<800x256xbf16, #tpu.memory_space<vmem>>, vector<32x256xbf16>
    tpu.vector_store %arg11[%c288_90, %c0_91], %145 {strides = array<i32>} : memref<800x256xbf16, #tpu.memory_space<vmem>>, vector<32x256xbf16>,
    %c0_92 = arith.constant 0 : index
    %c126 = arith.constant 126 : index
    %147 = vector.load %arg10[%c0_92, %c126] : memref<32x512xbf16, #tpu.memory_space<vmem>>, vector<32x256xbf16>
    %cst_93 = arith.constant 0.000000e+00 : bf16
    %148 = vector.broadcast %cst_93 : bf16 to vector<32x256xbf16>
    %149 = vector.shape_cast %79 : vector<1x256xi1> to vector<1x256xi1>
    %150 = vector.broadcast %149 : vector<1x256xi1> to vector<32x256xi1>
    %151 = arith.select %150, %147, %148 : vector<32x256xi1>, vector<32x256xbf16>
    %c320 = arith.constant 320 : index
    %c0_94 = arith.constant 0 : index
    %152 = vector.load %arg11[%c320, %c0_94] : memref<800x256xbf16, #tpu.memory_space<vmem>>, vector<32x256xbf16>
    tpu.vector_store %arg11[%c320, %c0_94], %151 {strides = array<i32>} : memref<800x256xbf16, #tpu.memory_space<vmem>>, vector<32x256xbf16>,
    %c0_95 = arith.constant 0 : index
    %c127 = arith.constant 127 : index
    %153 = vector.load %arg10[%c0_95, %c127] : memref<32x512xbf16, #tpu.memory_space<vmem>>, vector<32x256xbf16>
    %cst_96 = arith.constant 0.000000e+00 : bf16
    %154 = vector.broadcast %cst_96 : bf16 to vector<32x256xbf16>
    %155 = vector.shape_cast %84 : vector<1x256xi1> to vector<1x256xi1>
    %156 = vector.broadcast %155 : vector<1x256xi1> to vector<32x256xi1>
    %157 = arith.select %156, %153, %154 : vector<32x256xi1>, vector<32x256xbf16>
    %c352 = arith.constant 352 : index
    %c0_97 = arith.constant 0 : index
    %158 = vector.load %arg11[%c352, %c0_97] : memref<800x256xbf16, #tpu.memory_space<vmem>>, vector<32x256xbf16>
    tpu.vector_store %arg11[%c352, %c0_97], %157 {strides = array<i32>} : memref<800x256xbf16, #tpu.memory_space<vmem>>, vector<32x256xbf16>,
    %c0_98 = arith.constant 0 : index
    %c128_99 = arith.constant 128 : index
    %159 = vector.load %arg10[%c0_98, %c128_99] : memref<32x512xbf16, #tpu.memory_space<vmem>>, vector<32x256xbf16>
    %c384_100 = arith.constant 384 : index
    %c0_101 = arith.constant 0 : index
    %160 = vector.load %arg11[%c384_100, %c0_101] : memref<800x256xbf16, #tpu.memory_space<vmem>>, vector<32x256xbf16>
    tpu.vector_store %arg11[%c384_100, %c0_101], %159 {strides = array<i32>} : memref<800x256xbf16, #tpu.memory_space<vmem>>, vector<32x256xbf16>,
    %c0_102 = arith.constant 0 : index
    %c129 = arith.constant 129 : index
    %161 = vector.load %arg10[%c0_102, %c129] : memref<32x512xbf16, #tpu.memory_space<vmem>>, vector<32x256xbf16>
    %cst_103 = arith.constant 0.000000e+00 : bf16
    %162 = vector.broadcast %cst_103 : bf16 to vector<32x256xbf16>
    %163 = vector.shape_cast %89 : vector<1x256xi1> to vector<1x256xi1>
    %164 = vector.broadcast %163 : vector<1x256xi1> to vector<32x256xi1>
    %165 = arith.select %164, %161, %162 : vector<32x256xi1>, vector<32x256xbf16>
    %c416 = arith.constant 416 : index
    %c0_104 = arith.constant 0 : index
    %166 = vector.load %arg11[%c416, %c0_104] : memref<800x256xbf16, #tpu.memory_space<vmem>>, vector<32x256xbf16>
    tpu.vector_store %arg11[%c416, %c0_104], %165 {strides = array<i32>} : memref<800x256xbf16, #tpu.memory_space<vmem>>, vector<32x256xbf16>,
    %c0_105 = arith.constant 0 : index
    %c130 = arith.constant 130 : index
    %167 = vector.load %arg10[%c0_105, %c130] : memref<32x512xbf16, #tpu.memory_space<vmem>>, vector<32x256xbf16>
    %cst_106 = arith.constant 0.000000e+00 : bf16
    %168 = vector.broadcast %cst_106 : bf16 to vector<32x256xbf16>
    %169 = vector.shape_cast %94 : vector<1x256xi1> to vector<1x256xi1>
    %170 = vector.broadcast %169 : vector<1x256xi1> to vector<32x256xi1>
    %171 = arith.select %170, %167, %168 : vector<32x256xi1>, vector<32x256xbf16>
    %c448 = arith.constant 448 : index
    %c0_107 = arith.constant 0 : index
    %172 = vector.load %arg11[%c448, %c0_107] : memref<800x256xbf16, #tpu.memory_space<vmem>>, vector<32x256xbf16>
    tpu.vector_store %arg11[%c448, %c0_107], %171 {strides = array<i32>} : memref<800x256xbf16, #tpu.memory_space<vmem>>, vector<32x256xbf16>,
    %c0_108 = arith.constant 0 : index
    %c142 = arith.constant 142 : index
    %173 = vector.load %arg10[%c0_108, %c142] : memref<32x512xbf16, #tpu.memory_space<vmem>>, vector<32x256xbf16>
    %cst_109 = arith.constant 0.000000e+00 : bf16
    %174 = vector.broadcast %cst_109 : bf16 to vector<32x256xbf16>
    %175 = vector.shape_cast %79 : vector<1x256xi1> to vector<1x256xi1>
    %176 = vector.broadcast %175 : vector<1x256xi1> to vector<32x256xi1>
    %177 = arith.select %176, %173, %174 : vector<32x256xi1>, vector<32x256xbf16>
    %c480 = arith.constant 480 : index
    %c0_110 = arith.constant 0 : index
    %178 = vector.load %arg11[%c480, %c0_110] : memref<800x256xbf16, #tpu.memory_space<vmem>>, vector<32x256xbf16>
    tpu.vector_store %arg11[%c480, %c0_110], %177 {strides = array<i32>} : memref<800x256xbf16, #tpu.memory_space<vmem>>, vector<32x256xbf16>,
    %c0_111 = arith.constant 0 : index
    %c143 = arith.constant 143 : index
    %179 = vector.load %arg10[%c0_111, %c143] : memref<32x512xbf16, #tpu.memory_space<vmem>>, vector<32x256xbf16>
    %cst_112 = arith.constant 0.000000e+00 : bf16
    %180 = vector.broadcast %cst_112 : bf16 to vector<32x256xbf16>
    %181 = vector.shape_cast %84 : vector<1x256xi1> to vector<1x256xi1>
    %182 = vector.broadcast %181 : vector<1x256xi1> to vector<32x256xi1>
    %183 = arith.select %182, %179, %180 : vector<32x256xi1>, vector<32x256xbf16>
    %c512 = arith.constant 512 : index
    %c0_113 = arith.constant 0 : index
    %184 = vector.load %arg11[%c512, %c0_113] : memref<800x256xbf16, #tpu.memory_space<vmem>>, vector<32x256xbf16>
    tpu.vector_store %arg11[%c512, %c0_113], %183 {strides = array<i32>} : memref<800x256xbf16, #tpu.memory_space<vmem>>, vector<32x256xbf16>,
    %c0_114 = arith.constant 0 : index
    %c144_115 = arith.constant 144 : index
    %185 = vector.load %arg10[%c0_114, %c144_115] : memref<32x512xbf16, #tpu.memory_space<vmem>>, vector<32x256xbf16>
    %c544 = arith.constant 544 : index
    %c0_116 = arith.constant 0 : index
    %186 = vector.load %arg11[%c544, %c0_116] : memref<800x256xbf16, #tpu.memory_space<vmem>>, vector<32x256xbf16>
    tpu.vector_store %arg11[%c544, %c0_116], %185 {strides = array<i32>} : memref<800x256xbf16, #tpu.memory_space<vmem>>, vector<32x256xbf16>,
    %c0_117 = arith.constant 0 : index
    %c145 = arith.constant 145 : index
    %187 = vector.load %arg10[%c0_117, %c145] : memref<32x512xbf16, #tpu.memory_space<vmem>>, vector<32x256xbf16>
    %cst_118 = arith.constant 0.000000e+00 : bf16
    %188 = vector.broadcast %cst_118 : bf16 to vector<32x256xbf16>
    %189 = vector.shape_cast %89 : vector<1x256xi1> to vector<1x256xi1>
    %190 = vector.broadcast %189 : vector<1x256xi1> to vector<32x256xi1>
    %191 = arith.select %190, %187, %188 : vector<32x256xi1>, vector<32x256xbf16>
    %c576 = arith.constant 576 : index
    %c0_119 = arith.constant 0 : index
    %192 = vector.load %arg11[%c576, %c0_119] : memref<800x256xbf16, #tpu.memory_space<vmem>>, vector<32x256xbf16>
    tpu.vector_store %arg11[%c576, %c0_119], %191 {strides = array<i32>} : memref<800x256xbf16, #tpu.memory_space<vmem>>, vector<32x256xbf16>,
    %c0_120 = arith.constant 0 : index
    %c146 = arith.constant 146 : index
    %193 = vector.load %arg10[%c0_120, %c146] : memref<32x512xbf16, #tpu.memory_space<vmem>>, vector<32x256xbf16>
    %cst_121 = arith.constant 0.000000e+00 : bf16
    %194 = vector.broadcast %cst_121 : bf16 to vector<32x256xbf16>
    %195 = vector.shape_cast %94 : vector<1x256xi1> to vector<1x256xi1>
    %196 = vector.broadcast %195 : vector<1x256xi1> to vector<32x256xi1>
    %197 = arith.select %196, %193, %194 : vector<32x256xi1>, vector<32x256xbf16>
    %c608 = arith.constant 608 : index
    %c0_122 = arith.constant 0 : index
    %198 = vector.load %arg11[%c608, %c0_122] : memref<800x256xbf16, #tpu.memory_space<vmem>>, vector<32x256xbf16>
    tpu.vector_store %arg11[%c608, %c0_122], %197 {strides = array<i32>} : memref<800x256xbf16, #tpu.memory_space<vmem>>, vector<32x256xbf16>,
    %c0_123 = arith.constant 0 : index
    %c158 = arith.constant 158 : index
    %199 = vector.load %arg10[%c0_123, %c158] : memref<32x512xbf16, #tpu.memory_space<vmem>>, vector<32x256xbf16>
    %cst_124 = arith.constant 0.000000e+00 : bf16
    %200 = vector.broadcast %cst_124 : bf16 to vector<32x256xbf16>
    %201 = vector.shape_cast %79 : vector<1x256xi1> to vector<1x256xi1>
    %202 = vector.broadcast %201 : vector<1x256xi1> to vector<32x256xi1>
    %203 = arith.select %202, %199, %200 : vector<32x256xi1>, vector<32x256xbf16>
    %c640 = arith.constant 640 : index
    %c0_125 = arith.constant 0 : index
    %204 = vector.load %arg11[%c640, %c0_125] : memref<800x256xbf16, #tpu.memory_space<vmem>>, vector<32x256xbf16>
    tpu.vector_store %arg11[%c640, %c0_125], %203 {strides = array<i32>} : memref<800x256xbf16, #tpu.memory_space<vmem>>, vector<32x256xbf16>,
    %c0_126 = arith.constant 0 : index
    %c159 = arith.constant 159 : index
    %205 = vector.load %arg10[%c0_126, %c159] : memref<32x512xbf16, #tpu.memory_space<vmem>>, vector<32x256xbf16>
    %cst_127 = arith.constant 0.000000e+00 : bf16
    %206 = vector.broadcast %cst_127 : bf16 to vector<32x256xbf16>
    %207 = vector.shape_cast %84 : vector<1x256xi1> to vector<1x256xi1>
    %208 = vector.broadcast %207 : vector<1x256xi1> to vector<32x256xi1>
    %209 = arith.select %208, %205, %206 : vector<32x256xi1>, vector<32x256xbf16>
    %c672 = arith.constant 672 : index
    %c0_128 = arith.constant 0 : index
    %210 = vector.load %arg11[%c672, %c0_128] : memref<800x256xbf16, #tpu.memory_space<vmem>>, vector<32x256xbf16>
    tpu.vector_store %arg11[%c672, %c0_128], %209 {strides = array<i32>} : memref<800x256xbf16, #tpu.memory_space<vmem>>, vector<32x256xbf16>,
    %c0_129 = arith.constant 0 : index
    %c160_130 = arith.constant 160 : index
    %211 = vector.load %arg10[%c0_129, %c160_130] : memref<32x512xbf16, #tpu.memory_space<vmem>>, vector<32x256xbf16>
    %c704 = arith.constant 704 : index
    %c0_131 = arith.constant 0 : index
    %212 = vector.load %arg11[%c704, %c0_131] : memref<800x256xbf16, #tpu.memory_space<vmem>>, vector<32x256xbf16>
    tpu.vector_store %arg11[%c704, %c0_131], %211 {strides = array<i32>} : memref<800x256xbf16, #tpu.memory_space<vmem>>, vector<32x256xbf16>,
    %c0_132 = arith.constant 0 : index
    %c161 = arith.constant 161 : index
    %213 = vector.load %arg10[%c0_132, %c161] : memref<32x512xbf16, #tpu.memory_space<vmem>>, vector<32x256xbf16>
    %cst_133 = arith.constant 0.000000e+00 : bf16
    %214 = vector.broadcast %cst_133 : bf16 to vector<32x256xbf16>
    %215 = vector.shape_cast %89 : vector<1x256xi1> to vector<1x256xi1>
    %216 = vector.broadcast %215 : vector<1x256xi1> to vector<32x256xi1>
    %217 = arith.select %216, %213, %214 : vector<32x256xi1>, vector<32x256xbf16>
    %c736 = arith.constant 736 : index
    %c0_134 = arith.constant 0 : index
    %218 = vector.load %arg11[%c736, %c0_134] : memref<800x256xbf16, #tpu.memory_space<vmem>>, vector<32x256xbf16>
    tpu.vector_store %arg11[%c736, %c0_134], %217 {strides = array<i32>} : memref<800x256xbf16, #tpu.memory_space<vmem>>, vector<32x256xbf16>,
    %c0_135 = arith.constant 0 : index
    %c162 = arith.constant 162 : index
    %219 = vector.load %arg10[%c0_135, %c162] : memref<32x512xbf16, #tpu.memory_space<vmem>>, vector<32x256xbf16>
    %cst_136 = arith.constant 0.000000e+00 : bf16
    %220 = vector.broadcast %cst_136 : bf16 to vector<32x256xbf16>
    %221 = vector.shape_cast %94 : vector<1x256xi1> to vector<1x256xi1>
    %222 = vector.broadcast %221 : vector<1x256xi1> to vector<32x256xi1>
    %223 = arith.select %222, %219, %220 : vector<32x256xi1>, vector<32x256xbf16>
    %c768 = arith.constant 768 : index
    %c0_137 = arith.constant 0 : index
    %224 = vector.load %arg11[%c768, %c0_137] : memref<800x256xbf16, #tpu.memory_space<vmem>>, vector<32x256xbf16>
    tpu.vector_store %arg11[%c768, %c0_137], %223 {strides = array<i32>} : memref<800x256xbf16, #tpu.memory_space<vmem>>, vector<32x256xbf16>,
    %c0_138 = arith.constant 0 : index
    %c0_139 = arith.constant 0 : index
    %225 = vector.load %arg6[%c0_138, %c0_139] : memref<800x4xbf16, #tpu.memory_space<vmem>>, vector<800x4xbf16>
    %c0_140 = arith.constant 0 : index
    %c0_141 = arith.constant 0 : index
    %226 = vector.load %arg11[%c0_140, %c0_141] : memref<800x256xbf16, #tpu.memory_space<vmem>>, vector<800x256xbf16>
    %cst_142 = arith.constant dense<0.000000e+00> : vector<4x256xf32>
    %227 = tpu.matmul %225, %226, %cst_142 {dimension_numbers = #tpu.dot_dimension_numbers<[0], [0], [1], [1], [0, 1, 1, 1], [], []>} : vector<800x4xbf16>, vector<800x256xbf16>, vector<4x256xf32> -> vector<4x256xf32>
    %c0_143 = arith.constant 0 : index
    %c0_144 = arith.constant 0 : index
    %228 = vector.load %arg7[%c0_143, %c0_144] : memref<4x1xf32, #tpu.memory_space<vmem>>, vector<4x1xf32>
    %229 = vector.broadcast %228 : vector<4x1xf32> to vector<4x256xf32>
    %230 = arith.addf %227, %229 : vector<4x256xf32>
    %c0_145 = arith.constant 0 : index
    %c0_146 = arith.constant 0 : index
    %c0_147 = arith.constant 0 : index
    %231 = vector.load %arg8[%c0_145, %c0_146, %c0_147] : memref<1x4x256xf32, #tpu.memory_space<vmem>>, vector<1x4x256xf32>
    %232 = vector.shape_cast %231 : vector<1x4x256xf32> to vector<4x256xf32>
    %233 = vector.shape_cast %230 : vector<4x256xf32> to vector<1x4x256xf32>
    tpu.vector_store %arg8[%c0_145, %c0_146, %c0_147], %233 {strides = array<i32>} : memref<1x4x256xf32, #tpu.memory_space<vmem>>, vector<1x4x256xf32>,
    return
  }
  func.func @transform_0(%arg0: i32) -> (i32, i32, i32, i32) {
    %c0_i32 = arith.constant 0 : i32
    %c0_i32_0 = arith.constant 0 : i32
    %c0_i32_1 = arith.constant 0 : i32
    %c0_i32_2 = arith.constant 0 : i32
    return %arg0, %c0_i32, %c0_i32_0, %c0_i32_1 : i32, i32, i32, i32
  }
  func.func @transform_1(%arg0: i32) -> (i32, i32) {
    %c0_i32 = arith.constant 0 : i32
    %c0_i32_0 = arith.constant 0 : i32
    %c0_i32_1 = arith.constant 0 : i32
    return %c0_i32, %c0_i32_0 : i32, i32
  }
  func.func @transform_2(%arg0: i32) -> (i32, i32) {
    %c0_i32 = arith.constant 0 : i32
    %c0_i32_0 = arith.constant 0 : i32
    %c0_i32_1 = arith.constant 0 : i32
    return %c0_i32, %c0_i32_0 : i32, i32
  }
  func.func @transform_3(%arg0: i32) -> (i32, i32) {
    %c0_i32 = arith.constant 0 : i32
    %c0_i32_0 = arith.constant 0 : i32
    %c0_i32_1 = arith.constant 0 : i32
    return %c0_i32, %c0_i32_0 : i32, i32
  }
  func.func @transform_4(%arg0: i32) -> (i32, i32) {
    %c0_i32 = arith.constant 0 : i32
    %c0_i32_0 = arith.constant 0 : i32
    %c0_i32_1 = arith.constant 0 : i32
    return %c0_i32, %c0_i32_0 : i32, i32
  }
  func.func @transform_5(%arg0: i32) -> (i32, i32) {
    %c0_i32 = arith.constant 0 : i32
    %c0_i32_0 = arith.constant 0 : i32
    %c0_i32_1 = arith.constant 0 : i32
    return %c0_i32, %c0_i32_0 : i32, i32
  }
  func.func @transform_6(%arg0: i32) -> (i32, i32) {
    %c0_i32 = arith.constant 0 : i32
    %c0_i32_0 = arith.constant 0 : i32
    %c0_i32_1 = arith.constant 0 : i32
    return %c0_i32, %c0_i32_0 : i32, i32
  }
  func.func @transform_7(%arg0: i32) -> (i32, i32, i32) {
    %c0_i32 = arith.constant 0 : i32
    %c0_i32_0 = arith.constant 0 : i32
    %c0_i32_1 = arith.constant 0 : i32
    return %arg0, %c0_i32, %c0_i32_0 : i32, i32, i32
  }
}

</mosaic_0001>

<llo_original>
// kernel: srcnn_pallas.1
$region0: #{srcnn_pallas.1}
  #allocation0 [shape = 'u32[]', space=smem, size = 0x4, offset = 0x4, fixed_abs, tag = 'smem constant byte address 0x4 - core index']
  #allocation1 [shape = 'u32[144,128]{1,0:T(1,128)}', space=vmem, size = 0x12000, scoped, tag = 'internal scratch']
  #allocation2 [shape = 'bf16[256,324]{1,0:T(8,128)(2,1)}', space=vmem, size = 0x30000, scoped, tag = 'scratch operand']
  #allocation3 [shape = 'bf16[32,512]{1,0:T(8,128)(2,1)}', space=vmem, size = 0x8000, scoped, tag = 'scratch operand']
  #allocation4 [shape = 'bf16[800,256]{1,0:T(8,128)(2,1)}', space=vmem, size = 0x64000, scoped, tag = 'scratch operand']
  %s0 = inlined_call_operand.vmem [shape: bf16[2,24,16,36], index: 0, kind: input, shape index: {}]
  %s1 = inlined_call_operand.vmem [shape: bf16[324,64], index: 1, kind: input, shape index: {}]
  %s2 = inlined_call_operand.vmem [shape: f32[1,64], index: 2, kind: input, shape index: {}]
  %s3 = inlined_call_operand.vmem [shape: bf16[64,32], index: 3, kind: input, shape index: {}]
  %s4 = inlined_call_operand.vmem [shape: f32[32,1], index: 4, kind: input, shape index: {}]
  %s5 = inlined_call_operand.vmem [shape: bf16[800,4], index: 5, kind: input, shape index: {}]
  %s6 = inlined_call_operand.vmem [shape: f32[4,1], index: 6, kind: input, shape index: {}]
  %s7 = inlined_call_operand.vmem [shape: f32[2,4,256], index: 7, kind: output, shape index: {}]
  %s8 = sld [smem:[#allocation0]]
  $region61: #{srcnn_pallas.1} parent=0
    _
  %s10 = ssub.s32 1, %s8
  %s11 = scalar_select 0, %s10, %s8
  loop: start=0, step=1, limit=4
  $region2: #{srcnn_pallas.1} parent=0 // loop_pre_header
    _
  $region3: #{srcnn_pallas.1} parent=0 // loop_header
    %s13 = sphi 0, %s17
    %p14 = scmp.ge.s32.totalorder %s13, 4
    %s23 = sphi 0, %s25
    %s26 = sphi 0, %s23
    %s27 = sphi 0, %s26
    %s43 = sphi 0, %s27
    %s47 = sphi 0, %s47
    %s49 = sphi 0, %s47
    %s50 = sphi 0, %s49
    %s64 = sphi 0, %s50
    %s68 = sphi 0, %s68
    %s70 = sphi 0, %s68
    %s71 = sphi 0, %s70
    %s85 = sphi 0, %s71
    %s89 = sphi 0, %s89
    %s91 = sphi 0, %s89
    %s92 = sphi 0, %s91
    %s106 = sphi 0, %s92
    %s110 = sphi 0, %s110
    %s112 = sphi 0, %s110
    %s113 = sphi 0, %s112
    %s127 = sphi 0, %s113
    %s131 = sphi 0, %s131
    %s133 = sphi 0, %s131
    %s134 = sphi 0, %s133
    %s148 = sphi 0, %s134
    %s152 = sphi 0, %s152
    %s154 = sphi 0, %s152
    %s155 = sphi 0, %s154
    %s169 = sphi 0, %s155
    %s175 = sphi 0, %s177
    %s178 = sphi 0, %s175
    %s179 = sphi 0, %s178
    %s195 = sphi 0, %s179
  $region4: #{srcnn_pallas.1} parent=0 // loop_header_branch
    %16 = sbr.rel (%p14) target = $region8
  $region5: #{srcnn_pallas.1} parent=0 // loop_body
    %s18 = ssub.s32 %s13, 1
    %s19 = ssub.s32 %s13, 2
    %s20 = sadd.s32 %s13, 1
    %s21 = ssub.s32 %s13, %s20
    %p22 = scmp.eq.s32.totalorder %s21, 0
    %s24 = sadd.s32 %s23, 1
    %s25 = scalar_select %p22, %s23, %s24
    %p28 = pneg %p22
    %p29 = scmp.eq.s32.totalorder %s13, 1
    %p30 = por %p28, %p29
    %p31 = scmp.ne.s32.totalorder %s23, %s26
    %p32 = scmp.eq.s32.totalorder %s13, 0
    %p33 = por %p31, %p32
    %p34 = scmp.ne.s32.totalorder %s23, %s26
    %p35 = scmp.eq.s32.totalorder %s18, 1
    %p36 = por %p34, %p35
    %p37 = scmp.ne.s32.totalorder %s26, %s27
    %p38 = scmp.eq.s32.totalorder %s18, 0
    %p39 = por %p37, %p38
    %p40 = scmp.ne.s32.totalorder %s26, %s27
    %p41 = scmp.eq.s32.totalorder %s19, 1
    %p42 = por %p40, %p41
    %p44 = scmp.ne.s32.totalorder %s27, %s43
    %p45 = scmp.eq.s32.totalorder %s19, 0
    %p46 = por %p44, %p45
    %s48 = sadd.s32 %s47, 1
    %p51 = scmp.eq.s32.totalorder %s13, 1
    %p52 = scmp.ne.s32.totalorder %s47, %s49
    %p53 = scmp.eq.s32.totalorder %s13, 0
    %p54 = por %p52, %p53
    %p55 = scmp.ne.s32.totalorder %s47, %s49
    %p56 = scmp.eq.s32.totalorder %s18, 1
    %p57 = por %p55, %p56
    %p58 = scmp.ne.s32.totalorder %s49, %s50
    %p59 = scmp.eq.s32.totalorder %s18, 0
    %p60 = por %p58, %p59
    %p61 = scmp.ne.s32.totalorder %s49, %s50
    %p62 = scmp.eq.s32.totalorder %s19, 1
    %p63 = por %p61, %p62
    %p65 = scmp.ne.s32.totalorder %s50, %s64
    %p66 = scmp.eq.s32.totalorder %s19, 0
    %p67 = por %p65, %p66
    %s69 = sadd.s32 %s68, 1
    %p72 = scmp.eq.s32.totalorder %s13, 1
    %p73 = scmp.ne.s32.totalorder %s68, %s70
    %p74 = scmp.eq.s32.totalorder %s13, 0
    %p75 = por %p73, %p74
    %p76 = scmp.ne.s32.totalorder %s68, %s70
    %p77 = scmp.eq.s32.totalorder %s18, 1
    %p78 = por %p76, %p77
    %p79 = scmp.ne.s32.totalorder %s70, %s71
    %p80 = scmp.eq.s32.totalorder %s18, 0
    %p81 = por %p79, %p80
    %p82 = scmp.ne.s32.totalorder %s70, %s71
    %p83 = scmp.eq.s32.totalorder %s19, 1
    %p84 = por %p82, %p83
    %p86 = scmp.ne.s32.totalorder %s71, %s85
    %p87 = scmp.eq.s32.totalorder %s19, 0
    %p88 = por %p86, %p87
    %s90 = sadd.s32 %s89, 1
    %p93 = scmp.eq.s32.totalorder %s13, 1
    %p94 = scmp.ne.s32.totalorder %s89, %s91
    %p95 = scmp.eq.s32.totalorder %s13, 0
    %p96 = por %p94, %p95
    %p97 = scmp.ne.s32.totalorder %s89, %s91
    %p98 = scmp.eq.s32.totalorder %s18, 1
    %p99 = por %p97, %p98
    %p100 = scmp.ne.s32.totalorder %s91, %s92
    %p101 = scmp.eq.s32.totalorder %s18, 0
    %p102 = por %p100, %p101
    %p103 = scmp.ne.s32.totalorder %s91, %s92
    %p104 = scmp.eq.s32.totalorder %s19, 1
    %p105 = por %p103, %p104
    %p107 = scmp.ne.s32.totalorder %s92, %s106
    %p108 = scmp.eq.s32.totalorder %s19, 0
    %p109 = por %p107, %p108
    %s111 = sadd.s32 %s110, 1
    %p114 = scmp.eq.s32.totalorder %s13, 1
    %p115 = scmp.ne.s32.totalorder %s110, %s112
    %p116 = scmp.eq.s32.totalorder %s13, 0
    %p117 = por %p115, %p116
    %p118 = scmp.ne.s32.totalorder %s110, %s112
    %p119 = scmp.eq.s32.totalorder %s18, 1
    %p120 = por %p118, %p119
    %p121 = scmp.ne.s32.totalorder %s112, %s113
    %p122 = scmp.eq.s32.totalorder %s18, 0
    %p123 = por %p121, %p122
    %p124 = scmp.ne.s32.totalorder %s112, %s113
    %p125 = scmp.eq.s32.totalorder %s19, 1
    %p126 = por %p124, %p125
    %p128 = scmp.ne.s32.totalorder %s113, %s127
    %p129 = scmp.eq.s32.totalorder %s19, 0
    %p130 = por %p128, %p129
    %s132 = sadd.s32 %s131, 1
    %p135 = scmp.eq.s32.totalorder %s13, 1
    %p136 = scmp.ne.s32.totalorder %s131, %s133
    %p137 = scmp.eq.s32.totalorder %s13, 0
    %p138 = por %p136, %p137
    %p139 = scmp.ne.s32.totalorder %s131, %s133
    %p140 = scmp.eq.s32.totalorder %s18, 1
    %p141 = por %p139, %p140
    %p142 = scmp.ne.s32.totalorder %s133, %s134
    %p143 = scmp.eq.s32.totalorder %s18, 0
    %p144 = por %p142, %p143
    %p145 = scmp.ne.s32.totalorder %s133, %s134
    %p146 = scmp.eq.s32.totalorder %s19, 1
    %p147 = por %p145, %p146
    %p149 = scmp.ne.s32.totalorder %s134, %s148
    %p150 = scmp.eq.s32.totalorder %s19, 0
    %p151 = por %p149, %p150
    %s153 = sadd.s32 %s152, 1
    %p156 = scmp.eq.s32.totalorder %s13, 1
    %p157 = scmp.ne.s32.totalorder %s152, %s154
    %p158 = scmp.eq.s32.totalorder %s13, 0
    %p159 = por %p157, %p158
    %p160 = scmp.ne.s32.totalorder %s152, %s154
    %p161 = scmp.eq.s32.totalorder %s18, 1
    %p162 = por %p160, %p161
    %p163 = scmp.ne.s32.totalorder %s154, %s155
    %p164 = scmp.eq.s32.totalorder %s18, 0
    %p165 = por %p163, %p164
    %p166 = scmp.ne.s32.totalorder %s154, %s155
    %p167 = scmp.eq.s32.totalorder %s19, 1
    %p168 = por %p166, %p167
    %p170 = scmp.ne.s32.totalorder %s155, %s169
    %p171 = scmp.eq.s32.totalorder %s19, 0
    %p172 = por %p170, %p171
    %s173 = ssub.s32 %s13, %s20
    %p174 = scmp.eq.s32.totalorder %s173, 0
    %s176 = sadd.s32 %s175, 1
    %s177 = scalar_select %p174, %s175, %s176
    %p180 = pneg %p174
    %p181 = scmp.eq.s32.totalorder %s13, 1
    %p182 = por %p180, %p181
    %p183 = scmp.ne.s32.totalorder %s175, %s178
    %p184 = scmp.eq.s32.totalorder %s13, 0
    %p185 = por %p183, %p184
    %p186 = scmp.ne.s32.totalorder %s175, %s178
    %p187 = scmp.eq.s32.totalorder %s18, 1
    %p188 = por %p186, %p187
    %p189 = scmp.ne.s32.totalorder %s178, %s179
    %p190 = scmp.eq.s32.totalorder %s18, 0
    %p191 = por %p189, %p190
    %p192 = scmp.ne.s32.totalorder %s178, %s179
    %p193 = scmp.eq.s32.totalorder %s19, 1
    %p194 = por %p192, %p193
    %p196 = scmp.ne.s32.totalorder %s179, %s195
    %p197 = scmp.eq.s32.totalorder %s19, 0
    %p198 = por %p196, %p197
    %p199 = scmp.le.s32.totalorder 1, %s13
    %p200 = scmp.lt.s32.totalorder %s13, 3
    %p201 = pnand %p199, %p200
    %p202 = pneg %p201
    // Predicated region
    $region9: #{srcnn_pallas.1} parent=5 // pred_check
      _
    $region10: #{srcnn_pallas.1} parent=5 // pred_check_branch
      %204 = sbr.rel (%p201) target = $region12
    $region11: #{srcnn_pallas.1} parent=5 // pred_region
      %s205 = ssub.s32 %s13, 1
      // Predicated region
      $region13: #{srcnn_pallas.1} parent=11 // pred_check
        %p206 = pneg %p60
      $region14: #{srcnn_pallas.1} parent=11 // pred_check_branch
        %208 = sbr.rel (%p206) target = $region16
      $region15: #{srcnn_pallas.1} parent=11 // pred_region
        _
      $region16: #{srcnn_pallas.1} parent=11 // pred_fallthru
        _
      // Predicated region
      $region17: #{srcnn_pallas.1} parent=11 // pred_check
        %p209 = pneg %p81
      $region18: #{srcnn_pallas.1} parent=11 // pred_check_branch
        %211 = sbr.rel (%p209) target = $region20
      $region19: #{srcnn_pallas.1} parent=11 // pred_region
        _
      $region20: #{srcnn_pallas.1} parent=11 // pred_fallthru
        _
      // Predicated region
      $region21: #{srcnn_pallas.1} parent=11 // pred_check
        %p212 = pneg %p102
      $region22: #{srcnn_pallas.1} parent=11 // pred_check_branch
        %214 = sbr.rel (%p212) target = $region24
      $region23: #{srcnn_pallas.1} parent=11 // pred_region
        _
      $region24: #{srcnn_pallas.1} parent=11 // pred_fallthru
        _
      // Predicated region
      $region25: #{srcnn_pallas.1} parent=11 // pred_check
        %p215 = pneg %p123
      $region26: #{srcnn_pallas.1} parent=11 // pred_check_branch
        %217 = sbr.rel (%p215) target = $region28
      $region27: #{srcnn_pallas.1} parent=11 // pred_region
        _
      $region28: #{srcnn_pallas.1} parent=11 // pred_fallthru
        _
      // Predicated region
      $region29: #{srcnn_pallas.1} parent=11 // pred_check
        %p218 = pneg %p144
      $region30: #{srcnn_pallas.1} parent=11 // pred_check_branch
        %220 = sbr.rel (%p218) target = $region32
      $region31: #{srcnn_pallas.1} parent=11 // pred_region
        _
      $region32: #{srcnn_pallas.1} parent=11 // pred_fallthru
        _
      // Predicated region
      $region33: #{srcnn_pallas.1} parent=11 // pred_check
        %p221 = pneg %p165
      $region34: #{srcnn_pallas.1} parent=11 // pred_check_branch
        %223 = sbr.rel (%p221) target = $region36
      $region35: #{srcnn_pallas.1} parent=11 // pred_region
        _
      $region36: #{srcnn_pallas.1} parent=11 // pred_fallthru
        _
    $region12: #{srcnn_pallas.1} parent=5 // pred_fallthru
      _
    %p224 = scmp.lt.s32.totalorder %s13, 2
    // Predicated region
    $region37: #{srcnn_pallas.1} parent=5 // pred_check
      %p225 = pneg %p224
    $region38: #{srcnn_pallas.1} parent=5 // pred_check_branch
      %227 = sbr.rel (%p225) target = $region40
    $region39: #{srcnn_pallas.1} parent=5 // pred_region
      // Predicated region
      $region41: #{srcnn_pallas.1} parent=39 // pred_check
        %p228 = pneg %p33
      $region42: #{srcnn_pallas.1} parent=39 // pred_check_branch
        %230 = sbr.rel (%p228) target = $region44
      $region43: #{srcnn_pallas.1} parent=39 // pred_region
        %p231 = scmp.lt.s32.totalorder %s13, 1
        %s232 = scalar_select %p231, %s13, 1
        %s233 = smul.addr %s232, 48
        %s234 = smul.addr %s233, 4
        %s235 = scalar_lea.vmem %s0, %s234
      $region44: #{srcnn_pallas.1} parent=39 // pred_fallthru
        _
    $region40: #{srcnn_pallas.1} parent=5 // pred_fallthru
      _
    %p236 = scmp.le.s32.totalorder 1, %s13
    %p237 = scmp.lt.s32.totalorder %s13, 3
    %p238 = pnand %p236, %p237
    %p239 = pneg %p238
    // Predicated region
    $region45: #{srcnn_pallas.1} parent=5 // pred_check
      _
    $region46: #{srcnn_pallas.1} parent=5 // pred_check_branch
      %241 = sbr.rel (%p238) target = $region48
    $region47: #{srcnn_pallas.1} parent=5 // pred_region
      %s242 = ssub.s32 %s13, 1
      %p243 = scmp.lt.s32.totalorder %s18, 1
      %s244 = scalar_select %p243, %s18, 1
      %s245 = smul.addr %s244, 48
      %s246 = smul.addr %s245, 4
      %s247 = scalar_lea.vmem %s0, %s246
      %p248 = pneg %p39
      %p249 = pneg %p36
      %p250 = pneg %p60
      %p251 = pneg %p57
      %p252 = pneg %p81
      %p253 = pneg %p78
      %p254 = pneg %p102
      %p255 = pneg %p99
      %p256 = pneg %p123
      %p257 = pneg %p120
      %p258 = pneg %p144
      %p259 = pneg %p141
      %p260 = pneg %p165
      %p261 = pneg %p162
      %p262 = pneg %p191
      %p263 = pneg %p188
      %p264 = scmp.lt.s32.totalorder %s18, 1
      %s265 = scalar_select %p264, %s18, 1
      %s266 = smul.addr %s265, 2
      %s267 = smul.addr %s266, 4
      %s268 = scalar_lea.vmem %s7, %s267
      %p269 = scmp.lt.s32.totalorder %s18, 1
      %s270 = scalar_select %p269, %s18, 1
      %s271 = smul.addr %s270, 48
      %s272 = smul.addr %s271, 4
      %s273 = scalar_lea.vmem %s0, %s272
      %p274 = scmp.lt.s32.totalorder %s18, 1
      %s275 = scalar_select %p274, %s18, 1
      %s276 = smul.addr %s275, 2
      %s277 = smul.addr %s276, 4
      %s278 = scalar_lea.vmem %s7, %s277
      %v282 = vld [vmem:[%s273] sm:$0xf]
      %v283 = vld [vmem:[%s273 + $0x4] sm:$0xf]
      %v284 = vld [vmem:[%s273 + $0x8] sm:$0xf]
      %v285 = vld [vmem:[%s273 + $0xc] sm:$0xf]
      %v286 = vld [vmem:[%s273 + $0x10] sm:$0xf]
      %v287 = vld [vmem:[%s273 + $0x14] sm:$0xf]
      %v288 = vld [vmem:[%s273 + $0x18] sm:$0xf]
      %v289 = vld [vmem:[%s273 + $0x1c] sm:$0xf]
      %v290 = vld [vmem:[%s273 + $0x20] sm:$0xf]
      %v291 = vld [vmem:[%s273 + $0x24] sm:$0xf]
      %v292 = vld [vmem:[%s273 + $0x28] sm:$0xf]
      %v293 = vld [vmem:[%s273 + $0x2c] sm:$0xf]
      %v294 = vld [vmem:[%s273 + $0x30] sm:$0xf]
      %v295 = vld [vmem:[%s273 + $0x34] sm:$0xf]
      %v296 = vld [vmem:[%s273 + $0x38] sm:$0xf]
      %v297 = vld [vmem:[%s273 + $0x3c] sm:$0xf]
      %v298 = vld [vmem:[%s273 + $0x40] sm:$0xf]
      %v299 = vld [vmem:[%s273 + $0x44] sm:$0xf]
      %v300 = vld [vmem:[%s273 + $0x48] sm:$0xf]
      %v301 = vld [vmem:[%s273 + $0x4c] sm:$0xf]
      %v302 = vld [vmem:[%s273 + $0x50] sm:$0xf]
      %v303 = vld [vmem:[%s273 + $0x54] sm:$0xf]
      %v304 = vld [vmem:[%s273 + $0x58] sm:$0xf]
      %v305 = vld [vmem:[%s273 + $0x5c] sm:$0xf]
      %v306 = vld [vmem:[%s273 + $0x60] sm:$0xf]
      %v307 = vld [vmem:[%s273 + $0x64] sm:$0xf]
      %v308 = vld [vmem:[%s273 + $0x68] sm:$0xf]
      %v309 = vld [vmem:[%s273 + $0x6c] sm:$0xf]
      %v310 = vld [vmem:[%s273 + $0x70] sm:$0xf]
      %v311 = vld [vmem:[%s273 + $0x74] sm:$0xf]
      %v312 = vld [vmem:[%s273 + $0x78] sm:$0xf]
      %v313 = vld [vmem:[%s273 + $0x7c] sm:$0xf]
      %vm314 = vcmask 289792
      %315 = vst.msk [vmem:[#allocation2] sm:$0xf] %vm314, %v282
      %316 = vst.msk [vmem:[#allocation2 + $0xc] sm:$0xf] %vm314, %v283
      %317 = vst.msk [vmem:[#allocation2 + $0x18] sm:$0xf] %vm314, %v284
      %318 = vst.msk [vmem:[#allocation2 + $0x24] sm:$0xf] %vm314, %v285
      %319 = vst.msk [vmem:[#allocation2 + $0x30] sm:$0xf] %vm314, %v286
      %320 = vst.msk [vmem:[#allocation2 + $0x3c] sm:$0xf] %vm314, %v287
      %321 = vst.msk [vmem:[#allocation2 + $0x48] sm:$0xf] %vm314, %v288
      %322 = vst.msk [vmem:[#allocation2 + $0x54] sm:$0xf] %vm314, %v289
      %323 = vst.msk [vmem:[#allocation2 + $0x60] sm:$0xf] %vm314, %v290
      %324 = vst.msk [vmem:[#allocation2 + $0x6c] sm:$0xf] %vm314, %v291
      %325 = vst.msk [vmem:[#allocation2 + $0x78] sm:$0xf] %vm314, %v292
      %326 = vst.msk [vmem:[#allocation2 + $0x84] sm:$0xf] %vm314, %v293
      %327 = vst.msk [vmem:[#allocation2 + $0x90] sm:$0xf] %vm314, %v294
      %328 = vst.msk [vmem:[#allocation2 + $0x9c] sm:$0xf] %vm314, %v295
      %329 = vst.msk [vmem:[#allocation2 + $0xa8] sm:$0xf] %vm314, %v296
      %330 = vst.msk [vmem:[#allocation2 + $0xb4] sm:$0xf] %vm314, %v297
      %331 = vst.msk [vmem:[#allocation2 + $0xc0] sm:$0xf] %vm314, %v298
      %332 = vst.msk [vmem:[#allocation2 + $0xcc] sm:$0xf] %vm314, %v299
      %333 = vst.msk [vmem:[#allocation2 + $0xd8] sm:$0xf] %vm314, %v300
      %334 = vst.msk [vmem:[#allocation2 + $0xe4] sm:$0xf] %vm314, %v301
      %335 = vst.msk [vmem:[#allocation2 + $0xf0] sm:$0xf] %vm314, %v302
      %336 = vst.msk [vmem:[#allocation2 + $0xfc] sm:$0xf] %vm314, %v303
      %337 = vst.msk [vmem:[#allocation2 + $0x108] sm:$0xf] %vm314, %v304
      %338 = vst.msk [vmem:[#allocation2 + $0x114] sm:$0xf] %vm314, %v305
      %339 = vst.msk [vmem:[#allocation2 + $0x120] sm:$0xf] %vm314, %v306
      %340 = vst.msk [vmem:[#allocation2 + $0x12c] sm:$0xf] %vm314, %v307
      %341 = vst.msk [vmem:[#allocation2 + $0x138] sm:$0xf] %vm314, %v308
      %342 = vst.msk [vmem:[#allocation2 + $0x144] sm:$0xf] %vm314, %v309
      %343 = vst.msk [vmem:[#allocation2 + $0x150] sm:$0xf] %vm314, %v310
      %344 = vst.msk [vmem:[#allocation2 + $0x15c] sm:$0xf] %vm314, %v311
      %345 = vst.msk [vmem:[#allocation2 + $0x168] sm:$0xf] %vm314, %v312
      %346 = vst.msk [vmem:[#allocation2 + $0x174] sm:$0xf] %vm314, %v313
      %s347 = scalar_lea.vmem %s273, 8
      %v348 = vld [vmem:[%s347] sm:$0xf]
      %v349 = vld [vmem:[%s347 + $0x4] sm:$0xf]
      %v350 = vld [vmem:[%s347 + $0x8] sm:$0xf]
      %v351 = vld [vmem:[%s347 + $0xc] sm:$0xf]
      %v352 = vld [vmem:[%s347 + $0x10] sm:$0xf]
      %v353 = vld [vmem:[%s347 + $0x14] sm:$0xf]
      %v354 = vld [vmem:[%s347 + $0x18] sm:$0xf]
      %v355 = vld [vmem:[%s347 + $0x1c] sm:$0xf]
      %v356 = vld [vmem:[%s347 + $0x20] sm:$0xf]
      %v357 = vld [vmem:[%s347 + $0x24] sm:$0xf]
      %v358 = vld [vmem:[%s347 + $0x28] sm:$0xf]
      %v359 = vld [vmem:[%s347 + $0x2c] sm:$0xf]
      %v360 = vld [vmem:[%s347 + $0x30] sm:$0xf]
      %v361 = vld [vmem:[%s347 + $0x34] sm:$0xf]
      %v362 = vld [vmem:[%s347 + $0x38] sm:$0xf]
      %v363 = vld [vmem:[%s347 + $0x3c] sm:$0xf]
      %v364 = vld [vmem:[%s347 + $0x40] sm:$0xf]
      %v365 = vld [vmem:[%s347 + $0x44] sm:$0xf]
      %v366 = vld [vmem:[%s347 + $0x48] sm:$0xf]
      %v367 = vld [vmem:[%s347 + $0x4c] sm:$0xf]
      %v368 = vld [vmem:[%s347 + $0x50] sm:$0xf]
      %v369 = vld [vmem:[%s347 + $0x54] sm:$0xf]
      %v370 = vld [vmem:[%s347 + $0x58] sm:$0xf]
      %v371 = vld [vmem:[%s347 + $0x5c] sm:$0xf]
      %v372 = vld [vmem:[%s347 + $0x60] sm:$0xf]
      %v373 = vld [vmem:[%s347 + $0x64] sm:$0xf]
      %v374 = vld [vmem:[%s347 + $0x68] sm:$0xf]
      %v375 = vld [vmem:[%s347 + $0x6c] sm:$0xf]
      %v376 = vld [vmem:[%s347 + $0x70] sm:$0xf]
      %v377 = vld [vmem:[%s347 + $0x74] sm:$0xf]
      %v378 = vld [vmem:[%s347 + $0x78] sm:$0xf]
      %v379 = vld [vmem:[%s347 + $0x7c] sm:$0xf]
      %412 = vrot.lane.b32.xlu0 %v348, 36
      %v413 = vpop.permute.xlu0 %412
      %414 = vrot.lane.b32.xlu0 %v349, 36
      %v415 = vpop.permute.xlu0 %414
      %416 = vrot.lane.b32.xlu0 %v350, 36
      %v417 = vpop.permute.xlu0 %416
      %418 = vrot.lane.b32.xlu0 %v351, 36
      %v419 = vpop.permute.xlu0 %418
      %420 = vrot.lane.b32.xlu0 %v352, 36
      %v421 = vpop.permute.xlu0 %420
      %422 = vrot.lane.b32.xlu0 %v353, 36
      %v423 = vpop.permute.xlu0 %422
      %424 = vrot.lane.b32.xlu0 %v354, 36
      %v425 = vpop.permute.xlu0 %424
      %426 = vrot.lane.b32.xlu0 %v355, 36
      %v427 = vpop.permute.xlu0 %426
      %428 = vrot.lane.b32.xlu0 %v356, 36
      %v429 = vpop.permute.xlu0 %428
      %430 = vrot.lane.b32.xlu0 %v357, 36
      %v431 = vpop.permute.xlu0 %430
      %432 = vrot.lane.b32.xlu0 %v358, 36
      %v433 = vpop.permute.xlu0 %432
      %434 = vrot.lane.b32.xlu0 %v359, 36
      %v435 = vpop.permute.xlu0 %434
      %436 = vrot.lane.b32.xlu0 %v360, 36
      %v437 = vpop.permute.xlu0 %436
      %438 = vrot.lane.b32.xlu0 %v361, 36
      %v439 = vpop.permute.xlu0 %438
      %440 = vrot.lane.b32.xlu0 %v362, 36
      %v441 = vpop.permute.xlu0 %440
      %442 = vrot.lane.b32.xlu0 %v363, 36
      %v443 = vpop.permute.xlu0 %442
      %444 = vrot.lane.b32.xlu0 %v364, 36
      %v445 = vpop.permute.xlu0 %444
      %446 = vrot.lane.b32.xlu0 %v365, 36
      %v447 = vpop.permute.xlu0 %446
      %448 = vrot.lane.b32.xlu0 %v366, 36
      %v449 = vpop.permute.xlu0 %448
      %450 = vrot.lane.b32.xlu0 %v367, 36
      %v451 = vpop.permute.xlu0 %450
      %452 = vrot.lane.b32.xlu0 %v368, 36
      %v453 = vpop.permute.xlu0 %452
      %454 = vrot.lane.b32.xlu0 %v369, 36
      %v455 = vpop.permute.xlu0 %454
      %456 = vrot.lane.b32.xlu0 %v370, 36
      %v457 = vpop.permute.xlu0 %456
      %458 = vrot.lane.b32.xlu0 %v371, 36
      %v459 = vpop.permute.xlu0 %458
      %460 = vrot.lane.b32.xlu0 %v372, 36
      %v461 = vpop.permute.xlu0 %460
      %462 = vrot.lane.b32.xlu0 %v373, 36
      %v463 = vpop.permute.xlu0 %462
      %464 = vrot.lane.b32.xlu0 %v374, 36
      %v465 = vpop.permute.xlu0 %464
      %466 = vrot.lane.b32.xlu0 %v375, 36
      %v467 = vpop.permute.xlu0 %466
      %468 = vrot.lane.b32.xlu0 %v376, 36
      %v469 = vpop.permute.xlu0 %468
      %470 = vrot.lane.b32.xlu0 %v377, 36
      %v471 = vpop.permute.xlu0 %470
      %472 = vrot.lane.b32.xlu0 %v378, 36
      %v473 = vpop.permute.xlu0 %472
      %474 = vrot.lane.b32.xlu0 %v379, 36
      %v475 = vpop.permute.xlu0 %474
      %vm508 = vcmask 584992
      %509 = vst.msk [vmem:[#allocation2] sm:$0xf] %vm508, %v413
      %510 = vst.msk [vmem:[#allocation2 + $0xc] sm:$0xf] %vm508, %v415
      %511 = vst.msk [vmem:[#allocation2 + $0x18] sm:$0xf] %vm508, %v417
      %512 = vst.msk [vmem:[#allocation2 + $0x24] sm:$0xf] %vm508, %v419
      %513 = vst.msk [vmem:[#allocation2 + $0x30] sm:$0xf] %vm508, %v421
      %514 = vst.msk [vmem:[#allocation2 + $0x3c] sm:$0xf] %vm508, %v423
      %515 = vst.msk [vmem:[#allocation2 + $0x48] sm:$0xf] %vm508, %v425
      %516 = vst.msk [vmem:[#allocation2 + $0x54] sm:$0xf] %vm508, %v427
      %517 = vst.msk [vmem:[#allocation2 + $0x60] sm:$0xf] %vm508, %v429
      %518 = vst.msk [vmem:[#allocation2 + $0x6c] sm:$0xf] %vm508, %v431
      %519 = vst.msk [vmem:[#allocation2 + $0x78] sm:$0xf] %vm508, %v433
      %520 = vst.msk [vmem:[#allocation2 + $0x84] sm:$0xf] %vm508, %v435
      %521 = vst.msk [vmem:[#allocation2 + $0x90] sm:$0xf] %vm508, %v437
      %522 = vst.msk [vmem:[#allocation2 + $0x9c] sm:$0xf] %vm508, %v439
      %523 = vst.msk [vmem:[#allocation2 + $0xa8] sm:$0xf] %vm508, %v441
      %524 = vst.msk [vmem:[#allocation2 + $0xb4] sm:$0xf] %vm508, %v443
      %525 = vst.msk [vmem:[#allocation2 + $0xc0] sm:$0xf] %vm508, %v445
      %526 = vst.msk [vmem:[#allocation2 + $0xcc] sm:$0xf] %vm508, %v447
      %527 = vst.msk [vmem:[#allocation2 + $0xd8] sm:$0xf] %vm508, %v449
      %528 = vst.msk [vmem:[#allocation2 + $0xe4] sm:$0xf] %vm508, %v451
      %529 = vst.msk [vmem:[#allocation2 + $0xf0] sm:$0xf] %vm508, %v453
      %530 = vst.msk [vmem:[#allocation2 + $0xfc] sm:$0xf] %vm508, %v455
      %531 = vst.msk [vmem:[#allocation2 + $0x108] sm:$0xf] %vm508, %v457
      %532 = vst.msk [vmem:[#allocation2 + $0x114] sm:$0xf] %vm508, %v459
      %533 = vst.msk [vmem:[#allocation2 + $0x120] sm:$0xf] %vm508, %v461
      %534 = vst.msk [vmem:[#allocation2 + $0x12c] sm:$0xf] %vm508, %v463
      %535 = vst.msk [vmem:[#allocation2 + $0x138] sm:$0xf] %vm508, %v465
      %536 = vst.msk [vmem:[#allocation2 + $0x144] sm:$0xf] %vm508, %v467
      %537 = vst.msk [vmem:[#allocation2 + $0x150] sm:$0xf] %vm508, %v469
      %538 = vst.msk [vmem:[#allocation2 + $0x15c] sm:$0xf] %vm508, %v471
      %539 = vst.msk [vmem:[#allocation2 + $0x168] sm:$0xf] %vm508, %v473
      %540 = vst.msk [vmem:[#allocation2 + $0x174] sm:$0xf] %vm508, %v475
      %s541 = scalar_lea.vmem %s273, 16
      %v542 = vld [vmem:[%s541] sm:$0xf]
      %v543 = vld [vmem:[%s541 + $0x4] sm:$0xf]
      %v544 = vld [vmem:[%s541 + $0x8] sm:$0xf]
      %v545 = vld [vmem:[%s541 + $0xc] sm:$0xf]
      %v546 = vld [vmem:[%s541 + $0x10] sm:$0xf]
      %v547 = vld [vmem:[%s541 + $0x14] sm:$0xf]
      %v548 = vld [vmem:[%s541 + $0x18] sm:$0xf]
      %v549 = vld [vmem:[%s541 + $0x1c] sm:$0xf]
      %v550 = vld [vmem:[%s541 + $0x20] sm:$0xf]
      %v551 = vld [vmem:[%s541 + $0x24] sm:$0xf]
      %v552 = vld [vmem:[%s541 + $0x28] sm:$0xf]
      %v553 = vld [vmem:[%s541 + $0x2c] sm:$0xf]
      %v554 = vld [vmem:[%s541 + $0x30] sm:$0xf]
      %v555 = vld [vmem:[%s541 + $0x34] sm:$0xf]
      %v556 = vld [vmem:[%s541 + $0x38] sm:$0xf]
      %v557 = vld [vmem:[%s541 + $0x3c] sm:$0xf]
      %v558 = vld [vmem:[%s541 + $0x40] sm:$0xf]
      %v559 = vld [vmem:[%s541 + $0x44] sm:$0xf]
      %v560 = vld [vmem:[%s541 + $0x48] sm:$0xf]
      %v561 = vld [vmem:[%s541 + $0x4c] sm:$0xf]
      %v562 = vld [vmem:[%s541 + $0x50] sm:$0xf]
      %v563 = vld [vmem:[%s541 + $0x54] sm:$0xf]
      %v564 = vld [vmem:[%s541 + $0x58] sm:$0xf]
      %v565 = vld [vmem:[%s541 + $0x5c] sm:$0xf]
      %v566 = vld [vmem:[%s541 + $0x60] sm:$0xf]
      %v567 = vld [vmem:[%s541 + $0x64] sm:$0xf]
      %v568 = vld [vmem:[%s541 + $0x68] sm:$0xf]
      %v569 = vld [vmem:[%s541 + $0x6c] sm:$0xf]
      %v570 = vld [vmem:[%s541 + $0x70] sm:$0xf]
      %v571 = vld [vmem:[%s541 + $0x74] sm:$0xf]
      %v572 = vld [vmem:[%s541 + $0x78] sm:$0xf]
      %v573 = vld [vmem:[%s541 + $0x7c] sm:$0xf]
      %606 = vrot.lane.b32.xlu0 %v542, 72
      %v607 = vpop.permute.xlu0 %606
      %608 = vrot.lane.b32.xlu0 %v543, 72
      %v609 = vpop.permute.xlu0 %608
      %610 = vrot.lane.b32.xlu0 %v544, 72
      %v611 = vpop.permute.xlu0 %610
      %612 = vrot.lane.b32.xlu0 %v545, 72
      %v613 = vpop.permute.xlu0 %612
      %614 = vrot.lane.b32.xlu0 %v546, 72
      %v615 = vpop.permute.xlu0 %614
      %616 = vrot.lane.b32.xlu0 %v547, 72
      %v617 = vpop.permute.xlu0 %616
      %618 = vrot.lane.b32.xlu0 %v548, 72
      %v619 = vpop.permute.xlu0 %618
      %620 = vrot.lane.b32.xlu0 %v549, 72
      %v621 = vpop.permute.xlu0 %620
      %622 = vrot.lane.b32.xlu0 %v550, 72
      %v623 = vpop.permute.xlu0 %622
      %624 = vrot.lane.b32.xlu0 %v551, 72
      %v625 = vpop.permute.xlu0 %624
      %626 = vrot.lane.b32.xlu0 %v552, 72
      %v627 = vpop.permute.xlu0 %626
      %628 = vrot.lane.b32.xlu0 %v553, 72
      %v629 = vpop.permute.xlu0 %628
      %630 = vrot.lane.b32.xlu0 %v554, 72
      %v631 = vpop.permute.xlu0 %630
      %632 = vrot.lane.b32.xlu0 %v555, 72
      %v633 = vpop.permute.xlu0 %632
      %634 = vrot.lane.b32.xlu0 %v556, 72
      %v635 = vpop.permute.xlu0 %634
      %636 = vrot.lane.b32.xlu0 %v557, 72
      %v637 = vpop.permute.xlu0 %636
      %638 = vrot.lane.b32.xlu0 %v558, 72
      %v639 = vpop.permute.xlu0 %638
      %640 = vrot.lane.b32.xlu0 %v559, 72
      %v641 = vpop.permute.xlu0 %640
      %642 = vrot.lane.b32.xlu0 %v560, 72
      %v643 = vpop.permute.xlu0 %642
      %644 = vrot.lane.b32.xlu0 %v561, 72
      %v645 = vpop.permute.xlu0 %644
      %646 = vrot.lane.b32.xlu0 %v562, 72
      %v647 = vpop.permute.xlu0 %646
      %648 = vrot.lane.b32.xlu0 %v563, 72
      %v649 = vpop.permute.xlu0 %648
      %650 = vrot.lane.b32.xlu0 %v564, 72
      %v651 = vpop.permute.xlu0 %650
      %652 = vrot.lane.b32.xlu0 %v565, 72
      %v653 = vpop.permute.xlu0 %652
      %654 = vrot.lane.b32.xlu0 %v566, 72
      %v655 = vpop.permute.xlu0 %654
      %656 = vrot.lane.b32.xlu0 %v567, 72
      %v657 = vpop.permute.xlu0 %656
      %658 = vrot.lane.b32.xlu0 %v568, 72
      %v659 = vpop.permute.xlu0 %658
      %660 = vrot.lane.b32.xlu0 %v569, 72
      %v661 = vpop.permute.xlu0 %660
      %662 = vrot.lane.b32.xlu0 %v570, 72
      %v663 = vpop.permute.xlu0 %662
      %664 = vrot.lane.b32.xlu0 %v571, 72
      %v665 = vpop.permute.xlu0 %664
      %666 = vrot.lane.b32.xlu0 %v572, 72
      %v667 = vpop.permute.xlu0 %666
      %668 = vrot.lane.b32.xlu0 %v573, 72
      %v669 = vpop.permute.xlu0 %668
      %vm702 = vcmask 880192
      %703 = vst.msk [vmem:[#allocation2] sm:$0xf] %vm702, %v607
      %704 = vst.msk [vmem:[#allocation2 + $0xc] sm:$0xf] %vm702, %v609
      %705 = vst.msk [vmem:[#allocation2 + $0x18] sm:$0xf] %vm702, %v611
      %706 = vst.msk [vmem:[#allocation2 + $0x24] sm:$0xf] %vm702, %v613
      %707 = vst.msk [vmem:[#allocation2 + $0x30] sm:$0xf] %vm702, %v615
      %708 = vst.msk [vmem:[#allocation2 + $0x3c] sm:$0xf] %vm702, %v617
      %709 = vst.msk [vmem:[#allocation2 + $0x48] sm:$0xf] %vm702, %v619
      %710 = vst.msk [vmem:[#allocation2 + $0x54] sm:$0xf] %vm702, %v621
      %711 = vst.msk [vmem:[#allocation2 + $0x60] sm:$0xf] %vm702, %v623
      %712 = vst.msk [vmem:[#allocation2 + $0x6c] sm:$0xf] %vm702, %v625
      %713 = vst.msk [vmem:[#allocation2 + $0x78] sm:$0xf] %vm702, %v627
      %714 = vst.msk [vmem:[#allocation2 + $0x84] sm:$0xf] %vm702, %v629
      %715 = vst.msk [vmem:[#allocation2 + $0x90] sm:$0xf] %vm702, %v631
      %716 = vst.msk [vmem:[#allocation2 + $0x9c] sm:$0xf] %vm702, %v633
      %717 = vst.msk [vmem:[#allocation2 + $0xa8] sm:$0xf] %vm702, %v635
      %718 = vst.msk [vmem:[#allocation2 + $0xb4] sm:$0xf] %vm702, %v637
      %719 = vst.msk [vmem:[#allocation2 + $0xc0] sm:$0xf] %vm702, %v639
      %720 = vst.msk [vmem:[#allocation2 + $0xcc] sm:$0xf] %vm702, %v641
      %721 = vst.msk [vmem:[#allocation2 + $0xd8] sm:$0xf] %vm702, %v643
      %722 = vst.msk [vmem:[#allocation2 + $0xe4] sm:$0xf] %vm702, %v645
      %723 = vst.msk [vmem:[#allocation2 + $0xf0] sm:$0xf] %vm702, %v647
      %724 = vst.msk [vmem:[#allocation2 + $0xfc] sm:$0xf] %vm702, %v649
      %725 = vst.msk [vmem:[#allocation2 + $0x108] sm:$0xf] %vm702, %v651
      %726 = vst.msk [vmem:[#allocation2 + $0x114] sm:$0xf] %vm702, %v653
      %727 = vst.msk [vmem:[#allocation2 + $0x120] sm:$0xf] %vm702, %v655
      %728 = vst.msk [vmem:[#allocation2 + $0x12c] sm:$0xf] %vm702, %v657
      %729 = vst.msk [vmem:[#allocation2 + $0x138] sm:$0xf] %vm702, %v659
      %730 = vst.msk [vmem:[#allocation2 + $0x144] sm:$0xf] %vm702, %v661
      %731 = vst.msk [vmem:[#allocation2 + $0x150] sm:$0xf] %vm702, %v663
      %732 = vst.msk [vmem:[#allocation2 + $0x15c] sm:$0xf] %vm702, %v665
      %733 = vst.msk [vmem:[#allocation2 + $0x168] sm:$0xf] %vm702, %v667
      %734 = vst.msk [vmem:[#allocation2 + $0x174] sm:$0xf] %vm702, %v669
      %s735 = scalar_lea.vmem %s273, 24
      %v736 = vld [vmem:[%s735] sm:$0xf]
      %v737 = vld [vmem:[%s735 + $0x4] sm:$0xf]
      %v738 = vld [vmem:[%s735 + $0x8] sm:$0xf]
      %v739 = vld [vmem:[%s735 + $0xc] sm:$0xf]
      %v740 = vld [vmem:[%s735 + $0x10] sm:$0xf]
      %v741 = vld [vmem:[%s735 + $0x14] sm:$0xf]
      %v742 = vld [vmem:[%s735 + $0x18] sm:$0xf]
      %v743 = vld [vmem:[%s735 + $0x1c] sm:$0xf]
      %v744 = vld [vmem:[%s735 + $0x20] sm:$0xf]
      %v745 = vld [vmem:[%s735 + $0x24] sm:$0xf]
      %v746 = vld [vmem:[%s735 + $0x28] sm:$0xf]
      %v747 = vld [vmem:[%s735 + $0x2c] sm:$0xf]
      %v748 = vld [vmem:[%s735 + $0x30] sm:$0xf]
      %v749 = vld [vmem:[%s735 + $0x34] sm:$0xf]
      %v750 = vld [vmem:[%s735 + $0x38] sm:$0xf]
      %v751 = vld [vmem:[%s735 + $0x3c] sm:$0xf]
      %v752 = vld [vmem:[%s735 + $0x40] sm:$0xf]
      %v753 = vld [vmem:[%s735 + $0x44] sm:$0xf]
      %v754 = vld [vmem:[%s735 + $0x48] sm:$0xf]
      %v755 = vld [vmem:[%s735 + $0x4c] sm:$0xf]
      %v756 = vld [vmem:[%s735 + $0x50] sm:$0xf]
      %v757 = vld [vmem:[%s735 + $0x54] sm:$0xf]
      %v758 = vld [vmem:[%s735 + $0x58] sm:$0xf]
      %v759 = vld [vmem:[%s735 + $0x5c] sm:$0xf]
      %v760 = vld [vmem:[%s735 + $0x60] sm:$0xf]
      %v761 = vld [vmem:[%s735 + $0x64] sm:$0xf]
      %v762 = vld [vmem:[%s735 + $0x68] sm:$0xf]
      %v763 = vld [vmem:[%s735 + $0x6c] sm:$0xf]
      %v764 = vld [vmem:[%s735 + $0x70] sm:$0xf]
      %v765 = vld [vmem:[%s735 + $0x74] sm:$0xf]
      %v766 = vld [vmem:[%s735 + $0x78] sm:$0xf]
      %v767 = vld [vmem:[%s735 + $0x7c] sm:$0xf]
      %800 = vrot.lane.b32.xlu0 %v736, 108
      %v801 = vpop.permute.xlu0 %800
      %802 = vrot.lane.b32.xlu0 %v737, 108
      %v803 = vpop.permute.xlu0 %802
      %804 = vrot.lane.b32.xlu0 %v738, 108
      %v805 = vpop.permute.xlu0 %804
      %806 = vrot.lane.b32.xlu0 %v739, 108
      %v807 = vpop.permute.xlu0 %806
      %808 = vrot.lane.b32.xlu0 %v740, 108
      %v809 = vpop.permute.xlu0 %808
      %810 = vrot.lane.b32.xlu0 %v741, 108
      %v811 = vpop.permute.xlu0 %810
      %812 = vrot.lane.b32.xlu0 %v742, 108
      %v813 = vpop.permute.xlu0 %812
      %814 = vrot.lane.b32.xlu0 %v743, 108
      %v815 = vpop.permute.xlu0 %814
      %816 = vrot.lane.b32.xlu0 %v744, 108
      %v817 = vpop.permute.xlu0 %816
      %818 = vrot.lane.b32.xlu0 %v745, 108
      %v819 = vpop.permute.xlu0 %818
      %820 = vrot.lane.b32.xlu0 %v746, 108
      %v821 = vpop.permute.xlu0 %820
      %822 = vrot.lane.b32.xlu0 %v747, 108
      %v823 = vpop.permute.xlu0 %822
      %824 = vrot.lane.b32.xlu0 %v748, 108
      %v825 = vpop.permute.xlu0 %824
      %826 = vrot.lane.b32.xlu0 %v749, 108
      %v827 = vpop.permute.xlu0 %826
      %828 = vrot.lane.b32.xlu0 %v750, 108
      %v829 = vpop.permute.xlu0 %828
      %830 = vrot.lane.b32.xlu0 %v751, 108
      %v831 = vpop.permute.xlu0 %830
      %832 = vrot.lane.b32.xlu0 %v752, 108
      %v833 = vpop.permute.xlu0 %832
      %834 = vrot.lane.b32.xlu0 %v753, 108
      %v835 = vpop.permute.xlu0 %834
      %836 = vrot.lane.b32.xlu0 %v754, 108
      %v837 = vpop.permute.xlu0 %836
      %838 = vrot.lane.b32.xlu0 %v755, 108
      %v839 = vpop.permute.xlu0 %838
      %840 = vrot.lane.b32.xlu0 %v756, 108
      %v841 = vpop.permute.xlu0 %840
      %842 = vrot.lane.b32.xlu0 %v757, 108
      %v843 = vpop.permute.xlu0 %842
      %844 = vrot.lane.b32.xlu0 %v758, 108
      %v845 = vpop.permute.xlu0 %844
      %846 = vrot.lane.b32.xlu0 %v759, 108
      %v847 = vpop.permute.xlu0 %846
      %848 = vrot.lane.b32.xlu0 %v760, 108
      %v849 = vpop.permute.xlu0 %848
      %850 = vrot.lane.b32.xlu0 %v761, 108
      %v851 = vpop.permute.xlu0 %850
      %852 = vrot.lane.b32.xlu0 %v762, 108
      %v853 = vpop.permute.xlu0 %852
      %854 = vrot.lane.b32.xlu0 %v763, 108
      %v855 = vpop.permute.xlu0 %854
      %856 = vrot.lane.b32.xlu0 %v764, 108
      %v857 = vpop.permute.xlu0 %856
      %858 = vrot.lane.b32.xlu0 %v765, 108
      %v859 = vpop.permute.xlu0 %858
      %860 = vrot.lane.b32.xlu0 %v766, 108
      %v861 = vpop.permute.xlu0 %860
      %862 = vrot.lane.b32.xlu0 %v767, 108
      %v863 = vpop.permute.xlu0 %862
      %v864 = vrot.slane %v801, 4
      %v865 = vrot.slane %v803, 4
      %v866 = vrot.slane %v805, 4
      %v867 = vrot.slane %v807, 4
      %v868 = vrot.slane %v809, 4
      %v869 = vrot.slane %v811, 4
      %v870 = vrot.slane %v813, 4
      %v871 = vrot.slane %v815, 4
      %v872 = vrot.slane %v817, 4
      %v873 = vrot.slane %v819, 4
      %v874 = vrot.slane %v821, 4
      %v875 = vrot.slane %v823, 4
      %v876 = vrot.slane %v825, 4
      %v877 = vrot.slane %v827, 4
      %v878 = vrot.slane %v829, 4
      %v879 = vrot.slane %v831, 4
      %v880 = vrot.slane %v833, 4
      %v881 = vrot.slane %v835, 4
      %v882 = vrot.slane %v837, 4
      %v883 = vrot.slane %v839, 4
      %v884 = vrot.slane %v841, 4
      %v885 = vrot.slane %v843, 4
      %v886 = vrot.slane %v845, 4
      %v887 = vrot.slane %v847, 4
      %v888 = vrot.slane %v849, 4
      %v889 = vrot.slane %v851, 4
      %v890 = vrot.slane %v853, 4
      %v891 = vrot.slane %v855, 4
      %v892 = vrot.slane %v857, 4
      %v893 = vrot.slane %v859, 4
      %v894 = vrot.slane %v861, 4
      %v895 = vrot.slane %v863, 4
      %vm896 = vcmask 883712
      %v897 = vsel %vm896, %v864, %v801
      %v898 = vsel %vm896, %v865, %v803
      %v899 = vsel %vm896, %v866, %v805
      %v900 = vsel %vm896, %v867, %v807
      %v901 = vsel %vm896, %v868, %v809
      %v902 = vsel %vm896, %v869, %v811
      %v903 = vsel %vm896, %v870, %v813
      %v904 = vsel %vm896, %v871, %v815
      %v905 = vsel %vm896, %v872, %v817
      %v906 = vsel %vm896, %v873, %v819
      %v907 = vsel %vm896, %v874, %v821
      %v908 = vsel %vm896, %v875, %v823
      %v909 = vsel %vm896, %v876, %v825
      %v910 = vsel %vm896, %v877, %v827
      %v911 = vsel %vm896, %v878, %v829
      %v912 = vsel %vm896, %v879, %v831
      %v913 = vsel %vm896, %v880, %v833
      %v914 = vsel %vm896, %v881, %v835
      %v915 = vsel %vm896, %v882, %v837
      %v916 = vsel %vm896, %v883, %v839
      %v917 = vsel %vm896, %v884, %v841
      %v918 = vsel %vm896, %v885, %v843
      %v919 = vsel %vm896, %v886, %v845
      %v920 = vsel %vm896, %v887, %v847
      %v921 = vsel %vm896, %v888, %v849
      %v922 = vsel %vm896, %v889, %v851
      %v923 = vsel %vm896, %v890, %v853
      %v924 = vsel %vm896, %v891, %v855
      %v925 = vsel %vm896, %v892, %v857
      %v926 = vsel %vm896, %v893, %v859
      %v927 = vsel %vm896, %v894, %v861
      %v928 = vsel %vm896, %v895, %v863
      %vm961 = vcmask 1044320
      %vm962 = vcmask 130052
      %vm963 = vmor %vm962, %vm961
      %964 = vst.msk [vmem:[#allocation2] sm:$0xff] %vm963, %v897
      %965 = vst.msk [vmem:[#allocation2 + $0xc] sm:$0xff] %vm963, %v898
      %966 = vst.msk [vmem:[#allocation2 + $0x18] sm:$0xff] %vm963, %v899
      %967 = vst.msk [vmem:[#allocation2 + $0x24] sm:$0xff] %vm963, %v900
      %968 = vst.msk [vmem:[#allocation2 + $0x30] sm:$0xff] %vm963, %v901
      %969 = vst.msk [vmem:[#allocation2 + $0x3c] sm:$0xff] %vm963, %v902
      %970 = vst.msk [vmem:[#allocation2 + $0x48] sm:$0xff] %vm963, %v903
      %971 = vst.msk [vmem:[#allocation2 + $0x54] sm:$0xff] %vm963, %v904
      %972 = vst.msk [vmem:[#allocation2 + $0x60] sm:$0xff] %vm963, %v905
      %973 = vst.msk [vmem:[#allocation2 + $0x6c] sm:$0xff] %vm963, %v906
      %974 = vst.msk [vmem:[#allocation2 + $0x78] sm:$0xff] %vm963, %v907
      %975 = vst.msk [vmem:[#allocation2 + $0x84] sm:$0xff] %vm963, %v908
      %976 = vst.msk [vmem:[#allocation2 + $0x90] sm:$0xff] %vm963, %v909
      %977 = vst.msk [vmem:[#allocation2 + $0x9c] sm:$0xff] %vm963, %v910
      %978 = vst.msk [vmem:[#allocation2 + $0xa8] sm:$0xff] %vm963, %v911
      %979 = vst.msk [vmem:[#allocation2 + $0xb4] sm:$0xff] %vm963, %v912
      %980 = vst.msk [vmem:[#allocation2 + $0xc0] sm:$0xff] %vm963, %v913
      %981 = vst.msk [vmem:[#allocation2 + $0xcc] sm:$0xff] %vm963, %v914
      %982 = vst.msk [vmem:[#allocation2 + $0xd8] sm:$0xff] %vm963, %v915
      %983 = vst.msk [vmem:[#allocation2 + $0xe4] sm:$0xff] %vm963, %v916
      %984 = vst.msk [vmem:[#allocation2 + $0xf0] sm:$0xff] %vm963, %v917
      %985 = vst.msk [vmem:[#allocation2 + $0xfc] sm:$0xff] %vm963, %v918
      %986 = vst.msk [vmem:[#allocation2 + $0x108] sm:$0xff] %vm963, %v919
      %987 = vst.msk [vmem:[#allocation2 + $0x114] sm:$0xff] %vm963, %v920
      %988 = vst.msk [vmem:[#allocation2 + $0x120] sm:$0xff] %vm963, %v921
      %989 = vst.msk [vmem:[#allocation2 + $0x12c] sm:$0xff] %vm963, %v922
      %990 = vst.msk [vmem:[#allocation2 + $0x138] sm:$0xff] %vm963, %v923
      %991 = vst.msk [vmem:[#allocation2 + $0x144] sm:$0xff] %vm963, %v924
      %992 = vst.msk [vmem:[#allocation2 + $0x150] sm:$0xff] %vm963, %v925
      %993 = vst.msk [vmem:[#allocation2 + $0x15c] sm:$0xff] %vm963, %v926
      %994 = vst.msk [vmem:[#allocation2 + $0x168] sm:$0xff] %vm963, %v927
      %995 = vst.msk [vmem:[#allocation2 + $0x174] sm:$0xff] %vm963, %v928
      %s996 = scalar_lea.vmem %s273, 32
      %v997 = vld [vmem:[%s996] sm:$0xf]
      %v998 = vld [vmem:[%s996 + $0x4] sm:$0xf]
      %v999 = vld [vmem:[%s996 + $0x8] sm:$0xf]
      %v1000 = vld [vmem:[%s996 + $0xc] sm:$0xf]
      %v1001 = vld [vmem:[%s996 + $0x10] sm:$0xf]
      %v1002 = vld [vmem:[%s996 + $0x14] sm:$0xf]
      %v1003 = vld [vmem:[%s996 + $0x18] sm:$0xf]
      %v1004 = vld [vmem:[%s996 + $0x1c] sm:$0xf]
      %v1005 = vld [vmem:[%s996 + $0x20] sm:$0xf]
      %v1006 = vld [vmem:[%s996 + $0x24] sm:$0xf]
      %v1007 = vld [vmem:[%s996 + $0x28] sm:$0xf]
      %v1008 = vld [vmem:[%s996 + $0x2c] sm:$0xf]
      %v1009 = vld [vmem:[%s996 + $0x30] sm:$0xf]
      %v1010 = vld [vmem:[%s996 + $0x34] sm:$0xf]
      %v1011 = vld [vmem:[%s996 + $0x38] sm:$0xf]
      %v1012 = vld [vmem:[%s996 + $0x3c] sm:$0xf]
      %v1013 = vld [vmem:[%s996 + $0x40] sm:$0xf]
      %v1014 = vld [vmem:[%s996 + $0x44] sm:$0xf]
      %v1015 = vld [vmem:[%s996 + $0x48] sm:$0xf]
      %v1016 = vld [vmem:[%s996 + $0x4c] sm:$0xf]
      %v1017 = vld [vmem:[%s996 + $0x50] sm:$0xf]
      %v1018 = vld [vmem:[%s996 + $0x54] sm:$0xf]
      %v1019 = vld [vmem:[%s996 + $0x58] sm:$0xf]
      %v1020 = vld [vmem:[%s996 + $0x5c] sm:$0xf]
      %v1021 = vld [vmem:[%s996 + $0x60] sm:$0xf]
      %v1022 = vld [vmem:[%s996 + $0x64] sm:$0xf]
      %v1023 = vld [vmem:[%s996 + $0x68] sm:$0xf]
      %v1024 = vld [vmem:[%s996 + $0x6c] sm:$0xf]
      %v1025 = vld [vmem:[%s996 + $0x70] sm:$0xf]
      %v1026 = vld [vmem:[%s996 + $0x74] sm:$0xf]
      %v1027 = vld [vmem:[%s996 + $0x78] sm:$0xf]
      %v1028 = vld [vmem:[%s996 + $0x7c] sm:$0xf]
      %1061 = vrot.lane.b32.xlu0 %v997, 16
      %v1062 = vpop.permute.xlu0 %1061
      %1063 = vrot.lane.b32.xlu0 %v998, 16
      %v1064 = vpop.permute.xlu0 %1063
      %1065 = vrot.lane.b32.xlu0 %v999, 16
      %v1066 = vpop.permute.xlu0 %1065
      %1067 = vrot.lane.b32.xlu0 %v1000, 16
      %v1068 = vpop.permute.xlu0 %1067
      %1069 = vrot.lane.b32.xlu0 %v1001, 16
      %v1070 = vpop.permute.xlu0 %1069
      %1071 = vrot.lane.b32.xlu0 %v1002, 16
      %v1072 = vpop.permute.xlu0 %1071
      %1073 = vrot.lane.b32.xlu0 %v1003, 16
      %v1074 = vpop.permute.xlu0 %1073
      %1075 = vrot.lane.b32.xlu0 %v1004, 16
      %v1076 = vpop.permute.xlu0 %1075
      %1077 = vrot.lane.b32.xlu0 %v1005, 16
      %v1078 = vpop.permute.xlu0 %1077
      %1079 = vrot.lane.b32.xlu0 %v1006, 16
      %v1080 = vpop.permute.xlu0 %1079
      %1081 = vrot.lane.b32.xlu0 %v1007, 16
      %v1082 = vpop.permute.xlu0 %1081
      %1083 = vrot.lane.b32.xlu0 %v1008, 16
      %v1084 = vpop.permute.xlu0 %1083
      %1085 = vrot.lane.b32.xlu0 %v1009, 16
      %v1086 = vpop.permute.xlu0 %1085
      %1087 = vrot.lane.b32.xlu0 %v1010, 16
      %v1088 = vpop.permute.xlu0 %1087
      %1089 = vrot.lane.b32.xlu0 %v1011, 16
      %v1090 = vpop.permute.xlu0 %1089
      %1091 = vrot.lane.b32.xlu0 %v1012, 16
      %v1092 = vpop.permute.xlu0 %1091
      %1093 = vrot.lane.b32.xlu0 %v1013, 16
      %v1094 = vpop.permute.xlu0 %1093
      %1095 = vrot.lane.b32.xlu0 %v1014, 16
      %v1096 = vpop.permute.xlu0 %1095
      %1097 = vrot.lane.b32.xlu0 %v1015, 16
      %v1098 = vpop.permute.xlu0 %1097
      %1099 = vrot.lane.b32.xlu0 %v1016, 16
      %v1100 = vpop.permute.xlu0 %1099
      %1101 = vrot.lane.b32.xlu0 %v1017, 16
      %v1102 = vpop.permute.xlu0 %1101
      %1103 = vrot.lane.b32.xlu0 %v1018, 16
      %v1104 = vpop.permute.xlu0 %1103
      %1105 = vrot.lane.b32.xlu0 %v1019, 16
      %v1106 = vpop.permute.xlu0 %1105
      %1107 = vrot.lane.b32.xlu0 %v1020, 16
      %v1108 = vpop.permute.xlu0 %1107
      %1109 = vrot.lane.b32.xlu0 %v1021, 16
      %v1110 = vpop.permute.xlu0 %1109
      %1111 = vrot.lane.b32.xlu0 %v1022, 16
      %v1112 = vpop.permute.xlu0 %1111
      %1113 = vrot.lane.b32.xlu0 %v1023, 16
      %v1114 = vpop.permute.xlu0 %1113
      %1115 = vrot.lane.b32.xlu0 %v1024, 16
      %v1116 = vpop.permute.xlu0 %1115
      %1117 = vrot.lane.b32.xlu0 %v1025, 16
      %v1118 = vpop.permute.xlu0 %1117
      %1119 = vrot.lane.b32.xlu0 %v1026, 16
      %v1120 = vpop.permute.xlu0 %1119
      %1121 = vrot.lane.b32.xlu0 %v1027, 16
      %v1122 = vpop.permute.xlu0 %1121
      %1123 = vrot.lane.b32.xlu0 %v1028, 16
      %v1124 = vpop.permute.xlu0 %1123
      %vm1157 = vcmask 420992
      %1158 = vst.msk [vmem:[#allocation2 + $0x4] sm:$0xf] %vm1157, %v1062
      %1159 = vst.msk [vmem:[#allocation2 + $0x10] sm:$0xf] %vm1157, %v1064
      %1160 = vst.msk [vmem:[#allocation2 + $0x1c] sm:$0xf] %vm1157, %v1066
      %1161 = vst.msk [vmem:[#allocation2 + $0x28] sm:$0xf] %vm1157, %v1068
      %1162 = vst.msk [vmem:[#allocation2 + $0x34] sm:$0xf] %vm1157, %v1070
      %1163 = vst.msk [vmem:[#allocation2 + $0x40] sm:$0xf] %vm1157, %v1072
      %1164 = vst.msk [vmem:[#allocation2 + $0x4c] sm:$0xf] %vm1157, %v1074
      %1165 = vst.msk [vmem:[#allocation2 + $0x58] sm:$0xf] %vm1157, %v1076
      %1166 = vst.msk [vmem:[#allocation2 + $0x64] sm:$0xf] %vm1157, %v1078
      %1167 = vst.msk [vmem:[#allocation2 + $0x70] sm:$0xf] %vm1157, %v1080
      %1168 = vst.msk [vmem:[#allocation2 + $0x7c] sm:$0xf] %vm1157, %v1082
      %1169 = vst.msk [vmem:[#allocation2 + $0x88] sm:$0xf] %vm1157, %v1084
      %1170 = vst.msk [vmem:[#allocation2 + $0x94] sm:$0xf] %vm1157, %v1086
      %1171 = vst.msk [vmem:[#allocation2 + $0xa0] sm:$0xf] %vm1157, %v1088
      %1172 = vst.msk [vmem:[#allocation2 + $0xac] sm:$0xf] %vm1157, %v1090
      %1173 = vst.msk [vmem:[#allocation2 + $0xb8] sm:$0xf] %vm1157, %v1092
      %1174 = vst.msk [vmem:[#allocation2 + $0xc4] sm:$0xf] %vm1157, %v1094
      %1175 = vst.msk [vmem:[#allocation2 + $0xd0] sm:$0xf] %vm1157, %v1096
      %1176 = vst.msk [vmem:[#allocation2 + $0xdc] sm:$0xf] %vm1157, %v1098
      %1177 = vst.msk [vmem:[#allocation2 + $0xe8] sm:$0xf] %vm1157, %v1100
      %1178 = vst.msk [vmem:[#allocation2 + $0xf4] sm:$0xf] %vm1157, %v1102
      %1179 = vst.msk [vmem:[#allocation2 + $0x100] sm:$0xf] %vm1157, %v1104
      %1180 = vst.msk [vmem:[#allocation2 + $0x10c] sm:$0xf] %vm1157, %v1106
      %1181 = vst.msk [vmem:[#allocation2 + $0x118] sm:$0xf] %vm1157, %v1108
      %1182 = vst.msk [vmem:[#allocation2 + $0x124] sm:$0xf] %vm1157, %v1110
      %1183 = vst.msk [vmem:[#allocation2 + $0x130] sm:$0xf] %vm1157, %v1112
      %1184 = vst.msk [vmem:[#allocation2 + $0x13c] sm:$0xf] %vm1157, %v1114
      %1185 = vst.msk [vmem:[#allocation2 + $0x148] sm:$0xf] %vm1157, %v1116
      %1186 = vst.msk [vmem:[#allocation2 + $0x154] sm:$0xf] %vm1157, %v1118
      %1187 = vst.msk [vmem:[#allocation2 + $0x160] sm:$0xf] %vm1157, %v1120
      %1188 = vst.msk [vmem:[#allocation2 + $0x16c] sm:$0xf] %vm1157, %v1122
      %1189 = vst.msk [vmem:[#allocation2 + $0x178] sm:$0xf] %vm1157, %v1124
      %s1190 = scalar_lea.vmem %s273, 40
      %v1191 = vld [vmem:[%s1190] sm:$0xf]
      %v1192 = vld [vmem:[%s1190 + $0x4] sm:$0xf]
      %v1193 = vld [vmem:[%s1190 + $0x8] sm:$0xf]
      %v1194 = vld [vmem:[%s1190 + $0xc] sm:$0xf]
      %v1195 = vld [vmem:[%s1190 + $0x10] sm:$0xf]
      %v1196 = vld [vmem:[%s1190 + $0x14] sm:$0xf]
      %v1197 = vld [vmem:[%s1190 + $0x18] sm:$0xf]
      %v1198 = vld [vmem:[%s1190 + $0x1c] sm:$0xf]
      %v1199 = vld [vmem:[%s1190 + $0x20] sm:$0xf]
      %v1200 = vld [vmem:[%s1190 + $0x24] sm:$0xf]
      %v1201 = vld [vmem:[%s1190 + $0x28] sm:$0xf]
      %v1202 = vld [vmem:[%s1190 + $0x2c] sm:$0xf]
      %v1203 = vld [vmem:[%s1190 + $0x30] sm:$0xf]
      %v1204 = vld [vmem:[%s1190 + $0x34] sm:$0xf]
      %v1205 = vld [vmem:[%s1190 + $0x38] sm:$0xf]
      %v1206 = vld [vmem:[%s1190 + $0x3c] sm:$0xf]
      %v1207 = vld [vmem:[%s1190 + $0x40] sm:$0xf]
      %v1208 = vld [vmem:[%s1190 + $0x44] sm:$0xf]
      %v1209 = vld [vmem:[%s1190 + $0x48] sm:$0xf]
      %v1210 = vld [vmem:[%s1190 + $0x4c] sm:$0xf]
      %v1211 = vld [vmem:[%s1190 + $0x50] sm:$0xf]
      %v1212 = vld [vmem:[%s1190 + $0x54] sm:$0xf]
      %v1213 = vld [vmem:[%s1190 + $0x58] sm:$0xf]
      %v1214 = vld [vmem:[%s1190 + $0x5c] sm:$0xf]
      %v1215 = vld [vmem:[%s1190 + $0x60] sm:$0xf]
      %v1216 = vld [vmem:[%s1190 + $0x64] sm:$0xf]
      %v1217 = vld [vmem:[%s1190 + $0x68] sm:$0xf]
      %v1218 = vld [vmem:[%s1190 + $0x6c] sm:$0xf]
      %v1219 = vld [vmem:[%s1190 + $0x70] sm:$0xf]
      %v1220 = vld [vmem:[%s1190 + $0x74] sm:$0xf]
      %v1221 = vld [vmem:[%s1190 + $0x78] sm:$0xf]
      %v1222 = vld [vmem:[%s1190 + $0x7c] sm:$0xf]
      %1255 = vrot.lane.b32.xlu0 %v1191, 52
      %v1256 = vpop.permute.xlu0 %1255
      %1257 = vrot.lane.b32.xlu0 %v1192, 52
      %v1258 = vpop.permute.xlu0 %1257
      %1259 = vrot.lane.b32.xlu0 %v1193, 52
      %v1260 = vpop.permute.xlu0 %1259
      %1261 = vrot.lane.b32.xlu0 %v1194, 52
      %v1262 = vpop.permute.xlu0 %1261
      %1263 = vrot.lane.b32.xlu0 %v1195, 52
      %v1264 = vpop.permute.xlu0 %1263
      %1265 = vrot.lane.b32.xlu0 %v1196, 52
      %v1266 = vpop.permute.xlu0 %1265
      %1267 = vrot.lane.b32.xlu0 %v1197, 52
      %v1268 = vpop.permute.xlu0 %1267
      %1269 = vrot.lane.b32.xlu0 %v1198, 52
      %v1270 = vpop.permute.xlu0 %1269
      %1271 = vrot.lane.b32.xlu0 %v1199, 52
      %v1272 = vpop.permute.xlu0 %1271
      %1273 = vrot.lane.b32.xlu0 %v1200, 52
      %v1274 = vpop.permute.xlu0 %1273
      %1275 = vrot.lane.b32.xlu0 %v1201, 52
      %v1276 = vpop.permute.xlu0 %1275
      %1277 = vrot.lane.b32.xlu0 %v1202, 52
      %v1278 = vpop.permute.xlu0 %1277
      %1279 = vrot.lane.b32.xlu0 %v1203, 52
      %v1280 = vpop.permute.xlu0 %1279
      %1281 = vrot.lane.b32.xlu0 %v1204, 52
      %v1282 = vpop.permute.xlu0 %1281
      %1283 = vrot.lane.b32.xlu0 %v1205, 52
      %v1284 = vpop.permute.xlu0 %1283
      %1285 = vrot.lane.b32.xlu0 %v1206, 52
      %v1286 = vpop.permute.xlu0 %1285
      %1287 = vrot.lane.b32.xlu0 %v1207, 52
      %v1288 = vpop.permute.xlu0 %1287
      %1289 = vrot.lane.b32.xlu0 %v1208, 52
      %v1290 = vpop.permute.xlu0 %1289
      %1291 = vrot.lane.b32.xlu0 %v1209, 52
      %v1292 = vpop.permute.xlu0 %1291
      %1293 = vrot.lane.b32.xlu0 %v1210, 52
      %v1294 = vpop.permute.xlu0 %1293
      %1295 = vrot.lane.b32.xlu0 %v1211, 52
      %v1296 = vpop.permute.xlu0 %1295
      %1297 = vrot.lane.b32.xlu0 %v1212, 52
      %v1298 = vpop.permute.xlu0 %1297
      %1299 = vrot.lane.b32.xlu0 %v1213, 52
      %v1300 = vpop.permute.xlu0 %1299
      %1301 = vrot.lane.b32.xlu0 %v1214, 52
      %v1302 = vpop.permute.xlu0 %1301
      %1303 = vrot.lane.b32.xlu0 %v1215, 52
      %v1304 = vpop.permute.xlu0 %1303
      %1305 = vrot.lane.b32.xlu0 %v1216, 52
      %v1306 = vpop.permute.xlu0 %1305
      %1307 = vrot.lane.b32.xlu0 %v1217, 52
      %v1308 = vpop.permute.xlu0 %1307
      %1309 = vrot.lane.b32.xlu0 %v1218, 52
      %v1310 = vpop.permute.xlu0 %1309
      %1311 = vrot.lane.b32.xlu0 %v1219, 52
      %v1312 = vpop.permute.xlu0 %1311
      %1313 = vrot.lane.b32.xlu0 %v1220, 52
      %v1314 = vpop.permute.xlu0 %1313
      %1315 = vrot.lane.b32.xlu0 %v1221, 52
      %v1316 = vpop.permute.xlu0 %1315
      %1317 = vrot.lane.b32.xlu0 %v1222, 52
      %v1318 = vpop.permute.xlu0 %1317
      %vm1351 = vcmask 716192
      %1352 = vst.msk [vmem:[#allocation2 + $0x4] sm:$0xf] %vm1351, %v1256
      %1353 = vst.msk [vmem:[#allocation2 + $0x10] sm:$0xf] %vm1351, %v1258
      %1354 = vst.msk [vmem:[#allocation2 + $0x1c] sm:$0xf] %vm1351, %v1260
      %1355 = vst.msk [vmem:[#allocation2 + $0x28] sm:$0xf] %vm1351, %v1262
      %1356 = vst.msk [vmem:[#allocation2 + $0x34] sm:$0xf] %vm1351, %v1264
      %1357 = vst.msk [vmem:[#allocation2 + $0x40] sm:$0xf] %vm1351, %v1266
      %1358 = vst.msk [vmem:[#allocation2 + $0x4c] sm:$0xf] %vm1351, %v1268
      %1359 = vst.msk [vmem:[#allocation2 + $0x58] sm:$0xf] %vm1351, %v1270
      %1360 = vst.msk [vmem:[#allocation2 + $0x64] sm:$0xf] %vm1351, %v1272
      %1361 = vst.msk [vmem:[#allocation2 + $0x70] sm:$0xf] %vm1351, %v1274
      %1362 = vst.msk [vmem:[#allocation2 + $0x7c] sm:$0xf] %vm1351, %v1276
      %1363 = vst.msk [vmem:[#allocation2 + $0x88] sm:$0xf] %vm1351, %v1278
      %1364 = vst.msk [vmem:[#allocation2 + $0x94] sm:$0xf] %vm1351, %v1280
      %1365 = vst.msk [vmem:[#allocation2 + $0xa0] sm:$0xf] %vm1351, %v1282
      %1366 = vst.msk [vmem:[#allocation2 + $0xac] sm:$0xf] %vm1351, %v1284
      %1367 = vst.msk [vmem:[#allocation2 + $0xb8] sm:$0xf] %vm1351, %v1286
      %1368 = vst.msk [vmem:[#allocation2 + $0xc4] sm:$0xf] %vm1351, %v1288
      %1369 = vst.msk [vmem:[#allocation2 + $0xd0] sm:$0xf] %vm1351, %v1290
      %1370 = vst.msk [vmem:[#allocation2 + $0xdc] sm:$0xf] %vm1351, %v1292
      %1371 = vst.msk [vmem:[#allocation2 + $0xe8] sm:$0xf] %vm1351, %v1294
      %1372 = vst.msk [vmem:[#allocation2 + $0xf4] sm:$0xf] %vm1351, %v1296
      %1373 = vst.msk [vmem:[#allocation2 + $0x100] sm:$0xf] %vm1351, %v1298
      %1374 = vst.msk [vmem:[#allocation2 + $0x10c] sm:$0xf] %vm1351, %v1300
      %1375 = vst.msk [vmem:[#allocation2 + $0x118] sm:$0xf] %vm1351, %v1302
      %1376 = vst.msk [vmem:[#allocation2 + $0x124] sm:$0xf] %vm1351, %v1304
      %1377 = vst.msk [vmem:[#allocation2 + $0x130] sm:$0xf] %vm1351, %v1306
      %1378 = vst.msk [vmem:[#allocation2 + $0x13c] sm:$0xf] %vm1351, %v1308
      %1379 = vst.msk [vmem:[#allocation2 + $0x148] sm:$0xf] %vm1351, %v1310
      %1380 = vst.msk [vmem:[#allocation2 + $0x154] sm:$0xf] %vm1351, %v1312
      %1381 = vst.msk [vmem:[#allocation2 + $0x160] sm:$0xf] %vm1351, %v1314
      %1382 = vst.msk [vmem:[#allocation2 + $0x16c] sm:$0xf] %vm1351, %v1316
      %1383 = vst.msk [vmem:[#allocation2 + $0x178] sm:$0xf] %vm1351, %v1318
      %s1384 = scalar_lea.vmem %s273, 48
      %v1385 = vld [vmem:[%s1384] sm:$0xf]
      %v1386 = vld [vmem:[%s1384 + $0x4] sm:$0xf]
      %v1387 = vld [vmem:[%s1384 + $0x8] sm:$0xf]
      %v1388 = vld [vmem:[%s1384 + $0xc] sm:$0xf]
      %v1389 = vld [vmem:[%s1384 + $0x10] sm:$0xf]
      %v1390 = vld [vmem:[%s1384 + $0x14] sm:$0xf]
      %v1391 = vld [vmem:[%s1384 + $0x18] sm:$0xf]
      %v1392 = vld [vmem:[%s1384 + $0x1c] sm:$0xf]
      %v1393 = vld [vmem:[%s1384 + $0x20] sm:$0xf]
      %v1394 = vld [vmem:[%s1384 + $0x24] sm:$0xf]
      %v1395 = vld [vmem:[%s1384 + $0x28] sm:$0xf]
      %v1396 = vld [vmem:[%s1384 + $0x2c] sm:$0xf]
      %v1397 = vld [vmem:[%s1384 + $0x30] sm:$0xf]
      %v1398 = vld [vmem:[%s1384 + $0x34] sm:$0xf]
      %v1399 = vld [vmem:[%s1384 + $0x38] sm:$0xf]
      %v1400 = vld [vmem:[%s1384 + $0x3c] sm:$0xf]
      %v1401 = vld [vmem:[%s1384 + $0x40] sm:$0xf]
      %v1402 = vld [vmem:[%s1384 + $0x44] sm:$0xf]
      %v1403 = vld [vmem:[%s1384 + $0x48] sm:$0xf]
      %v1404 = vld [vmem:[%s1384 + $0x4c] sm:$0xf]
      %v1405 = vld [vmem:[%s1384 + $0x50] sm:$0xf]
      %v1406 = vld [vmem:[%s1384 + $0x54] sm:$0xf]
      %v1407 = vld [vmem:[%s1384 + $0x58] sm:$0xf]
      %v1408 = vld [vmem:[%s1384 + $0x5c] sm:$0xf]
      %v1409 = vld [vmem:[%s1384 + $0x60] sm:$0xf]
      %v1410 = vld [vmem:[%s1384 + $0x64] sm:$0xf]
      %v1411 = vld [vmem:[%s1384 + $0x68] sm:$0xf]
      %v1412 = vld [vmem:[%s1384 + $0x6c] sm:$0xf]
      %v1413 = vld [vmem:[%s1384 + $0x70] sm:$0xf]
      %v1414 = vld [vmem:[%s1384 + $0x74] sm:$0xf]
      %v1415 = vld [vmem:[%s1384 + $0x78] sm:$0xf]
      %v1416 = vld [vmem:[%s1384 + $0x7c] sm:$0xf]
      %1449 = vrot.lane.b32.xlu0 %v1385, 88
      %v1450 = vpop.permute.xlu0 %1449
      %1451 = vrot.lane.b32.xlu0 %v1386, 88
      %v1452 = vpop.permute.xlu0 %1451
      %1453 = vrot.lane.b32.xlu0 %v1387, 88
      %v1454 = vpop.permute.xlu0 %1453
      %1455 = vrot.lane.b32.xlu0 %v1388, 88
      %v1456 = vpop.permute.xlu0 %1455
      %1457 = vrot.lane.b32.xlu0 %v1389, 88
      %v1458 = vpop.permute.xlu0 %1457
      %1459 = vrot.lane.b32.xlu0 %v1390, 88
      %v1460 = vpop.permute.xlu0 %1459
      %1461 = vrot.lane.b32.xlu0 %v1391, 88
      %v1462 = vpop.permute.xlu0 %1461
      %1463 = vrot.lane.b32.xlu0 %v1392, 88
      %v1464 = vpop.permute.xlu0 %1463
      %1465 = vrot.lane.b32.xlu0 %v1393, 88
      %v1466 = vpop.permute.xlu0 %1465
      %1467 = vrot.lane.b32.xlu0 %v1394, 88
      %v1468 = vpop.permute.xlu0 %1467
      %1469 = vrot.lane.b32.xlu0 %v1395, 88
      %v1470 = vpop.permute.xlu0 %1469
      %1471 = vrot.lane.b32.xlu0 %v1396, 88
      %v1472 = vpop.permute.xlu0 %1471
      %1473 = vrot.lane.b32.xlu0 %v1397, 88
      %v1474 = vpop.permute.xlu0 %1473
      %1475 = vrot.lane.b32.xlu0 %v1398, 88
      %v1476 = vpop.permute.xlu0 %1475
      %1477 = vrot.lane.b32.xlu0 %v1399, 88
      %v1478 = vpop.permute.xlu0 %1477
      %1479 = vrot.lane.b32.xlu0 %v1400, 88
      %v1480 = vpop.permute.xlu0 %1479
      %1481 = vrot.lane.b32.xlu0 %v1401, 88
      %v1482 = vpop.permute.xlu0 %1481
      %1483 = vrot.lane.b32.xlu0 %v1402, 88
      %v1484 = vpop.permute.xlu0 %1483
      %1485 = vrot.lane.b32.xlu0 %v1403, 88
      %v1486 = vpop.permute.xlu0 %1485
      %1487 = vrot.lane.b32.xlu0 %v1404, 88
      %v1488 = vpop.permute.xlu0 %1487
      %1489 = vrot.lane.b32.xlu0 %v1405, 88
      %v1490 = vpop.permute.xlu0 %1489
      %1491 = vrot.lane.b32.xlu0 %v1406, 88
      %v1492 = vpop.permute.xlu0 %1491
      %1493 = vrot.lane.b32.xlu0 %v1407, 88
      %v1494 = vpop.permute.xlu0 %1493
      %1495 = vrot.lane.b32.xlu0 %v1408, 88
      %v1496 = vpop.permute.xlu0 %1495
      %1497 = vrot.lane.b32.xlu0 %v1409, 88
      %v1498 = vpop.permute.xlu0 %1497
      %1499 = vrot.lane.b32.xlu0 %v1410, 88
      %v1500 = vpop.permute.xlu0 %1499
      %1501 = vrot.lane.b32.xlu0 %v1411, 88
      %v1502 = vpop.permute.xlu0 %1501
      %1503 = vrot.lane.b32.xlu0 %v1412, 88
      %v1504 = vpop.permute.xlu0 %1503
      %1505 = vrot.lane.b32.xlu0 %v1413, 88
      %v1506 = vpop.permute.xlu0 %1505
      %1507 = vrot.lane.b32.xlu0 %v1414, 88
      %v1508 = vpop.permute.xlu0 %1507
      %1509 = vrot.lane.b32.xlu0 %v1415, 88
      %v1510 = vpop.permute.xlu0 %1509
      %1511 = vrot.lane.b32.xlu0 %v1416, 88
      %v1512 = vpop.permute.xlu0 %1511
      %vm1545 = vcmask 1011392
      %1546 = vst.msk [vmem:[#allocation2 + $0x4] sm:$0xf] %vm1545, %v1450
      %1547 = vst.msk [vmem:[#allocation2 + $0x10] sm:$0xf] %vm1545, %v1452
      %1548 = vst.msk [vmem:[#allocation2 + $0x1c] sm:$0xf] %vm1545, %v1454
      %1549 = vst.msk [vmem:[#allocation2 + $0x28] sm:$0xf] %vm1545, %v1456
      %1550 = vst.msk [vmem:[#allocation2 + $0x34] sm:$0xf] %vm1545, %v1458
      %1551 = vst.msk [vmem:[#allocation2 + $0x40] sm:$0xf] %vm1545, %v1460
      %1552 = vst.msk [vmem:[#allocation2 + $0x4c] sm:$0xf] %vm1545, %v1462
      %1553 = vst.msk [vmem:[#allocation2 + $0x58] sm:$0xf] %vm1545, %v1464
      %1554 = vst.msk [vmem:[#allocation2 + $0x64] sm:$0xf] %vm1545, %v1466
      %1555 = vst.msk [vmem:[#allocation2 + $0x70] sm:$0xf] %vm1545, %v1468
      %1556 = vst.msk [vmem:[#allocation2 + $0x7c] sm:$0xf] %vm1545, %v1470
      %1557 = vst.msk [vmem:[#allocation2 + $0x88] sm:$0xf] %vm1545, %v1472
      %1558 = vst.msk [vmem:[#allocation2 + $0x94] sm:$0xf] %vm1545, %v1474
      %1559 = vst.msk [vmem:[#allocation2 + $0xa0] sm:$0xf] %vm1545, %v1476
      %1560 = vst.msk [vmem:[#allocation2 + $0xac] sm:$0xf] %vm1545, %v1478
      %1561 = vst.msk [vmem:[#allocation2 + $0xb8] sm:$0xf] %vm1545, %v1480
      %1562 = vst.msk [vmem:[#allocation2 + $0xc4] sm:$0xf] %vm1545, %v1482
      %1563 = vst.msk [vmem:[#allocation2 + $0xd0] sm:$0xf] %vm1545, %v1484
      %1564 = vst.msk [vmem:[#allocation2 + $0xdc] sm:$0xf] %vm1545, %v1486
      %1565 = vst.msk [vmem:[#allocation2 + $0xe8] sm:$0xf] %vm1545, %v1488
      %1566 = vst.msk [vmem:[#allocation2 + $0xf4] sm:$0xf] %vm1545, %v1490
      %1567 = vst.msk [vmem:[#allocation2 + $0x100] sm:$0xf] %vm1545, %v1492
      %1568 = vst.msk [vmem:[#allocation2 + $0x10c] sm:$0xf] %vm1545, %v1494
      %1569 = vst.msk [vmem:[#allocation2 + $0x118] sm:$0xf] %vm1545, %v1496
      %1570 = vst.msk [vmem:[#allocation2 + $0x124] sm:$0xf] %vm1545, %v1498
      %1571 = vst.msk [vmem:[#allocation2 + $0x130] sm:$0xf] %vm1545, %v1500
      %1572 = vst.msk [vmem:[#allocation2 + $0x13c] sm:$0xf] %vm1545, %v1502
      %1573 = vst.msk [vmem:[#allocation2 + $0x148] sm:$0xf] %vm1545, %v1504
      %1574 = vst.msk [vmem:[#allocation2 + $0x154] sm:$0xf] %vm1545, %v1506
      %1575 = vst.msk [vmem:[#allocation2 + $0x160] sm:$0xf] %vm1545, %v1508
      %1576 = vst.msk [vmem:[#allocation2 + $0x16c] sm:$0xf] %vm1545, %v1510
      %1577 = vst.msk [vmem:[#allocation2 + $0x178] sm:$0xf] %vm1545, %v1512
      %s1578 = scalar_lea.vmem %s273, 56
      %v1579 = vld [vmem:[%s1578] sm:$0xf]
      %v1580 = vld [vmem:[%s1578 + $0x4] sm:$0xf]
      %v1581 = vld [vmem:[%s1578 + $0x8] sm:$0xf]
      %v1582 = vld [vmem:[%s1578 + $0xc] sm:$0xf]
      %v1583 = vld [vmem:[%s1578 + $0x10] sm:$0xf]
      %v1584 = vld [vmem:[%s1578 + $0x14] sm:$0xf]
      %v1585 = vld [vmem:[%s1578 + $0x18] sm:$0xf]
      %v1586 = vld [vmem:[%s1578 + $0x1c] sm:$0xf]
      %v1587 = vld [vmem:[%s1578 + $0x20] sm:$0xf]
      %v1588 = vld [vmem:[%s1578 + $0x24] sm:$0xf]
      %v1589 = vld [vmem:[%s1578 + $0x28] sm:$0xf]
      %v1590 = vld [vmem:[%s1578 + $0x2c] sm:$0xf]
      %v1591 = vld [vmem:[%s1578 + $0x30] sm:$0xf]
      %v1592 = vld [vmem:[%s1578 + $0x34] sm:$0xf]
      %v1593 = vld [vmem:[%s1578 + $0x38] sm:$0xf]
      %v1594 = vld [vmem:[%s1578 + $0x3c] sm:$0xf]
      %v1595 = vld [vmem:[%s1578 + $0x40] sm:$0xf]
      %v1596 = vld [vmem:[%s1578 + $0x44] sm:$0xf]
      %v1597 = vld [vmem:[%s1578 + $0x48] sm:$0xf]
      %v1598 = vld [vmem:[%s1578 + $0x4c] sm:$0xf]
      %v1599 = vld [vmem:[%s1578 + $0x50] sm:$0xf]
      %v1600 = vld [vmem:[%s1578 + $0x54] sm:$0xf]
      %v1601 = vld [vmem:[%s1578 + $0x58] sm:$0xf]
      %v1602 = vld [vmem:[%s1578 + $0x5c] sm:$0xf]
      %v1603 = vld [vmem:[%s1578 + $0x60] sm:$0xf]
      %v1604 = vld [vmem:[%s1578 + $0x64] sm:$0xf]
      %v1605 = vld [vmem:[%s1578 + $0x68] sm:$0xf]
      %v1606 = vld [vmem:[%s1578 + $0x6c] sm:$0xf]
      %v1607 = vld [vmem:[%s1578 + $0x70] sm:$0xf]
      %v1608 = vld [vmem:[%s1578 + $0x74] sm:$0xf]
      %v1609 = vld [vmem:[%s1578 + $0x78] sm:$0xf]
      %v1610 = vld [vmem:[%s1578 + $0x7c] sm:$0xf]
      %1643 = vrot.lane.b32.xlu0 %v1579, 124
      %v1644 = vpop.permute.xlu0 %1643
      %1645 = vrot.lane.b32.xlu0 %v1580, 124
      %v1646 = vpop.permute.xlu0 %1645
      %1647 = vrot.lane.b32.xlu0 %v1581, 124
      %v1648 = vpop.permute.xlu0 %1647
      %1649 = vrot.lane.b32.xlu0 %v1582, 124
      %v1650 = vpop.permute.xlu0 %1649
      %1651 = vrot.lane.b32.xlu0 %v1583, 124
      %v1652 = vpop.permute.xlu0 %1651
      %1653 = vrot.lane.b32.xlu0 %v1584, 124
      %v1654 = vpop.permute.xlu0 %1653
      %1655 = vrot.lane.b32.xlu0 %v1585, 124
      %v1656 = vpop.permute.xlu0 %1655
      %1657 = vrot.lane.b32.xlu0 %v1586, 124
      %v1658 = vpop.permute.xlu0 %1657
      %1659 = vrot.lane.b32.xlu0 %v1587, 124
      %v1660 = vpop.permute.xlu0 %1659
      %1661 = vrot.lane.b32.xlu0 %v1588, 124
      %v1662 = vpop.permute.xlu0 %1661
      %1663 = vrot.lane.b32.xlu0 %v1589, 124
      %v1664 = vpop.permute.xlu0 %1663
      %1665 = vrot.lane.b32.xlu0 %v1590, 124
      %v1666 = vpop.permute.xlu0 %1665
      %1667 = vrot.lane.b32.xlu0 %v1591, 124
      %v1668 = vpop.permute.xlu0 %1667
      %1669 = vrot.lane.b32.xlu0 %v1592, 124
      %v1670 = vpop.permute.xlu0 %1669
      %1671 = vrot.lane.b32.xlu0 %v1593, 124
      %v1672 = vpop.permute.xlu0 %1671
      %1673 = vrot.lane.b32.xlu0 %v1594, 124
      %v1674 = vpop.permute.xlu0 %1673
      %1675 = vrot.lane.b32.xlu0 %v1595, 124
      %v1676 = vpop.permute.xlu0 %1675
      %1677 = vrot.lane.b32.xlu0 %v1596, 124
      %v1678 = vpop.permute.xlu0 %1677
      %1679 = vrot.lane.b32.xlu0 %v1597, 124
      %v1680 = vpop.permute.xlu0 %1679
      %1681 = vrot.lane.b32.xlu0 %v1598, 124
      %v1682 = vpop.permute.xlu0 %1681
      %1683 = vrot.lane.b32.xlu0 %v1599, 124
      %v1684 = vpop.permute.xlu0 %1683
      %1685 = vrot.lane.b32.xlu0 %v1600, 124
      %v1686 = vpop.permute.xlu0 %1685
      %1687 = vrot.lane.b32.xlu0 %v1601, 124
      %v1688 = vpop.permute.xlu0 %1687
      %1689 = vrot.lane.b32.xlu0 %v1602, 124
      %v1690 = vpop.permute.xlu0 %1689
      %1691 = vrot.lane.b32.xlu0 %v1603, 124
      %v1692 = vpop.permute.xlu0 %1691
      %1693 = vrot.lane.b32.xlu0 %v1604, 124
      %v1694 = vpop.permute.xlu0 %1693
      %1695 = vrot.lane.b32.xlu0 %v1605, 124
      %v1696 = vpop.permute.xlu0 %1695
      %1697 = vrot.lane.b32.xlu0 %v1606, 124
      %v1698 = vpop.permute.xlu0 %1697
      %1699 = vrot.lane.b32.xlu0 %v1607, 124
      %v1700 = vpop.permute.xlu0 %1699
      %1701 = vrot.lane.b32.xlu0 %v1608, 124
      %v1702 = vpop.permute.xlu0 %1701
      %1703 = vrot.lane.b32.xlu0 %v1609, 124
      %v1704 = vpop.permute.xlu0 %1703
      %1705 = vrot.lane.b32.xlu0 %v1610, 124
      %v1706 = vpop.permute.xlu0 %1705
      %v1707 = vrot.slane %v1644, 4
      %v1708 = vrot.slane %v1646, 4
      %v1709 = vrot.slane %v1648, 4
      %v1710 = vrot.slane %v1650, 4
      %v1711 = vrot.slane %v1652, 4
      %v1712 = vrot.slane %v1654, 4
      %v1713 = vrot.slane %v1656, 4
      %v1714 = vrot.slane %v1658, 4
      %v1715 = vrot.slane %v1660, 4
      %v1716 = vrot.slane %v1662, 4
      %v1717 = vrot.slane %v1664, 4
      %v1718 = vrot.slane %v1666, 4
      %v1719 = vrot.slane %v1668, 4
      %v1720 = vrot.slane %v1670, 4
      %v1721 = vrot.slane %v1672, 4
      %v1722 = vrot.slane %v1674, 4
      %v1723 = vrot.slane %v1676, 4
      %v1724 = vrot.slane %v1678, 4
      %v1725 = vrot.slane %v1680, 4
      %v1726 = vrot.slane %v1682, 4
      %v1727 = vrot.slane %v1684, 4
      %v1728 = vrot.slane %v1686, 4
      %v1729 = vrot.slane %v1688, 4
      %v1730 = vrot.slane %v1690, 4
      %v1731 = vrot.slane %v1692, 4
      %v1732 = vrot.slane %v1694, 4
      %v1733 = vrot.slane %v1696, 4
      %v1734 = vrot.slane %v1698, 4
      %v1735 = vrot.slane %v1700, 4
      %v1736 = vrot.slane %v1702, 4
      %v1737 = vrot.slane %v1704, 4
      %v1738 = vrot.slane %v1706, 4
      %vm1739 = vcmask 1014784
      %v1740 = vsel %vm1739, %v1707, %v1644
      %v1741 = vsel %vm1739, %v1708, %v1646
      %v1742 = vsel %vm1739, %v1709, %v1648
      %v1743 = vsel %vm1739, %v1710, %v1650
      %v1744 = vsel %vm1739, %v1711, %v1652
      %v1745 = vsel %vm1739, %v1712, %v1654
      %v1746 = vsel %vm1739, %v1713, %v1656
      %v1747 = vsel %vm1739, %v1714, %v1658
      %v1748 = vsel %vm1739, %v1715, %v1660
      %v1749 = vsel %vm1739, %v1716, %v1662
      %v1750 = vsel %vm1739, %v1717, %v1664
      %v1751 = vsel %vm1739, %v1718, %v1666
      %v1752 = vsel %vm1739, %v1719, %v1668
      %v1753 = vsel %vm1739, %v1720, %v1670
      %v1754 = vsel %vm1739, %v1721, %v1672
      %v1755 = vsel %vm1739, %v1722, %v1674
      %v1756 = vsel %vm1739, %v1723, %v1676
      %v1757 = vsel %vm1739, %v1724, %v1678
      %v1758 = vsel %vm1739, %v1725, %v1680
      %v1759 = vsel %vm1739, %v1726, %v1682
      %v1760 = vsel %vm1739, %v1727, %v1684
      %v1761 = vsel %vm1739, %v1728, %v1686
      %v1762 = vsel %vm1739, %v1729, %v1688
      %v1763 = vsel %vm1739, %v1730, %v1690
      %v1764 = vsel %vm1739, %v1731, %v1692
      %v1765 = vsel %vm1739, %v1732, %v1694
      %v1766 = vsel %vm1739, %v1733, %v1696
      %v1767 = vsel %vm1739, %v1734, %v1698
      %v1768 = vsel %vm1739, %v1735, %v1700
      %v1769 = vsel %vm1739, %v1736, %v1702
      %v1770 = vsel %vm1739, %v1737, %v1704
      %v1771 = vsel %vm1739, %v1738, %v1706
      %vm1804 = vcmask 1044448
      %vm1805 = vcmask 261124
      %vm1806 = vmor %vm1805, %vm1804
      %1807 = vst.msk [vmem:[#allocation2 + $0x4] sm:$0xff] %vm1806, %v1740
      %1808 = vst.msk [vmem:[#allocation2 + $0x10] sm:$0xff] %vm1806, %v1741
      %1809 = vst.msk [vmem:[#allocation2 + $0x1c] sm:$0xff] %vm1806, %v1742
      %1810 = vst.msk [vmem:[#allocation2 + $0x28] sm:$0xff] %vm1806, %v1743
      %1811 = vst.msk [vmem:[#allocation2 + $0x34] sm:$0xff] %vm1806, %v1744
      %1812 = vst.msk [vmem:[#allocation2 + $0x40] sm:$0xff] %vm1806, %v1745
      %1813 = vst.msk [vmem:[#allocation2 + $0x4c] sm:$0xff] %vm1806, %v1746
      %1814 = vst.msk [vmem:[#allocation2 + $0x58] sm:$0xff] %vm1806, %v1747
      %1815 = vst.msk [vmem:[#allocation2 + $0x64] sm:$0xff] %vm1806, %v1748
      %1816 = vst.msk [vmem:[#allocation2 + $0x70] sm:$0xff] %vm1806, %v1749
      %1817 = vst.msk [vmem:[#allocation2 + $0x7c] sm:$0xff] %vm1806, %v1750
      %1818 = vst.msk [vmem:[#allocation2 + $0x88] sm:$0xff] %vm1806, %v1751
      %1819 = vst.msk [vmem:[#allocation2 + $0x94] sm:$0xff] %vm1806, %v1752
      %1820 = vst.msk [vmem:[#allocation2 + $0xa0] sm:$0xff] %vm1806, %v1753
      %1821 = vst.msk [vmem:[#allocation2 + $0xac] sm:$0xff] %vm1806, %v1754
      %1822 = vst.msk [vmem:[#allocation2 + $0xb8] sm:$0xff] %vm1806, %v1755
      %1823 = vst.msk [vmem:[#allocation2 + $0xc4] sm:$0xff] %vm1806, %v1756
      %1824 = vst.msk [vmem:[#allocation2 + $0xd0] sm:$0xff] %vm1806, %v1757
      %1825 = vst.msk [vmem:[#allocation2 + $0xdc] sm:$0xff] %vm1806, %v1758
      %1826 = vst.msk [vmem:[#allocation2 + $0xe8] sm:$0xff] %vm1806, %v1759
      %1827 = vst.msk [vmem:[#allocation2 + $0xf4] sm:$0xff] %vm1806, %v1760
      %1828 = vst.msk [vmem:[#allocation2 + $0x100] sm:$0xff] %vm1806, %v1761
      %1829 = vst.msk [vmem:[#allocation2 + $0x10c] sm:$0xff] %vm1806, %v1762
      %1830 = vst.msk [vmem:[#allocation2 + $0x118] sm:$0xff] %vm1806, %v1763
      %1831 = vst.msk [vmem:[#allocation2 + $0x124] sm:$0xff] %vm1806, %v1764
      %1832 = vst.msk [vmem:[#allocation2 + $0x130] sm:$0xff] %vm1806, %v1765
      %1833 = vst.msk [vmem:[#allocation2 + $0x13c] sm:$0xff] %vm1806, %v1766
      %1834 = vst.msk [vmem:[#allocation2 + $0x148] sm:$0xff] %vm1806, %v1767
      %1835 = vst.msk [vmem:[#allocation2 + $0x154] sm:$0xff] %vm1806, %v1768
      %1836 = vst.msk [vmem:[#allocation2 + $0x160] sm:$0xff] %vm1806, %v1769
      %1837 = vst.msk [vmem:[#allocation2 + $0x16c] sm:$0xff] %vm1806, %v1770
      %1838 = vst.msk [vmem:[#allocation2 + $0x178] sm:$0xff] %vm1806, %v1771
      %s1839 = scalar_lea.vmem %s273, 64
      %v1840 = vld [vmem:[%s1839] sm:$0xf]
      %v1841 = vld [vmem:[%s1839 + $0x4] sm:$0xf]
      %v1842 = vld [vmem:[%s1839 + $0x8] sm:$0xf]
      %v1843 = vld [vmem:[%s1839 + $0xc] sm:$0xf]
      %v1844 = vld [vmem:[%s1839 + $0x10] sm:$0xf]
      %v1845 = vld [vmem:[%s1839 + $0x14] sm:$0xf]
      %v1846 = vld [vmem:[%s1839 + $0x18] sm:$0xf]
      %v1847 = vld [vmem:[%s1839 + $0x1c] sm:$0xf]
      %v1848 = vld [vmem:[%s1839 + $0x20] sm:$0xf]
      %v1849 = vld [vmem:[%s1839 + $0x24] sm:$0xf]
      %v1850 = vld [vmem:[%s1839 + $0x28] sm:$0xf]
      %v1851 = vld [vmem:[%s1839 + $0x2c] sm:$0xf]
      %v1852 = vld [vmem:[%s1839 + $0x30] sm:$0xf]
      %v1853 = vld [vmem:[%s1839 + $0x34] sm:$0xf]
      %v1854 = vld [vmem:[%s1839 + $0x38] sm:$0xf]
      %v1855 = vld [vmem:[%s1839 + $0x3c] sm:$0xf]
      %v1856 = vld [vmem:[%s1839 + $0x40] sm:$0xf]
      %v1857 = vld [vmem:[%s1839 + $0x44] sm:$0xf]
      %v1858 = vld [vmem:[%s1839 + $0x48] sm:$0xf]
      %v1859 = vld [vmem:[%s1839 + $0x4c] sm:$0xf]
      %v1860 = vld [vmem:[%s1839 + $0x50] sm:$0xf]
      %v1861 = vld [vmem:[%s1839 + $0x54] sm:$0xf]
      %v1862 = vld [vmem:[%s1839 + $0x58] sm:$0xf]
      %v1863 = vld [vmem:[%s1839 + $0x5c] sm:$0xf]
      %v1864 = vld [vmem:[%s1839 + $0x60] sm:$0xf]
      %v1865 = vld [vmem:[%s1839 + $0x64] sm:$0xf]
      %v1866 = vld [vmem:[%s1839 + $0x68] sm:$0xf]
      %v1867 = vld [vmem:[%s1839 + $0x6c] sm:$0xf]
      %v1868 = vld [vmem:[%s1839 + $0x70] sm:$0xf]
      %v1869 = vld [vmem:[%s1839 + $0x74] sm:$0xf]
      %v1870 = vld [vmem:[%s1839 + $0x78] sm:$0xf]
      %v1871 = vld [vmem:[%s1839 + $0x7c] sm:$0xf]
      %1904 = vrot.lane.b32.xlu0 %v1840, 32
      %v1905 = vpop.permute.xlu0 %1904
      %1906 = vrot.lane.b32.xlu0 %v1841, 32
      %v1907 = vpop.permute.xlu0 %1906
      %1908 = vrot.lane.b32.xlu0 %v1842, 32
      %v1909 = vpop.permute.xlu0 %1908
      %1910 = vrot.lane.b32.xlu0 %v1843, 32
      %v1911 = vpop.permute.xlu0 %1910
      %1912 = vrot.lane.b32.xlu0 %v1844, 32
      %v1913 = vpop.permute.xlu0 %1912
      %1914 = vrot.lane.b32.xlu0 %v1845, 32
      %v1915 = vpop.permute.xlu0 %1914
      %1916 = vrot.lane.b32.xlu0 %v1846, 32
      %v1917 = vpop.permute.xlu0 %1916
      %1918 = vrot.lane.b32.xlu0 %v1847, 32
      %v1919 = vpop.permute.xlu0 %1918
      %1920 = vrot.lane.b32.xlu0 %v1848, 32
      %v1921 = vpop.permute.xlu0 %1920
      %1922 = vrot.lane.b32.xlu0 %v1849, 32
      %v1923 = vpop.permute.xlu0 %1922
      %1924 = vrot.lane.b32.xlu0 %v1850, 32
      %v1925 = vpop.permute.xlu0 %1924
      %1926 = vrot.lane.b32.xlu0 %v1851, 32
      %v1927 = vpop.permute.xlu0 %1926
      %1928 = vrot.lane.b32.xlu0 %v1852, 32
      %v1929 = vpop.permute.xlu0 %1928
      %1930 = vrot.lane.b32.xlu0 %v1853, 32
      %v1931 = vpop.permute.xlu0 %1930
      %1932 = vrot.lane.b32.xlu0 %v1854, 32
      %v1933 = vpop.permute.xlu0 %1932
      %1934 = vrot.lane.b32.xlu0 %v1855, 32
      %v1935 = vpop.permute.xlu0 %1934
      %1936 = vrot.lane.b32.xlu0 %v1856, 32
      %v1937 = vpop.permute.xlu0 %1936
      %1938 = vrot.lane.b32.xlu0 %v1857, 32
      %v1939 = vpop.permute.xlu0 %1938
      %1940 = vrot.lane.b32.xlu0 %v1858, 32
      %v1941 = vpop.permute.xlu0 %1940
      %1942 = vrot.lane.b32.xlu0 %v1859, 32
      %v1943 = vpop.permute.xlu0 %1942
      %1944 = vrot.lane.b32.xlu0 %v1860, 32
      %v1945 = vpop.permute.xlu0 %1944
      %1946 = vrot.lane.b32.xlu0 %v1861, 32
      %v1947 = vpop.permute.xlu0 %1946
      %1948 = vrot.lane.b32.xlu0 %v1862, 32
      %v1949 = vpop.permute.xlu0 %1948
      %1950 = vrot.lane.b32.xlu0 %v1863, 32
      %v1951 = vpop.permute.xlu0 %1950
      %1952 = vrot.lane.b32.xlu0 %v1864, 32
      %v1953 = vpop.permute.xlu0 %1952
      %1954 = vrot.lane.b32.xlu0 %v1865, 32
      %v1955 = vpop.permute.xlu0 %1954
      %1956 = vrot.lane.b32.xlu0 %v1866, 32
      %v1957 = vpop.permute.xlu0 %1956
      %1958 = vrot.lane.b32.xlu0 %v1867, 32
      %v1959 = vpop.permute.xlu0 %1958
      %1960 = vrot.lane.b32.xlu0 %v1868, 32
      %v1961 = vpop.permute.xlu0 %1960
      %1962 = vrot.lane.b32.xlu0 %v1869, 32
      %v1963 = vpop.permute.xlu0 %1962
      %1964 = vrot.lane.b32.xlu0 %v1870, 32
      %v1965 = vpop.permute.xlu0 %1964
      %1966 = vrot.lane.b32.xlu0 %v1871, 32
      %v1967 = vpop.permute.xlu0 %1966
      %vm2000 = vcmask 552192
      %2001 = vst.msk [vmem:[#allocation2 + $0x8] sm:$0xf] %vm2000, %v1905
      %2002 = vst.msk [vmem:[#allocation2 + $0x14] sm:$0xf] %vm2000, %v1907
      %2003 = vst.msk [vmem:[#allocation2 + $0x20] sm:$0xf] %vm2000, %v1909
      %2004 = vst.msk [vmem:[#allocation2 + $0x2c] sm:$0xf] %vm2000, %v1911
      %2005 = vst.msk [vmem:[#allocation2 + $0x38] sm:$0xf] %vm2000, %v1913
      %2006 = vst.msk [vmem:[#allocation2 + $0x44] sm:$0xf] %vm2000, %v1915
      %2007 = vst.msk [vmem:[#allocation2 + $0x50] sm:$0xf] %vm2000, %v1917
      %2008 = vst.msk [vmem:[#allocation2 + $0x5c] sm:$0xf] %vm2000, %v1919
      %2009 = vst.msk [vmem:[#allocation2 + $0x68] sm:$0xf] %vm2000, %v1921
      %2010 = vst.msk [vmem:[#allocation2 + $0x74] sm:$0xf] %vm2000, %v1923
      %2011 = vst.msk [vmem:[#allocation2 + $0x80] sm:$0xf] %vm2000, %v1925
      %2012 = vst.msk [vmem:[#allocation2 + $0x8c] sm:$0xf] %vm2000, %v1927
      %2013 = vst.msk [vmem:[#allocation2 + $0x98] sm:$0xf] %vm2000, %v1929
      %2014 = vst.msk [vmem:[#allocation2 + $0xa4] sm:$0xf] %vm2000, %v1931
      %2015 = vst.msk [vmem:[#allocation2 + $0xb0] sm:$0xf] %vm2000, %v1933
      %2016 = vst.msk [vmem:[#allocation2 + $0xbc] sm:$0xf] %vm2000, %v1935
      %2017 = vst.msk [vmem:[#allocation2 + $0xc8] sm:$0xf] %vm2000, %v1937
      %2018 = vst.msk [vmem:[#allocation2 + $0xd4] sm:$0xf] %vm2000, %v1939
      %2019 = vst.msk [vmem:[#allocation2 + $0xe0] sm:$0xf] %vm2000, %v1941
      %2020 = vst.msk [vmem:[#allocation2 + $0xec] sm:$0xf] %vm2000, %v1943
      %2021 = vst.msk [vmem:[#allocation2 + $0xf8] sm:$0xf] %vm2000, %v1945
      %2022 = vst.msk [vmem:[#allocation2 + $0x104] sm:$0xf] %vm2000, %v1947
      %2023 = vst.msk [vmem:[#allocation2 + $0x110] sm:$0xf] %vm2000, %v1949
      %2024 = vst.msk [vmem:[#allocation2 + $0x11c] sm:$0xf] %vm2000, %v1951
      %2025 = vst.msk [vmem:[#allocation2 + $0x128] sm:$0xf] %vm2000, %v1953
      %2026 = vst.msk [vmem:[#allocation2 + $0x134] sm:$0xf] %vm2000, %v1955
      %2027 = vst.msk [vmem:[#allocation2 + $0x140] sm:$0xf] %vm2000, %v1957
      %2028 = vst.msk [vmem:[#allocation2 + $0x14c] sm:$0xf] %vm2000, %v1959
      %2029 = vst.msk [vmem:[#allocation2 + $0x158] sm:$0xf] %vm2000, %v1961
      %2030 = vst.msk [vmem:[#allocation2 + $0x164] sm:$0xf] %vm2000, %v1963
      %2031 = vst.msk [vmem:[#allocation2 + $0x170] sm:$0xf] %vm2000, %v1965
      %2032 = vst.msk [vmem:[#allocation2 + $0x17c] sm:$0xf] %vm2000, %v1967
      %v2033 = vld [vmem:[#allocation2] sm:$0xff]
      %v2034 = vld [vmem:[#allocation2 + $0x8] sm:$0xf]
      %v2035 = vld [vmem:[#allocation2 + $0xc] sm:$0xff]
      %v2036 = vld [vmem:[#allocation2 + $0x14] sm:$0xf]
      %v2037 = vld [vmem:[#allocation2 + $0x18] sm:$0xff]
      %v2038 = vld [vmem:[#allocation2 + $0x20] sm:$0xf]
      %v2039 = vld [vmem:[#allocation2 + $0x24] sm:$0xff]
      %v2040 = vld [vmem:[#allocation2 + $0x2c] sm:$0xf]
      %v2041 = vld [vmem:[#allocation2 + $0x30] sm:$0xff]
      %v2042 = vld [vmem:[#allocation2 + $0x38] sm:$0xf]
      %v2043 = vld [vmem:[#allocation2 + $0x3c] sm:$0xff]
      %v2044 = vld [vmem:[#allocation2 + $0x44] sm:$0xf]
      %v2045 = vld [vmem:[#allocation2 + $0x48] sm:$0xff]
      %v2046 = vld [vmem:[#allocation2 + $0x50] sm:$0xf]
      %v2047 = vld [vmem:[#allocation2 + $0x54] sm:$0xff]
      %v2048 = vld [vmem:[#allocation2 + $0x5c] sm:$0xf]
      %v2049 = vld [vmem:[#allocation2 + $0x60] sm:$0xff]
      %v2050 = vld [vmem:[#allocation2 + $0x68] sm:$0xf]
      %v2051 = vld [vmem:[#allocation2 + $0x6c] sm:$0xff]
      %v2052 = vld [vmem:[#allocation2 + $0x74] sm:$0xf]
      %v2053 = vld [vmem:[#allocation2 + $0x78] sm:$0xff]
      %v2054 = vld [vmem:[#allocation2 + $0x80] sm:$0xf]
      %v2055 = vld [vmem:[#allocation2 + $0x84] sm:$0xff]
      %v2056 = vld [vmem:[#allocation2 + $0x8c] sm:$0xf]
      %v2057 = vld [vmem:[#allocation2 + $0x90] sm:$0xff]
      %v2058 = vld [vmem:[#allocation2 + $0x98] sm:$0xf]
      %v2059 = vld [vmem:[#allocation2 + $0x9c] sm:$0xff]
      %v2060 = vld [vmem:[#allocation2 + $0xa4] sm:$0xf]
      %v2061 = vld [vmem:[#allocation2 + $0xa8] sm:$0xff]
      %v2062 = vld [vmem:[#allocation2 + $0xb0] sm:$0xf]
      %v2063 = vld [vmem:[#allocation2 + $0xb4] sm:$0xff]
      %v2064 = vld [vmem:[#allocation2 + $0xbc] sm:$0xf]
      %v2065 = vld [vmem:[#allocation2 + $0xc0] sm:$0xff]
      %v2066 = vld [vmem:[#allocation2 + $0xc8] sm:$0xf]
      %v2067 = vld [vmem:[#allocation2 + $0xcc] sm:$0xff]
      %v2068 = vld [vmem:[#allocation2 + $0xd4] sm:$0xf]
      %v2069 = vld [vmem:[#allocation2 + $0xd8] sm:$0xff]
      %v2070 = vld [vmem:[#allocation2 + $0xe0] sm:$0xf]
      %v2071 = vld [vmem:[#allocation2 + $0xe4] sm:$0xff]
      %v2072 = vld [vmem:[#allocation2 + $0xec] sm:$0xf]
      %v2073 = vld [vmem:[#allocation2 + $0xf0] sm:$0xff]
      %v2074 = vld [vmem:[#allocation2 + $0xf8] sm:$0xf]
      %v2075 = vld [vmem:[#allocation2 + $0xfc] sm:$0xff]
      %v2076 = vld [vmem:[#allocation2 + $0x104] sm:$0xf]
      %v2077 = vld [vmem:[#allocation2 + $0x108] sm:$0xff]
      %v2078 = vld [vmem:[#allocation2 + $0x110] sm:$0xf]
      %v2079 = vld [vmem:[#allocation2 + $0x114] sm:$0xff]
      %v2080 = vld [vmem:[#allocation2 + $0x11c] sm:$0xf]
      %v2081 = vld [vmem:[#allocation2 + $0x120] sm:$0xff]
      %v2082 = vld [vmem:[#allocation2 + $0x128] sm:$0xf]
      %v2083 = vld [vmem:[#allocation2 + $0x12c] sm:$0xff]
      %v2084 = vld [vmem:[#allocation2 + $0x134] sm:$0xf]
      %v2085 = vld [vmem:[#allocation2 + $0x138] sm:$0xff]
      %v2086 = vld [vmem:[#allocation2 + $0x140] sm:$0xf]
      %v2087 = vld [vmem:[#allocation2 + $0x144] sm:$0xff]
      %v2088 = vld [vmem:[#allocation2 + $0x14c] sm:$0xf]
      %v2089 = vld [vmem:[#allocation2 + $0x150] sm:$0xff]
      %v2090 = vld [vmem:[#allocation2 + $0x158] sm:$0xf]
      %v2091 = vld [vmem:[#allocation2 + $0x15c] sm:$0xff]
      %v2092 = vld [vmem:[#allocation2 + $0x164] sm:$0xf]
      %v2093 = vld [vmem:[#allocation2 + $0x168] sm:$0xff]
      %v2094 = vld [vmem:[#allocation2 + $0x170] sm:$0xf]
      %v2095 = vld [vmem:[#allocation2 + $0x174] sm:$0xff]
      %v2096 = vld [vmem:[#allocation2 + $0x17c] sm:$0xf]
      %v2097 = vld [vmem:[%s1] sm:$0xf]
      %v2098 = vld [vmem:[%s1 + $0x4] sm:$0xf]
      %v2099 = vld [vmem:[%s1 + $0x8] sm:$0xf]
      %v2100 = vld [vmem:[%s1 + $0xc] sm:$0xf]
      %v2101 = vld [vmem:[%s1 + $0x10] sm:$0xf]
      %v2102 = vld [vmem:[%s1 + $0x14] sm:$0xf]
      %v2103 = vld [vmem:[%s1 + $0x18] sm:$0xf]
      %v2104 = vld [vmem:[%s1 + $0x1c] sm:$0xf]
      %v2105 = vld [vmem:[%s1 + $0x20] sm:$0xf]
      %v2106 = vld [vmem:[%s1 + $0x24] sm:$0xf]
      %v2107 = vld [vmem:[%s1 + $0x28] sm:$0xf]
      %v2108 = vld [vmem:[%s1 + $0x2c] sm:$0xf]
      %v2109 = vld [vmem:[%s1 + $0x30] sm:$0xf]
      %v2110 = vld [vmem:[%s1 + $0x34] sm:$0xf]
      %v2111 = vld [vmem:[%s1 + $0x38] sm:$0xf]
      %v2112 = vld [vmem:[%s1 + $0x3c] sm:$0xf]
      %v2113 = vld [vmem:[%s1 + $0x40] sm:$0xf]
      %v2114 = vld [vmem:[%s1 + $0x44] sm:$0xf]
      %v2115 = vld [vmem:[%s1 + $0x48] sm:$0xf]
      %v2116 = vld [vmem:[%s1 + $0x4c] sm:$0xf]
      %v2117 = vld [vmem:[%s1 + $0x50] sm:$0xf]
      %v2118 = vld [vmem:[%s1 + $0x54] sm:$0xf]
      %v2119 = vld [vmem:[%s1 + $0x58] sm:$0xf]
      %v2120 = vld [vmem:[%s1 + $0x5c] sm:$0xf]
      %v2121 = vld [vmem:[%s1 + $0x60] sm:$0xf]
      %v2122 = vld [vmem:[%s1 + $0x64] sm:$0xf]
      %v2123 = vld [vmem:[%s1 + $0x68] sm:$0xf]
      %v2124 = vld [vmem:[%s1 + $0x6c] sm:$0xf]
      %v2125 = vld [vmem:[%s1 + $0x70] sm:$0xf]
      %v2126 = vld [vmem:[%s1 + $0x74] sm:$0xf]
      %v2127 = vld [vmem:[%s1 + $0x78] sm:$0xf]
      %v2128 = vld [vmem:[%s1 + $0x7c] sm:$0xf]
      %v2129 = vld [vmem:[%s1 + $0x80] sm:$0xf]
      %v2130 = vld [vmem:[%s1 + $0x84] sm:$0xf]
      %v2131 = vld [vmem:[%s1 + $0x88] sm:$0xf]
      %v2132 = vld [vmem:[%s1 + $0x8c] sm:$0xf]
      %v2133 = vld [vmem:[%s1 + $0x90] sm:$0xf]
      %v2134 = vld [vmem:[%s1 + $0x94] sm:$0xf]
      %v2135 = vld [vmem:[%s1 + $0x98] sm:$0xf]
      %v2136 = vld [vmem:[%s1 + $0x9c] sm:$0xf]
      %v2137 = vld [vmem:[%s1 + $0xa0] sm:$0x3]
      %v2138 = vld [vmem:[%s2] sm:$0x1]
      %v2140 = vlaneseq
      %v2141 = vshrl.u32 %v2140, 7
      %v2142 = vsub.s32 0, %v2141
      %v2143 = vrot.slane %v2138, %v2142
      %v2209 = vunpack.c.l.b16 %v2033
      %v2210 = vunpack.c.h.b16 %v2033
      %v2211 = vunpack.c.l.b16 %v2034
      %v2212 = vunpack.c.l.b16 %v2035
      %v2213 = vunpack.c.h.b16 %v2035
      %v2214 = vunpack.c.l.b16 %v2036
      %v2215 = vunpack.c.l.b16 %v2037
      %v2216 = vunpack.c.h.b16 %v2037
      %v2217 = vunpack.c.l.b16 %v2038
      %v2218 = vunpack.c.l.b16 %v2039
      %v2219 = vunpack.c.h.b16 %v2039
      %v2220 = vunpack.c.l.b16 %v2040
      %v2221 = vunpack.c.l.b16 %v2041
      %v2222 = vunpack.c.h.b16 %v2041
      %v2223 = vunpack.c.l.b16 %v2042
      %v2224 = vunpack.c.l.b16 %v2043
      %v2225 = vunpack.c.h.b16 %v2043
      %v2226 = vunpack.c.l.b16 %v2044
      %v2227 = vunpack.c.l.b16 %v2045
      %v2228 = vunpack.c.h.b16 %v2045
      %v2229 = vunpack.c.l.b16 %v2046
      %v2230 = vunpack.c.l.b16 %v2047
      %v2231 = vunpack.c.h.b16 %v2047
      %v2232 = vunpack.c.l.b16 %v2048
      %v2233 = vunpack.c.l.b16 %v2049
      %v2234 = vunpack.c.h.b16 %v2049
      %v2235 = vunpack.c.l.b16 %v2050
      %v2236 = vunpack.c.l.b16 %v2051
      %v2237 = vunpack.c.h.b16 %v2051
      %v2238 = vunpack.c.l.b16 %v2052
      %v2239 = vunpack.c.l.b16 %v2053
      %v2240 = vunpack.c.h.b16 %v2053
      %v2241 = vunpack.c.l.b16 %v2054
      %v2242 = vunpack.c.l.b16 %v2055
      %v2243 = vunpack.c.h.b16 %v2055
      %v2244 = vunpack.c.l.b16 %v2056
      %v2245 = vunpack.c.l.b16 %v2057
      %v2246 = vunpack.c.h.b16 %v2057
      %v2247 = vunpack.c.l.b16 %v2058
      %v2248 = vunpack.c.l.b16 %v2059
      %v2249 = vunpack.c.h.b16 %v2059
      %v2250 = vunpack.c.l.b16 %v2060
      %v2251 = vunpack.c.l.b16 %v2061
      %v2252 = vunpack.c.h.b16 %v2061
      %v2253 = vunpack.c.l.b16 %v2062
      %v2254 = vunpack.c.l.b16 %v2063
      %v2255 = vunpack.c.h.b16 %v2063
      %v2256 = vunpack.c.l.b16 %v2064
      %v2257 = vunpack.c.l.b16 %v2065
      %v2258 = vunpack.c.h.b16 %v2065
      %v2259 = vunpack.c.l.b16 %v2066
      %v2260 = vunpack.c.l.b16 %v2067
      %v2261 = vunpack.c.h.b16 %v2067
      %v2262 = vunpack.c.l.b16 %v2068
      %v2263 = vunpack.c.l.b16 %v2069
      %v2264 = vunpack.c.h.b16 %v2069
      %v2265 = vunpack.c.l.b16 %v2070
      %v2266 = vunpack.c.l.b16 %v2071
      %v2267 = vunpack.c.h.b16 %v2071
      %v2268 = vunpack.c.l.b16 %v2072
      %v2269 = vunpack.c.l.b16 %v2073
      %v2270 = vunpack.c.h.b16 %v2073
      %v2271 = vunpack.c.l.b16 %v2074
      %v2272 = vunpack.c.l.b16 %v2075
      %v2273 = vunpack.c.h.b16 %v2075
      %v2274 = vunpack.c.l.b16 %v2076
      %v2275 = vunpack.c.l.b16 %v2077
      %v2276 = vunpack.c.h.b16 %v2077
      %v2277 = vunpack.c.l.b16 %v2078
      %v2278 = vunpack.c.l.b16 %v2079
      %v2279 = vunpack.c.h.b16 %v2079
      %v2280 = vunpack.c.l.b16 %v2080
      %v2281 = vunpack.c.l.b16 %v2081
      %v2282 = vunpack.c.h.b16 %v2081
      %v2283 = vunpack.c.l.b16 %v2082
      %v2284 = vunpack.c.l.b16 %v2083
      %v2285 = vunpack.c.h.b16 %v2083
      %v2286 = vunpack.c.l.b16 %v2084
      %v2287 = vunpack.c.l.b16 %v2085
      %v2288 = vunpack.c.h.b16 %v2085
      %v2289 = vunpack.c.l.b16 %v2086
      %v2290 = vunpack.c.l.b16 %v2087
      %v2291 = vunpack.c.h.b16 %v2087
      %v2292 = vunpack.c.l.b16 %v2088
      %v2293 = vunpack.c.l.b16 %v2089
      %v2294 = vunpack.c.h.b16 %v2089
      %v2295 = vunpack.c.l.b16 %v2090
      %v2296 = vunpack.c.l.b16 %v2091
      %v2297 = vunpack.c.h.b16 %v2091
      %v2298 = vunpack.c.l.b16 %v2092
      %v2299 = vunpack.c.l.b16 %v2093
      %v2300 = vunpack.c.h.b16 %v2093
      %v2301 = vunpack.c.l.b16 %v2094
      %v2302 = vunpack.c.l.b16 %v2095
      %v2303 = vunpack.c.h.b16 %v2095
      %v2304 = vunpack.c.l.b16 %v2096
      %v2305 = vpack.c.b16 %v2212, %v2209
      %v2306 = vpack.c.b16 %v2213, %v2210
      %v2307 = vpack.c.b16 %v2214, %v2211
      %v2308 = vpack.c.b16 %v2218, %v2215
      %v2309 = vpack.c.b16 %v2219, %v2216
      %v2310 = vpack.c.b16 %v2220, %v2217
      %v2311 = vpack.c.b16 %v2224, %v2221
      %v2312 = vpack.c.b16 %v2225, %v2222
      %v2313 = vpack.c.b16 %v2226, %v2223
      %v2314 = vpack.c.b16 %v2230, %v2227
      %v2315 = vpack.c.b16 %v2231, %v2228
      %v2316 = vpack.c.b16 %v2232, %v2229
      %v2317 = vpack.c.b16 %v2236, %v2233
      %v2318 = vpack.c.b16 %v2237, %v2234
      %v2319 = vpack.c.b16 %v2238, %v2235
      %v2320 = vpack.c.b16 %v2242, %v2239
      %v2321 = vpack.c.b16 %v2243, %v2240
      %v2322 = vpack.c.b16 %v2244, %v2241
      %v2323 = vpack.c.b16 %v2248, %v2245
      %v2324 = vpack.c.b16 %v2249, %v2246
      %v2325 = vpack.c.b16 %v2250, %v2247
      %v2326 = vpack.c.b16 %v2254, %v2251
      %v2327 = vpack.c.b16 %v2255, %v2252
      %v2328 = vpack.c.b16 %v2256, %v2253
      %v2329 = vpack.c.b16 %v2260, %v2257
      %v2330 = vpack.c.b16 %v2261, %v2258
      %v2331 = vpack.c.b16 %v2262, %v2259
      %v2332 = vpack.c.b16 %v2266, %v2263
      %v2333 = vpack.c.b16 %v2267, %v2264
      %v2334 = vpack.c.b16 %v2268, %v2265
      %v2335 = vpack.c.b16 %v2272, %v2269
      %v2336 = vpack.c.b16 %v2273, %v2270
      %v2337 = vpack.c.b16 %v2274, %v2271
      %v2338 = vpack.c.b16 %v2278, %v2275
      %v2339 = vpack.c.b16 %v2279, %v2276
      %v2340 = vpack.c.b16 %v2280, %v2277
      %v2341 = vpack.c.b16 %v2284, %v2281
      %v2342 = vpack.c.b16 %v2285, %v2282
      %v2343 = vpack.c.b16 %v2286, %v2283
      %v2344 = vpack.c.b16 %v2290, %v2287
      %v2345 = vpack.c.b16 %v2291, %v2288
      %v2346 = vpack.c.b16 %v2292, %v2289
      %v2347 = vpack.c.b16 %v2296, %v2293
      %v2348 = vpack.c.b16 %v2297, %v2294
      %v2349 = vpack.c.b16 %v2298, %v2295
      %v2350 = vpack.c.b16 %v2302, %v2299
      %v2351 = vpack.c.b16 %v2303, %v2300
      %v2352 = vpack.c.b16 %v2304, %v2301
      %v2426 = vunpack.c.l.b16 %v2097
      %v2427 = vunpack.c.l.b16 %v2098
      %v2428 = vunpack.c.l.b16 %v2099
      %v2429 = vunpack.c.l.b16 %v2100
      %v2430 = vunpack.c.l.b16 %v2101
      %v2431 = vunpack.c.l.b16 %v2102
      %v2432 = vunpack.c.l.b16 %v2103
      %v2433 = vunpack.c.l.b16 %v2104
      %v2434 = vunpack.c.l.b16 %v2105
      %v2435 = vunpack.c.l.b16 %v2106
      %v2436 = vunpack.c.l.b16 %v2107
      %v2437 = vunpack.c.l.b16 %v2108
      %v2438 = vunpack.c.l.b16 %v2109
      %v2439 = vunpack.c.l.b16 %v2110
      %v2440 = vunpack.c.l.b16 %v2111
      %v2441 = vunpack.c.l.b16 %v2112
      %v2442 = vunpack.c.l.b16 %v2113
      %v2443 = vunpack.c.l.b16 %v2114
      %v2444 = vunpack.c.l.b16 %v2115
      %v2445 = vunpack.c.l.b16 %v2116
      %v2446 = vunpack.c.l.b16 %v2117
      %v2447 = vunpack.c.l.b16 %v2118
      %v2448 = vunpack.c.l.b16 %v2119
      %v2449 = vunpack.c.l.b16 %v2120
      %v2450 = vunpack.c.l.b16 %v2121
      %v2451 = vunpack.c.l.b16 %v2122
      %v2452 = vunpack.c.l.b16 %v2123
      %v2453 = vunpack.c.l.b16 %v2124
      %v2454 = vunpack.c.l.b16 %v2125
      %v2455 = vunpack.c.l.b16 %v2126
      %v2456 = vunpack.c.l.b16 %v2127
      %v2457 = vunpack.c.l.b16 %v2128
      %v2458 = vunpack.c.l.b16 %v2129
      %v2459 = vunpack.c.l.b16 %v2130
      %v2460 = vunpack.c.l.b16 %v2131
      %v2461 = vunpack.c.l.b16 %v2132
      %v2462 = vunpack.c.l.b16 %v2133
      %v2463 = vunpack.c.l.b16 %v2134
      %v2464 = vunpack.c.l.b16 %v2135
      %v2465 = vunpack.c.l.b16 %v2136
      %v2466 = vunpack.c.l.b16 %v2137
      %v2467 = vpack.c.b16 %v2427, %v2426
      %v2468 = vpack.c.b16 %v2429, %v2428
      %v2469 = vpack.c.b16 %v2431, %v2430
      %v2470 = vpack.c.b16 %v2433, %v2432
      %v2471 = vpack.c.b16 %v2435, %v2434
      %v2472 = vpack.c.b16 %v2437, %v2436
      %v2473 = vpack.c.b16 %v2439, %v2438
      %v2474 = vpack.c.b16 %v2441, %v2440
      %v2475 = vpack.c.b16 %v2443, %v2442
      %v2476 = vpack.c.b16 %v2445, %v2444
      %v2477 = vpack.c.b16 %v2447, %v2446
      %v2478 = vpack.c.b16 %v2449, %v2448
      %v2479 = vpack.c.b16 %v2451, %v2450
      %v2480 = vpack.c.b16 %v2453, %v2452
      %v2481 = vpack.c.b16 %v2455, %v2454
      %v2482 = vpack.c.b16 %v2457, %v2456
      %v2483 = vpack.c.b16 %v2459, %v2458
      %v2484 = vpack.c.b16 %v2461, %v2460
      %v2485 = vpack.c.b16 %v2463, %v2462
      %v2486 = vpack.c.b16 %v2465, %v2464
      %v2487 = vpack.c.b16 %v2466, %v2466
      %vm2508 = vcmask 556032
      %v2510 = vsel %vm2508, %v2307, 0
      %v2513 = vsel %vm2508, %v2310, 0
      %v2516 = vsel %vm2508, %v2313, 0
      %v2519 = vsel %vm2508, %v2316, 0
      %v2522 = vsel %vm2508, %v2319, 0
      %v2525 = vsel %vm2508, %v2322, 0
      %v2528 = vsel %vm2508, %v2325, 0
      %v2531 = vsel %vm2508, %v2328, 0
      %v2534 = vsel %vm2508, %v2331, 0
      %v2537 = vsel %vm2508, %v2334, 0
      %v2540 = vsel %vm2508, %v2337, 0
      %v2543 = vsel %vm2508, %v2340, 0
      %v2546 = vsel %vm2508, %v2343, 0
      %v2549 = vsel %vm2508, %v2346, 0
      %v2552 = vsel %vm2508, %v2349, 0
      %v2555 = vsel %vm2508, %v2352, 0
      %vm2557 = vcmask 1041408
      %v2559 = vsel %vm2557, %v2487, 0
      %2561 = vmatprep.subr.bf16.mxu0 0
      %2562 = vmatpush1.bf16.msra.mxu0 %v2474
      %2563 = vmatprep.subr.bf16.mxu0 0
      %2564 = vmatpush1.bf16.msra.mxu0 %v2473
      %2565 = vmatprep.subr.bf16.mxu0 0
      %2566 = vmatpush1.bf16.msra.mxu0 %v2472
      %2567 = vmatprep.subr.bf16.mxu0 0
      %2568 = vmatpush1.bf16.msra.mxu0 %v2471
      %2569 = vmatprep.subr.bf16.mxu0 0
      %2570 = vmatpush1.bf16.msra.mxu0 %v2470
      %2571 = vmatprep.subr.bf16.mxu0 0
      %2572 = vmatpush1.bf16.msra.mxu0 %v2469
      %2573 = vmatprep.subr.bf16.mxu0 0
      %2574 = vmatpush1.bf16.msra.mxu0 %v2468
      %2575 = vmatprep.subr.bf16.mxu0 0
      %2576 = vmatpush1.bf16.msra.mxu0 %v2467
      %2577 = vmatprep.subr.bf16.mxu0 0
      %2578 = vmatpush2.bf16.msra.mxu0 %v2482
      %2579 = vmatprep.subr.bf16.mxu0 0
      %2580 = vmatpush2.bf16.msra.mxu0 %v2481
      %2581 = vmatprep.subr.bf16.mxu0 0
      %2582 = vmatpush2.bf16.msra.mxu0 %v2480
      %2583 = vmatprep.subr.bf16.mxu0 0
      %2584 = vmatpush2.bf16.msra.mxu0 %v2479
      %2585 = vmatprep.subr.bf16.mxu0 0
      %2586 = vmatpush2.bf16.msra.mxu0 %v2478
      %2587 = vmatprep.subr.bf16.mxu0 0
      %2588 = vmatpush2.bf16.msra.mxu0 %v2477
      %2589 = vmatprep.subr.bf16.mxu0 0
      %2590 = vmatpush2.bf16.msra.mxu0 %v2476
      %2591 = vmatprep.subr.bf16.mxu0 0
      %2592 = vmatpush2.bf16.msra.mxu0 %v2475
      %2593 = vmatprep.mubr.bf16.mxu0 %v2306
      %2594 = vmatmul.mubr.bf16.gmra.mxu0 %v2305
      %v2595 = vpop.f32.mrf.mxu0
      %v2596 = vadd.f32 %v2143, %v2595
      %v2597 = vpop.f32.mrf.mxu0
      %v2598 = vpop.f32.mrf.mxu0
      %v2599 = vadd.f32 %v2143, %v2598
      %v2600 = vpop.f32.mrf.mxu0
      %2601 = vmatprep.mubr.bf16.mxu0 %v2309
      %2602 = vmatmul.mubr.bf16.gmra.mxu0 %v2308
      %v2603 = vpop.f32.mrf.mxu0
      %v2604 = vadd.f32 %v2143, %v2603
      %v2605 = vpop.f32.mrf.mxu0
      %v2606 = vpop.f32.mrf.mxu0
      %v2607 = vadd.f32 %v2143, %v2606
      %v2608 = vpop.f32.mrf.mxu0
      %2609 = vmatprep.mubr.bf16.mxu0 %v2312
      %2610 = vmatmul.mubr.bf16.gmra.mxu0 %v2311
      %v2611 = vpop.f32.mrf.mxu0
      %v2612 = vadd.f32 %v2143, %v2611
      %v2613 = vpop.f32.mrf.mxu0
      %v2614 = vpop.f32.mrf.mxu0
      %v2615 = vadd.f32 %v2143, %v2614
      %v2616 = vpop.f32.mrf.mxu0
      %2617 = vmatprep.mubr.bf16.mxu0 %v2315
      %2618 = vmatmul.mubr.bf16.gmra.mxu0 %v2314
      %v2619 = vpop.f32.mrf.mxu0
      %v2620 = vadd.f32 %v2143, %v2619
      %v2621 = vpop.f32.mrf.mxu0
      %v2622 = vpop.f32.mrf.mxu0
      %v2623 = vadd.f32 %v2143, %v2622
      %v2624 = vpop.f32.mrf.mxu0
      %2625 = vmatprep.mubr.bf16.mxu0 %v2318
      %2626 = vmatmul.mubr.bf16.gmra.mxu0 %v2317
      %v2627 = vpop.f32.mrf.mxu0
      %v2628 = vadd.f32 %v2143, %v2627
      %v2629 = vpop.f32.mrf.mxu0
      %v2630 = vpop.f32.mrf.mxu0
      %v2631 = vadd.f32 %v2143, %v2630
      %v2632 = vpop.f32.mrf.mxu0
      %2633 = vmatprep.mubr.bf16.mxu0 %v2321
      %2634 = vmatmul.mubr.bf16.gmra.mxu0 %v2320
      %v2635 = vpop.f32.mrf.mxu0
      %v2636 = vadd.f32 %v2143, %v2635
      %v2637 = vpop.f32.mrf.mxu0
      %v2638 = vpop.f32.mrf.mxu0
      %v2639 = vadd.f32 %v2143, %v2638
      %v2640 = vpop.f32.mrf.mxu0
      %2641 = vmatprep.mubr.bf16.mxu0 %v2324
      %2642 = vmatmul.mubr.bf16.gmra.mxu0 %v2323
      %v2643 = vpop.f32.mrf.mxu0
      %v2644 = vadd.f32 %v2143, %v2643
      %v2645 = vpop.f32.mrf.mxu0
      %v2646 = vpop.f32.mrf.mxu0
      %v2647 = vadd.f32 %v2143, %v2646
      %v2648 = vpop.f32.mrf.mxu0
      %2649 = vmatprep.mubr.bf16.mxu0 %v2327
      %2650 = vmatmul.mubr.bf16.gmra.mxu0 %v2326
      %v2651 = vpop.f32.mrf.mxu0
      %v2652 = vadd.f32 %v2143, %v2651
      %v2653 = vpop.f32.mrf.mxu0
      %v2654 = vpop.f32.mrf.mxu0
      %v2655 = vadd.f32 %v2143, %v2654
      %v2656 = vpop.f32.mrf.mxu0
      %2657 = vmatprep.mubr.bf16.mxu0 %v2330
      %2658 = vmatmul.mubr.bf16.gmra.mxu0 %v2329
      %v2659 = vpop.f32.mrf.mxu0
      %v2660 = vadd.f32 %v2143, %v2659
      %v2661 = vpop.f32.mrf.mxu0
      %v2662 = vpop.f32.mrf.mxu0
      %v2663 = vadd.f32 %v2143, %v2662
      %v2664 = vpop.f32.mrf.mxu0
      %2665 = vmatprep.mubr.bf16.mxu0 %v2333
      %2666 = vmatmul.mubr.bf16.gmra.mxu0 %v2332
      %v2667 = vpop.f32.mrf.mxu0
      %v2668 = vadd.f32 %v2143, %v2667
      %v2669 = vpop.f32.mrf.mxu0
      %v2670 = vpop.f32.mrf.mxu0
      %v2671 = vadd.f32 %v2143, %v2670
      %v2672 = vpop.f32.mrf.mxu0
      %2673 = vmatprep.mubr.bf16.mxu0 %v2336
      %2674 = vmatmul.mubr.bf16.gmra.mxu0 %v2335
      %v2675 = vpop.f32.mrf.mxu0
      %v2676 = vadd.f32 %v2143, %v2675
      %v2677 = vpop.f32.mrf.mxu0
      %v2678 = vpop.f32.mrf.mxu0
      %v2679 = vadd.f32 %v2143, %v2678
      %v2680 = vpop.f32.mrf.mxu0
      %2681 = vmatprep.mubr.bf16.mxu0 %v2339
      %2682 = vmatmul.mubr.bf16.gmra.mxu0 %v2338
      %v2683 = vpop.f32.mrf.mxu0
      %v2684 = vadd.f32 %v2143, %v2683
      %v2685 = vpop.f32.mrf.mxu0
      %v2686 = vpop.f32.mrf.mxu0
      %v2687 = vadd.f32 %v2143, %v2686
      %v2688 = vpop.f32.mrf.mxu0
      %2689 = vmatprep.mubr.bf16.mxu0 %v2342
      %2690 = vmatmul.mubr.bf16.gmra.mxu0 %v2341
      %v2691 = vpop.f32.mrf.mxu0
      %v2692 = vadd.f32 %v2143, %v2691
      %v2693 = vpop.f32.mrf.mxu0
      %v2694 = vpop.f32.mrf.mxu0
      %v2695 = vadd.f32 %v2143, %v2694
      %v2696 = vpop.f32.mrf.mxu0
      %2697 = vmatprep.mubr.bf16.mxu0 %v2345
      %2698 = vmatmul.mubr.bf16.gmra.mxu0 %v2344
      %v2699 = vpop.f32.mrf.mxu0
      %v2700 = vadd.f32 %v2143, %v2699
      %v2701 = vpop.f32.mrf.mxu0
      %v2702 = vpop.f32.mrf.mxu0
      %v2703 = vadd.f32 %v2143, %v2702
      %v2704 = vpop.f32.mrf.mxu0
      %2705 = vmatprep.mubr.bf16.mxu0 %v2348
      %2706 = vmatmul.mubr.bf16.gmra.mxu0 %v2347
      %v2707 = vpop.f32.mrf.mxu0
      %v2708 = vadd.f32 %v2143, %v2707
      %v2709 = vpop.f32.mrf.mxu0
      %v2710 = vpop.f32.mrf.mxu0
      %v2711 = vadd.f32 %v2143, %v2710
      %v2712 = vpop.f32.mrf.mxu0
      %2713 = vmatprep.mubr.bf16.mxu0 %v2351
      %2714 = vmatmul.mubr.bf16.gmra.mxu0 %v2350
      %v2715 = vpop.f32.mrf.mxu0
      %v2716 = vadd.f32 %v2143, %v2715
      %v2717 = vpop.f32.mrf.mxu0
      %v2718 = vpop.f32.mrf.mxu0
      %v2719 = vadd.f32 %v2143, %v2718
      %v2720 = vpop.f32.mrf.mxu0
      %2721 = vdwg.mxu0
      %2722 = vmatprep.subr.bf16.mxu0 0
      %2723 = vmatpush1.bf16.msra.mxu0 0
      %2724 = vmatprep.subr.bf16.mxu0 0
      %2725 = vmatpush1.bf16.msra.mxu0 0
      %2726 = vmatprep.subr.bf16.mxu0 0
      %2727 = vmatpush1.bf16.msra.mxu0 0
      %2728 = vmatprep.subr.bf16.mxu0 0
      %2729 = vmatpush1.bf16.msra.mxu0 %v2559
      %2730 = vmatprep.subr.bf16.mxu0 0
      %2731 = vmatpush1.bf16.msra.mxu0 %v2486
      %2732 = vmatprep.subr.bf16.mxu0 0
      %2733 = vmatpush1.bf16.msra.mxu0 %v2485
      %2734 = vmatprep.subr.bf16.mxu0 0
      %2735 = vmatpush1.bf16.msra.mxu0 %v2484
      %2736 = vmatprep.subr.bf16.mxu0 0
      %2737 = vmatpush1.bf16.msra.mxu0 %v2483
      %2738 = vmatprep.subr.bf16.mxu0 0
      %2739 = vmatpush2.bf16.msra.mxu0 0
      %2740 = vmatprep.subr.bf16.mxu0 0
      %2741 = vmatpush2.bf16.msra.mxu0 0
      %2742 = vmatprep.subr.bf16.mxu0 0
      %2743 = vmatpush2.bf16.msra.mxu0 0
      %2744 = vmatprep.subr.bf16.mxu0 0
      %2745 = vmatpush2.bf16.msra.mxu0 0
      %2746 = vmatprep.subr.bf16.mxu0 0
      %2747 = vmatpush2.bf16.msra.mxu0 0
      %2748 = vmatprep.subr.bf16.mxu0 0
      %2749 = vmatpush2.bf16.msra.mxu0 0
      %2750 = vmatprep.subr.bf16.mxu0 0
      %2751 = vmatpush2.bf16.msra.mxu0 0
      %2752 = vmatprep.subr.bf16.mxu0 0
      %2753 = vmatpush2.bf16.msra.mxu0 0
      %2754 = vmatprep.mubr.bf16.mxu0 0
      %2755 = vmatmul.mubr.bf16.gmra.mxu0 %v2510
      %v2756 = vpop.f32.mrf.mxu0
      %v2757 = vadd.f32 %v2596, %v2756
      %v2758 = vpop.f32.mrf.mxu0
      %v2759 = vpop.f32.mrf.mxu0
      %v2760 = vadd.f32 %v2599, %v2759
      %v2761 = vpop.f32.mrf.mxu0
      %2762 = vmatprep.mubr.bf16.mxu0 0
      %2763 = vmatmul.mubr.bf16.gmra.mxu0 %v2513
      %v2764 = vpop.f32.mrf.mxu0
      %v2765 = vadd.f32 %v2604, %v2764
      %v2766 = vpop.f32.mrf.mxu0
      %v2767 = vpop.f32.mrf.mxu0
      %v2768 = vadd.f32 %v2607, %v2767
      %v2769 = vpop.f32.mrf.mxu0
      %2770 = vmatprep.mubr.bf16.mxu0 0
      %2771 = vmatmul.mubr.bf16.gmra.mxu0 %v2516
      %v2772 = vpop.f32.mrf.mxu0
      %v2773 = vadd.f32 %v2612, %v2772
      %v2774 = vpop.f32.mrf.mxu0
      %v2775 = vpop.f32.mrf.mxu0
      %v2776 = vadd.f32 %v2615, %v2775
      %v2777 = vpop.f32.mrf.mxu0
      %2778 = vmatprep.mubr.bf16.mxu0 0
      %2779 = vmatmul.mubr.bf16.gmra.mxu0 %v2519
      %v2780 = vpop.f32.mrf.mxu0
      %v2781 = vadd.f32 %v2620, %v2780
      %v2782 = vpop.f32.mrf.mxu0
      %v2783 = vpop.f32.mrf.mxu0
      %v2784 = vadd.f32 %v2623, %v2783
      %v2785 = vpop.f32.mrf.mxu0
      %2786 = vmatprep.mubr.bf16.mxu0 0
      %2787 = vmatmul.mubr.bf16.gmra.mxu0 %v2522
      %v2788 = vpop.f32.mrf.mxu0
      %v2789 = vadd.f32 %v2628, %v2788
      %v2790 = vpop.f32.mrf.mxu0
      %v2791 = vpop.f32.mrf.mxu0
      %v2792 = vadd.f32 %v2631, %v2791
      %v2793 = vpop.f32.mrf.mxu0
      %2794 = vmatprep.mubr.bf16.mxu0 0
      %2795 = vmatmul.mubr.bf16.gmra.mxu0 %v2525
      %v2796 = vpop.f32.mrf.mxu0
      %v2797 = vadd.f32 %v2636, %v2796
      %v2798 = vpop.f32.mrf.mxu0
      %v2799 = vpop.f32.mrf.mxu0
      %v2800 = vadd.f32 %v2639, %v2799
      %v2801 = vpop.f32.mrf.mxu0
      %2802 = vmatprep.mubr.bf16.mxu0 0
      %2803 = vmatmul.mubr.bf16.gmra.mxu0 %v2528
      %v2804 = vpop.f32.mrf.mxu0
      %v2805 = vadd.f32 %v2644, %v2804
      %v2806 = vpop.f32.mrf.mxu0
      %v2807 = vpop.f32.mrf.mxu0
      %v2808 = vadd.f32 %v2647, %v2807
      %v2809 = vpop.f32.mrf.mxu0
      %2810 = vmatprep.mubr.bf16.mxu0 0
      %2811 = vmatmul.mubr.bf16.gmra.mxu0 %v2531
      %v2812 = vpop.f32.mrf.mxu0
      %v2813 = vadd.f32 %v2652, %v2812
      %v2814 = vpop.f32.mrf.mxu0
      %v2815 = vpop.f32.mrf.mxu0
      %v2816 = vadd.f32 %v2655, %v2815
      %v2817 = vpop.f32.mrf.mxu0
      %2818 = vmatprep.mubr.bf16.mxu0 0
      %2819 = vmatmul.mubr.bf16.gmra.mxu0 %v2534
      %v2820 = vpop.f32.mrf.mxu0
      %v2821 = vadd.f32 %v2660, %v2820
      %v2822 = vpop.f32.mrf.mxu0
      %v2823 = vpop.f32.mrf.mxu0
      %v2824 = vadd.f32 %v2663, %v2823
      %v2825 = vpop.f32.mrf.mxu0
      %2826 = vmatprep.mubr.bf16.mxu0 0
      %2827 = vmatmul.mubr.bf16.gmra.mxu0 %v2537
      %v2828 = vpop.f32.mrf.mxu0
      %v2829 = vadd.f32 %v2668, %v2828
      %v2830 = vpop.f32.mrf.mxu0
      %v2831 = vpop.f32.mrf.mxu0
      %v2832 = vadd.f32 %v2671, %v2831
      %v2833 = vpop.f32.mrf.mxu0
      %2834 = vmatprep.mubr.bf16.mxu0 0
      %2835 = vmatmul.mubr.bf16.gmra.mxu0 %v2540
      %v2836 = vpop.f32.mrf.mxu0
      %v2837 = vadd.f32 %v2676, %v2836
      %v2838 = vpop.f32.mrf.mxu0
      %v2839 = vpop.f32.mrf.mxu0
      %v2840 = vadd.f32 %v2679, %v2839
      %v2841 = vpop.f32.mrf.mxu0
      %2842 = vmatprep.mubr.bf16.mxu0 0
      %2843 = vmatmul.mubr.bf16.gmra.mxu0 %v2543
      %v2844 = vpop.f32.mrf.mxu0
      %v2845 = vadd.f32 %v2684, %v2844
      %v2846 = vpop.f32.mrf.mxu0
      %v2847 = vpop.f32.mrf.mxu0
      %v2848 = vadd.f32 %v2687, %v2847
      %v2849 = vpop.f32.mrf.mxu0
      %2850 = vmatprep.mubr.bf16.mxu0 0
      %2851 = vmatmul.mubr.bf16.gmra.mxu0 %v2546
      %v2852 = vpop.f32.mrf.mxu0
      %v2853 = vadd.f32 %v2692, %v2852
      %v2854 = vpop.f32.mrf.mxu0
      %v2855 = vpop.f32.mrf.mxu0
      %v2856 = vadd.f32 %v2695, %v2855
      %v2857 = vpop.f32.mrf.mxu0
      %2858 = vmatprep.mubr.bf16.mxu0 0
      %2859 = vmatmul.mubr.bf16.gmra.mxu0 %v2549
      %v2860 = vpop.f32.mrf.mxu0
      %v2861 = vadd.f32 %v2700, %v2860
      %v2862 = vpop.f32.mrf.mxu0
      %v2863 = vpop.f32.mrf.mxu0
      %v2864 = vadd.f32 %v2703, %v2863
      %v2865 = vpop.f32.mrf.mxu0
      %2866 = vmatprep.mubr.bf16.mxu0 0
      %2867 = vmatmul.mubr.bf16.gmra.mxu0 %v2552
      %v2868 = vpop.f32.mrf.mxu0
      %v2869 = vadd.f32 %v2708, %v2868
      %v2870 = vpop.f32.mrf.mxu0
      %v2871 = vpop.f32.mrf.mxu0
      %v2872 = vadd.f32 %v2711, %v2871
      %v2873 = vpop.f32.mrf.mxu0
      %2874 = vmatprep.mubr.bf16.mxu0 0
      %2875 = vmatmul.mubr.bf16.gmra.mxu0 %v2555
      %v2876 = vpop.f32.mrf.mxu0
      %v2877 = vadd.f32 %v2716, %v2876
      %v2878 = vpop.f32.mrf.mxu0
      %v2879 = vpop.f32.mrf.mxu0
      %v2880 = vadd.f32 %v2719, %v2879
      %v2881 = vpop.f32.mrf.mxu0
      %2882 = vdwg.mxu0
      %v2883 = vmax.f32 %v2757, 0.0
      %v2884 = vmax.f32 %v2760, 0.0
      %v2885 = vmax.f32 %v2765, 0.0
      %v2886 = vmax.f32 %v2768, 0.0
      %v2887 = vmax.f32 %v2773, 0.0
      %v2888 = vmax.f32 %v2776, 0.0
      %v2889 = vmax.f32 %v2781, 0.0
      %v2890 = vmax.f32 %v2784, 0.0
      %v2891 = vmax.f32 %v2789, 0.0
      %v2892 = vmax.f32 %v2792, 0.0
      %v2893 = vmax.f32 %v2797, 0.0
      %v2894 = vmax.f32 %v2800, 0.0
      %v2895 = vmax.f32 %v2805, 0.0
      %v2896 = vmax.f32 %v2808, 0.0
      %v2897 = vmax.f32 %v2813, 0.0
      %v2898 = vmax.f32 %v2816, 0.0
      %v2899 = vmax.f32 %v2821, 0.0
      %v2900 = vmax.f32 %v2824, 0.0
      %v2901 = vmax.f32 %v2829, 0.0
      %v2902 = vmax.f32 %v2832, 0.0
      %v2903 = vmax.f32 %v2837, 0.0
      %v2904 = vmax.f32 %v2840, 0.0
      %v2905 = vmax.f32 %v2845, 0.0
      %v2906 = vmax.f32 %v2848, 0.0
      %v2907 = vmax.f32 %v2853, 0.0
      %v2908 = vmax.f32 %v2856, 0.0
      %v2909 = vmax.f32 %v2861, 0.0
      %v2910 = vmax.f32 %v2864, 0.0
      %v2911 = vmax.f32 %v2869, 0.0
      %v2912 = vmax.f32 %v2872, 0.0
      %v2913 = vmax.f32 %v2877, 0.0
      %v2914 = vmax.f32 %v2880, 0.0
      %v2915 = vpack.c.bf16 %v2884, %v2883
      %v2916 = vpack.c.bf16 %v2886, %v2885
      %v2917 = vpack.c.bf16 %v2888, %v2887
      %v2918 = vpack.c.bf16 %v2890, %v2889
      %v2919 = vpack.c.bf16 %v2892, %v2891
      %v2920 = vpack.c.bf16 %v2894, %v2893
      %v2921 = vpack.c.bf16 %v2896, %v2895
      %v2922 = vpack.c.bf16 %v2898, %v2897
      %v2923 = vpack.c.bf16 %v2900, %v2899
      %v2924 = vpack.c.bf16 %v2902, %v2901
      %v2925 = vpack.c.bf16 %v2904, %v2903
      %v2926 = vpack.c.bf16 %v2906, %v2905
      %v2927 = vpack.c.bf16 %v2908, %v2907
      %v2928 = vpack.c.bf16 %v2910, %v2909
      %v2929 = vpack.c.bf16 %v2912, %v2911
      %v2930 = vpack.c.bf16 %v2914, %v2913
      %v2931 = vld [vmem:[%s3] sm:$0xf]
      %v2932 = vld [vmem:[%s3 + $0x4] sm:$0xf]
      %v2933 = vld [vmem:[%s3 + $0x8] sm:$0xf]
      %v2934 = vld [vmem:[%s3 + $0xc] sm:$0xf]
      %v2935 = vld [vmem:[%s3 + $0x10] sm:$0xf]
      %v2936 = vld [vmem:[%s3 + $0x14] sm:$0xf]
      %v2937 = vld [vmem:[%s3 + $0x18] sm:$0xf]
      %v2938 = vld [vmem:[%s3 + $0x1c] sm:$0xf]
      %v2939 = vld [vmem:[%s4] sm:$0xff]
      %v2940 = vld [vmem:[%s4 + $0x8] sm:$0xff]
      %v2941 = vld [vmem:[%s4 + $0x10] sm:$0xff]
      %v2942 = vld [vmem:[%s4 + $0x18] sm:$0xff]
      %2944 = vset.pattern.permute.xlu0 0
      %2945 = vperm.xlu0 %2944, %v2939
      %v2946 = vpop.permute.xlu0 %2945
      %2949 = vset.pattern.permute.xlu0 0
      %2950 = vperm.xlu0 %2949, %v2940
      %v2951 = vpop.permute.xlu0 %2950
      %2954 = vset.pattern.permute.xlu0 0
      %2955 = vperm.xlu0 %2954, %v2941
      %v2956 = vpop.permute.xlu0 %2955
      %2959 = vset.pattern.permute.xlu0 0
      %2960 = vperm.xlu0 %2959, %v2942
      %v2961 = vpop.permute.xlu0 %2960
      %v2971 = vunpack.c.l.b16 %v2931
      %v2972 = vunpack.c.l.b16 %v2932
      %v2973 = vunpack.c.l.b16 %v2933
      %v2974 = vunpack.c.l.b16 %v2934
      %v2975 = vunpack.c.l.b16 %v2935
      %v2976 = vunpack.c.l.b16 %v2936
      %v2977 = vunpack.c.l.b16 %v2937
      %v2978 = vunpack.c.l.b16 %v2938
      %v2979 = vpack.c.b16 %v2972, %v2971
      %v2980 = vpack.c.b16 %v2974, %v2973
      %v2981 = vpack.c.b16 %v2976, %v2975
      %v2982 = vpack.c.b16 %v2978, %v2977
      %2987 = vxpose.xlu0.c.b16.start [1/8] %v2979, 128
      %2988 = vxpose.xlu0.c.b16.cont [2/8] %v2980, 128
      %2989 = vxpose.xlu0.c.b16.cont [3/8] %v2981, 128
      %2990 = vxpose.xlu0.c.b16.cont [4/8] %v2982, 128
      %2991 = vxpose.xlu0.c.b16.cont [5/8] 0, 128
      %2992 = vxpose.xlu0.c.b16.cont [6/8] 0, 128
      %2993 = vxpose.xlu0.c.b16.cont [7/8] 0, 128
      %2994 = vxpose.xlu0.c.b16.end [8/8] 0, 128
      %v2995 = vpop.trf.xlu0
      %v2996 = vpop.trf.xlu0
      %v2997 = vpop.trf.xlu0
      %v2998 = vpop.trf.xlu0
      %v2999 = vpop.trf.xlu0
      %v3000 = vpop.trf.xlu0
      %v3001 = vpop.trf.xlu0
      %v3002 = vpop.trf.xlu0
      %vm3003 = vcmask 523264
      %v3005 = vsel %vm3003, %v2995, 0
      %v3008 = vsel %vm3003, %v2996, 0
      %v3011 = vsel %vm3003, %v2915, 0
      %v3014 = vsel %vm3003, %v2916, 0
      %v3017 = vsel %vm3003, %v2917, 0
      %v3020 = vsel %vm3003, %v2918, 0
      %v3023 = vsel %vm3003, %v2919, 0
      %v3026 = vsel %vm3003, %v2920, 0
      %v3029 = vsel %vm3003, %v2921, 0
      %v3032 = vsel %vm3003, %v2922, 0
      %v3035 = vsel %vm3003, %v2923, 0
      %v3038 = vsel %vm3003, %v2924, 0
      %v3041 = vsel %vm3003, %v2925, 0
      %v3044 = vsel %vm3003, %v2926, 0
      %v3047 = vsel %vm3003, %v2927, 0
      %v3050 = vsel %vm3003, %v2928, 0
      %v3053 = vsel %vm3003, %v2929, 0
      %v3056 = vsel %vm3003, %v2930, 0
      %3058 = vmatprep.subr.bf16.mxu0 0
      %3059 = vmatpush1.bf16.xpose.msra.mxu0 %v3032
      %3060 = vmatprep.subr.bf16.mxu0 0
      %3061 = vmatpush1.bf16.xpose.msra.mxu0 %v3029
      %3062 = vmatprep.subr.bf16.mxu0 0
      %3063 = vmatpush1.bf16.xpose.msra.mxu0 %v3026
      %3064 = vmatprep.subr.bf16.mxu0 0
      %3065 = vmatpush1.bf16.xpose.msra.mxu0 %v3023
      %3066 = vmatprep.subr.bf16.mxu0 0
      %3067 = vmatpush1.bf16.xpose.msra.mxu0 %v3020
      %3068 = vmatprep.subr.bf16.mxu0 0
      %3069 = vmatpush1.bf16.xpose.msra.mxu0 %v3017
      %3070 = vmatprep.subr.bf16.mxu0 0
      %3071 = vmatpush1.bf16.xpose.msra.mxu0 %v3014
      %3072 = vmatprep.subr.bf16.mxu0 0
      %3073 = vmatpush1.bf16.xpose.msra.mxu0 %v3011
      %3074 = vmatprep.subr.bf16.mxu0 0
      %3075 = vmatpush2.bf16.xpose.msra.mxu0 %v3056
      %3076 = vmatprep.subr.bf16.mxu0 0
      %3077 = vmatpush2.bf16.xpose.msra.mxu0 %v3053
      %3078 = vmatprep.subr.bf16.mxu0 0
      %3079 = vmatpush2.bf16.xpose.msra.mxu0 %v3050
      %3080 = vmatprep.subr.bf16.mxu0 0
      %3081 = vmatpush2.bf16.xpose.msra.mxu0 %v3047
      %3082 = vmatprep.subr.bf16.mxu0 0
      %3083 = vmatpush2.bf16.xpose.msra.mxu0 %v3044
      %3084 = vmatprep.subr.bf16.mxu0 0
      %3085 = vmatpush2.bf16.xpose.msra.mxu0 %v3041
      %3086 = vmatprep.subr.bf16.mxu0 0
      %3087 = vmatpush2.bf16.xpose.msra.mxu0 %v3038
      %3088 = vmatprep.subr.bf16.mxu0 0
      %3089 = vmatpush2.bf16.xpose.msra.mxu0 %v3035
      %3090 = vmatprep.mubr.bf16.mxu0 0
      %3091 = vmatmul.mubr.bf16.gmra.mxu0 %v3005
      %v3092 = vpop.f32.mrf.mxu0
      %v3093 = vadd.f32 %v2946, %v3092
      %v3094 = vpop.f32.mrf.mxu0
      %v3095 = vadd.f32 %v2946, %v3094
      %v3096 = vpop.f32.mrf.mxu0
      %v3097 = vadd.f32 %v2951, %v3096
      %v3098 = vpop.f32.mrf.mxu0
      %v3099 = vadd.f32 %v2951, %v3098
      %3100 = vmatprep.mubr.bf16.mxu0 0
      %3101 = vmatmul.mubr.bf16.gmra.mxu0 %v3008
      %v3102 = vpop.f32.mrf.mxu0
      %v3103 = vadd.f32 %v2956, %v3102
      %v3104 = vpop.f32.mrf.mxu0
      %v3105 = vadd.f32 %v2956, %v3104
      %v3106 = vpop.f32.mrf.mxu0
      %v3107 = vadd.f32 %v2961, %v3106
      %v3108 = vpop.f32.mrf.mxu0
      %v3109 = vadd.f32 %v2961, %v3108
      %3110 = vdwg.mxu0
      %v3111 = vmax.f32 %v3093, 0.0
      %v3112 = vmax.f32 %v3095, 0.0
      %v3113 = vmax.f32 %v3097, 0.0
      %v3114 = vmax.f32 %v3099, 0.0
      %v3115 = vmax.f32 %v3103, 0.0
      %v3116 = vmax.f32 %v3105, 0.0
      %v3117 = vmax.f32 %v3107, 0.0
      %v3118 = vmax.f32 %v3109, 0.0
      %v3119 = vpack.c.bf16 %v3113, %v3111
      %v3120 = vpack.c.bf16 %v3114, %v3112
      %v3121 = vpack.c.bf16 %v3117, %v3115
      %v3122 = vpack.c.bf16 %v3118, %v3116
      %3123 = vst [vmem:[#allocation3] sm:$0xf] 0
      %3124 = vst [vmem:[#allocation3 + $0x10] sm:$0xf] 0
      %3125 = vst [vmem:[#allocation3 + $0x20] sm:$0xf] 0
      %3126 = vst [vmem:[#allocation3 + $0x30] sm:$0xf] 0
      %3127 = vst [vmem:[#allocation3 + $0xc] sm:$0xf] 0
      %3128 = vst [vmem:[#allocation3 + $0x1c] sm:$0xf] 0
      %3129 = vst [vmem:[#allocation3 + $0x2c] sm:$0xf] 0
      %3130 = vst [vmem:[#allocation3 + $0x3c] sm:$0xf] 0
      %v3135 = vunpack.c.l.b16 %v3119
      %v3136 = vunpack.c.l.b16 %v3120
      %v3137 = vunpack.c.h.b16 %v3119
      %v3138 = vunpack.c.h.b16 %v3120
      %v3139 = vunpack.c.l.b16 %v3121
      %v3140 = vunpack.c.l.b16 %v3122
      %v3141 = vunpack.c.h.b16 %v3121
      %v3142 = vunpack.c.h.b16 %v3122
      %v3143 = vpack.c.b16 %v3136, %v3135
      %v3144 = vpack.c.b16 %v3138, %v3137
      %v3145 = vpack.c.b16 %v3140, %v3139
      %v3146 = vpack.c.b16 %v3142, %v3141
      %3151 = vst [vmem:[#allocation3 + $0x4] sm:$0xff] %v3143
      %3152 = vst [vmem:[#allocation3 + $0x14] sm:$0xff] %v3144
      %3153 = vst [vmem:[#allocation3 + $0x24] sm:$0xff] %v3145
      %3154 = vst [vmem:[#allocation3 + $0x34] sm:$0xff] %v3146
      %v3155 = vlaneseq
      %v3156 = vand.u32 %v3155, 127
      %v3157 = vadd.s32 %v3156, 128
      %vm3158 = vcmp.lt.s32.totalorder %v3156, 0
      %v3159 = vsub.s32 0, %v3156
      %v3160 = vsel %vm3158, %v3159, %v3156
      %v3161 = vshrl.u32 %v3160, 4
      %v3162 = vand.u32 %v3160, 15
      %v3163 = vsub.s32 0, %v3162
      %v3164 = vsel %vm3158, %v3163, %v3162
      %vm3165 = vcmp.lt.s32.totalorder %v3157, 0
      %v3166 = vsub.s32 0, %v3157
      %v3167 = vsel %vm3165, %v3166, %v3157
      %v3168 = vshrl.u32 %v3167, 4
      %v3169 = vand.u32 %v3167, 15
      %v3170 = vsub.s32 0, %v3169
      %v3171 = vsel %vm3165, %v3170, %v3169
      %vm3172 = vcmp.ne.s32.totalorder %v3164, 0
      %vm3173 = vcmp.ne.s32.totalorder %v3171, 0
      %vm3174 = vcmp.lt.s32.totalorder %v3164, 0
      %vm3175 = vcmp.lt.s32.totalorder %v3171, 0
      %vm3176 = vmand %vm3174, %vm3172
      %vm3177 = vmand %vm3175, %vm3173
      %v3178 = vadd.s32 %v3164, 16
      %v3179 = vadd.s32 %v3171, 16
      %v3180 = vsel %vm3176, %v3178, %v3164
      %v3181 = vsel %vm3177, %v3179, %v3171
      %vm3182 = vcmp.ge.s32.totalorder %v3180, 2
      %vm3183 = vcmp.ge.s32.totalorder %v3181, 2
      %vm3184 = vcmp.lt.s32.totalorder %v3180, 18
      %vm3185 = vcmp.lt.s32.totalorder %v3181, 18
      %vm3186 = vmand %vm3182, %vm3184
      %vm3187 = vmand %vm3183, %vm3185
      %vm3188 = vcmp.ge.s32.totalorder %v3180, 1
      %vm3189 = vcmp.ge.s32.totalorder %v3181, 1
      %vm3190 = vcmp.lt.s32.totalorder %v3180, 17
      %vm3191 = vcmp.lt.s32.totalorder %v3181, 17
      %vm3192 = vmand %vm3188, %vm3190
      %vm3193 = vmand %vm3189, %vm3191
      %vm3194 = vcmp.ge.s32.totalorder %v3180, 4294967295
      %vm3195 = vcmp.ge.s32.totalorder %v3181, 4294967295
      %vm3196 = vcmp.lt.s32.totalorder %v3180, 15
      %vm3197 = vcmp.lt.s32.totalorder %v3181, 15
      %vm3198 = vmand %vm3194, %vm3196
      %vm3199 = vmand %vm3195, %vm3197
      %vm3200 = vcmp.ge.s32.totalorder %v3180, 4294967294
      %vm3201 = vcmp.ge.s32.totalorder %v3181, 4294967294
      %vm3202 = vcmp.lt.s32.totalorder %v3180, 14
      %vm3203 = vcmp.lt.s32.totalorder %v3181, 14
      %vm3204 = vmand %vm3200, %vm3202
      %vm3205 = vmand %vm3201, %vm3203
      %v3206 = vld [vmem:[#allocation3] sm:$0xff]
      %v3207 = vld [vmem:[#allocation3 + $0x8] sm:$0xf]
      %v3208 = vld [vmem:[#allocation3 + $0x10] sm:$0xff]
      %v3209 = vld [vmem:[#allocation3 + $0x18] sm:$0xf]
      %v3210 = vld [vmem:[#allocation3 + $0x20] sm:$0xff]
      %v3211 = vld [vmem:[#allocation3 + $0x28] sm:$0xf]
      %v3212 = vld [vmem:[#allocation3 + $0x30] sm:$0xff]
      %v3213 = vld [vmem:[#allocation3 + $0x38] sm:$0xf]
      %v3214 = vsel %vm3186, 1, 0
      %v3215 = vsel %vm3187, 1, 0
      %vm3216 = vcmp.eq.s32.totalorder %v3214, 1
      %vm3217 = vcmp.eq.s32.totalorder %v3215, 1
      %vm3218 = vmpackc.low %vm3217, %vm3216
      %v3219 = vsel %vm3218, 65537, 0
      %3220 = vrot.lane.b32.xlu0 %v3219, 94
      %v3221 = vpop.permute.xlu0 %3220
      %v3222 = vrot.slane %v3221, 4
      %vm3223 = vcmask 769024
      %v3224 = vsel %vm3223, %v3222, %v3221
      %vm3225 = vcmp.ne.s16.totalorder %v3224, 0
      %vm3226 = vcmp.ne.s16.totalorder %v3222, 0
      %v3227 = vsel %vm3225, %v3206, 0
      %v3228 = vsel %vm3226, %v3207, 0
      %v3229 = vsel %vm3225, %v3208, 0
      %v3230 = vsel %vm3226, %v3209, 0
      %v3231 = vsel %vm3225, %v3210, 0
      %v3232 = vsel %vm3226, %v3211, 0
      %v3233 = vsel %vm3225, %v3212, 0
      %v3234 = vsel %vm3226, %v3213, 0
      %3243 = vrot.lane.b32.xlu0 %v3227, 34
      %v3244 = vpop.permute.xlu0 %3243
      %3245 = vrot.lane.b32.xlu0 %v3228, 34
      %v3246 = vpop.permute.xlu0 %3245
      %3247 = vrot.lane.b32.xlu0 %v3229, 34
      %v3248 = vpop.permute.xlu0 %3247
      %3249 = vrot.lane.b32.xlu0 %v3230, 34
      %v3250 = vpop.permute.xlu0 %3249
      %3251 = vrot.lane.b32.xlu0 %v3231, 34
      %v3252 = vpop.permute.xlu0 %3251
      %3253 = vrot.lane.b32.xlu0 %v3232, 34
      %v3254 = vpop.permute.xlu0 %3253
      %3255 = vrot.lane.b32.xlu0 %v3233, 34
      %v3256 = vpop.permute.xlu0 %3255
      %3257 = vrot.lane.b32.xlu0 %v3234, 34
      %v3258 = vpop.permute.xlu0 %3257
      %v3259 = vrot.slane %v3244, 4
      %v3260 = vrot.slane %v3246, 4
      %v3261 = vrot.slane %v3248, 4
      %v3262 = vrot.slane %v3250, 4
      %v3263 = vrot.slane %v3252, 4
      %v3264 = vrot.slane %v3254, 4
      %v3265 = vrot.slane %v3256, 4
      %v3266 = vrot.slane %v3258, 4
      %vm3267 = vcmask 1043456
      %v3268 = vsel %vm3267, %v3259, %v3260
      %vm3269 = vcmask 277504
      %v3270 = vsel %vm3269, %v3244, %v3268
      %v3271 = vsel %vm3267, %v3261, %v3262
      %v3272 = vsel %vm3269, %v3248, %v3271
      %v3273 = vsel %vm3267, %v3263, %v3264
      %v3274 = vsel %vm3269, %v3252, %v3273
      %v3275 = vsel %vm3267, %v3265, %v3266
      %v3276 = vsel %vm3269, %v3256, %v3275
      %3281 = vst [vmem:[#allocation4] sm:$0xff] %v3270
      %3282 = vst [vmem:[#allocation4 + $0x8] sm:$0xff] %v3272
      %3283 = vst [vmem:[#allocation4 + $0x10] sm:$0xff] %v3274
      %3284 = vst [vmem:[#allocation4 + $0x18] sm:$0xff] %v3276
      %v3285 = vld [vmem:[#allocation3] sm:$0xff]
      %v3286 = vld [vmem:[#allocation3 + $0x8] sm:$0xf]
      %v3287 = vld [vmem:[#allocation3 + $0x10] sm:$0xff]
      %v3288 = vld [vmem:[#allocation3 + $0x18] sm:$0xf]
      %v3289 = vld [vmem:[#allocation3 + $0x20] sm:$0xff]
      %v3290 = vld [vmem:[#allocation3 + $0x28] sm:$0xf]
      %v3291 = vld [vmem:[#allocation3 + $0x30] sm:$0xff]
      %v3292 = vld [vmem:[#allocation3 + $0x38] sm:$0xf]
      %v3293 = vsel %vm3192, 1, 0
      %v3294 = vsel %vm3193, 1, 0
      %vm3295 = vcmp.eq.s32.totalorder %v3293, 1
      %vm3296 = vcmp.eq.s32.totalorder %v3294, 1
      %vm3297 = vmpackc.low %vm3296, %vm3295
      %v3298 = vsel %vm3297, 65537, 0
      %3299 = vrot.lane.b32.xlu0 %v3298, 95
      %v3300 = vpop.permute.xlu0 %3299
      %v3301 = vrot.slane %v3300, 4
      %vm3302 = vcmask 777216
      %v3303 = vsel %vm3302, %v3301, %v3300
      %vm3304 = vcmp.ne.s16.totalorder %v3303, 0
      %vm3305 = vcmp.ne.s16.totalorder %v3301, 0
      %v3306 = vsel %vm3304, %v3285, 0
      %v3307 = vsel %vm3305, %v3286, 0
      %v3308 = vsel %vm3304, %v3287, 0
      %v3309 = vsel %vm3305, %v3288, 0
      %v3310 = vsel %vm3304, %v3289, 0
      %v3311 = vsel %vm3305, %v3290, 0
      %v3312 = vsel %vm3304, %v3291, 0
      %v3313 = vsel %vm3305, %v3292, 0
      %3322 = vrot.lane.b32.xlu0 %v3306, 33
      %v3323 = vpop.permute.xlu0 %3322
      %3324 = vrot.lane.b32.xlu0 %v3307, 33
      %v3325 = vpop.permute.xlu0 %3324
      %3326 = vrot.lane.b32.xlu0 %v3308, 33
      %v3327 = vpop.permute.xlu0 %3326
      %3328 = vrot.lane.b32.xlu0 %v3309, 33
      %v3329 = vpop.permute.xlu0 %3328
      %3330 = vrot.lane.b32.xlu0 %v3310, 33
      %v3331 = vpop.permute.xlu0 %3330
      %3332 = vrot.lane.b32.xlu0 %v3311, 33
      %v3333 = vpop.permute.xlu0 %3332
      %3334 = vrot.lane.b32.xlu0 %v3312, 33
      %v3335 = vpop.permute.xlu0 %3334
      %3336 = vrot.lane.b32.xlu0 %v3313, 33
      %v3337 = vpop.permute.xlu0 %3336
      %v3338 = vrot.slane %v3323, 4
      %v3339 = vrot.slane %v3325, 4
      %v3340 = vrot.slane %v3327, 4
      %v3341 = vrot.slane %v3329, 4
      %v3342 = vrot.slane %v3331, 4
      %v3343 = vrot.slane %v3333, 4
      %v3344 = vrot.slane %v3335, 4
      %v3345 = vrot.slane %v3337, 4
      %v3346 = vsel %vm3267, %v3338, %v3339
      %vm3347 = vcmask 269312
      %v3348 = vsel %vm3347, %v3323, %v3346
      %v3349 = vsel %vm3267, %v3340, %v3341
      %v3350 = vsel %vm3347, %v3327, %v3349
      %v3351 = vsel %vm3267, %v3342, %v3343
      %v3352 = vsel %vm3347, %v3331, %v3351
      %v3353 = vsel %vm3267, %v3344, %v3345
      %v3354 = vsel %vm3347, %v3335, %v3353
      %3359 = vst [vmem:[#allocation4 + $0x20] sm:$0xff] %v3348
      %3360 = vst [vmem:[#allocation4 + $0x28] sm:$0xff] %v3350
      %3361 = vst [vmem:[#allocation4 + $0x30] sm:$0xff] %v3352
      %3362 = vst [vmem:[#allocation4 + $0x38] sm:$0xff] %v3354
      %v3363 = vld [vmem:[#allocation3] sm:$0xff]
      %v3364 = vld [vmem:[#allocation3 + $0x8] sm:$0xf]
      %v3365 = vld [vmem:[#allocation3 + $0x10] sm:$0xff]
      %v3366 = vld [vmem:[#allocation3 + $0x18] sm:$0xf]
      %v3367 = vld [vmem:[#allocation3 + $0x20] sm:$0xff]
      %v3368 = vld [vmem:[#allocation3 + $0x28] sm:$0xf]
      %v3369 = vld [vmem:[#allocation3 + $0x30] sm:$0xff]
      %v3370 = vld [vmem:[#allocation3 + $0x38] sm:$0xf]
      %3379 = vrot.lane.b32.xlu0 %v3363, 32
      %v3380 = vpop.permute.xlu0 %3379
      %3381 = vrot.lane.b32.xlu0 %v3364, 32
      %v3382 = vpop.permute.xlu0 %3381
      %3383 = vrot.lane.b32.xlu0 %v3365, 32
      %v3384 = vpop.permute.xlu0 %3383
      %3385 = vrot.lane.b32.xlu0 %v3366, 32
      %v3386 = vpop.permute.xlu0 %3385
      %3387 = vrot.lane.b32.xlu0 %v3367, 32
      %v3388 = vpop.permute.xlu0 %3387
      %3389 = vrot.lane.b32.xlu0 %v3368, 32
      %v3390 = vpop.permute.xlu0 %3389
      %3391 = vrot.lane.b32.xlu0 %v3369, 32
      %v3392 = vpop.permute.xlu0 %3391
      %3393 = vrot.lane.b32.xlu0 %v3370, 32
      %v3394 = vpop.permute.xlu0 %3393
      %v3395 = vrot.slane %v3380, 4
      %v3396 = vrot.slane %v3382, 4
      %v3397 = vrot.slane %v3384, 4
      %v3398 = vrot.slane %v3386, 4
      %v3399 = vrot.slane %v3388, 4
      %v3400 = vrot.slane %v3390, 4
      %v3401 = vrot.slane %v3392, 4
      %v3402 = vrot.slane %v3394, 4
      %v3403 = vsel %vm3267, %v3395, %v3396
      %vm3404 = vcmask 261120
      %v3405 = vsel %vm3404, %v3380, %v3403
      %v3406 = vsel %vm3267, %v3397, %v3398
      %v3407 = vsel %vm3404, %v3384, %v3406
      %v3408 = vsel %vm3267, %v3399, %v3400
      %v3409 = vsel %vm3404, %v3388, %v3408
      %v3410 = vsel %vm3267, %v3401, %v3402
      %v3411 = vsel %vm3404, %v3392, %v3410
      %3416 = vst [vmem:[#allocation4 + $0x40] sm:$0xff] %v3405
      %3417 = vst [vmem:[#allocation4 + $0x48] sm:$0xff] %v3407
      %3418 = vst [vmem:[#allocation4 + $0x50] sm:$0xff] %v3409
      %3419 = vst [vmem:[#allocation4 + $0x58] sm:$0xff] %v3411
      %v3420 = vld [vmem:[#allocation3] sm:$0xff]
      %v3421 = vld [vmem:[#allocation3 + $0x8] sm:$0xf]
      %v3422 = vld [vmem:[#allocation3 + $0x10] sm:$0xff]
      %v3423 = vld [vmem:[#allocation3 + $0x18] sm:$0xf]
      %v3424 = vld [vmem:[#allocation3 + $0x20] sm:$0xff]
      %v3425 = vld [vmem:[#allocation3 + $0x28] sm:$0xf]
      %v3426 = vld [vmem:[#allocation3 + $0x30] sm:$0xff]
      %v3427 = vld [vmem:[#allocation3 + $0x38] sm:$0xf]
      %v3428 = vsel %vm3198, 1, 0
      %v3429 = vsel %vm3199, 1, 0
      %vm3430 = vcmp.eq.s32.totalorder %v3428, 1
      %vm3431 = vcmp.eq.s32.totalorder %v3429, 1
      %vm3432 = vmpackc.low %vm3431, %vm3430
      %v3433 = vsel %vm3432, 65537, 0
      %3434 = vrot.lane.b32.xlu0 %v3433, 97
      %v3435 = vpop.permute.xlu0 %3434
      %v3436 = vrot.slane %v3435, 4
      %vm3437 = vcmask 793600
      %v3438 = vsel %vm3437, %v3436, %v3435
      %vm3439 = vcmp.ne.s16.totalorder %v3438, 0
      %vm3440 = vcmp.ne.s16.totalorder %v3436, 0
      %v3441 = vsel %vm3439, %v3420, 0
      %v3442 = vsel %vm3440, %v3421, 0
      %v3443 = vsel %vm3439, %v3422, 0
      %v3444 = vsel %vm3440, %v3423, 0
      %v3445 = vsel %vm3439, %v3424, 0
      %v3446 = vsel %vm3440, %v3425, 0
      %v3447 = vsel %vm3439, %v3426, 0
      %v3448 = vsel %vm3440, %v3427, 0
      %3457 = vrot.lane.b32.xlu0 %v3441, 31
      %v3458 = vpop.permute.xlu0 %3457
      %3459 = vrot.lane.b32.xlu0 %v3442, 31
      %v3460 = vpop.permute.xlu0 %3459
      %3461 = vrot.lane.b32.xlu0 %v3443, 31
      %v3462 = vpop.permute.xlu0 %3461
      %3463 = vrot.lane.b32.xlu0 %v3444, 31
      %v3464 = vpop.permute.xlu0 %3463
      %3465 = vrot.lane.b32.xlu0 %v3445, 31
      %v3466 = vpop.permute.xlu0 %3465
      %3467 = vrot.lane.b32.xlu0 %v3446, 31
      %v3468 = vpop.permute.xlu0 %3467
      %3469 = vrot.lane.b32.xlu0 %v3447, 31
      %v3470 = vpop.permute.xlu0 %3469
      %3471 = vrot.lane.b32.xlu0 %v3448, 31
      %v3472 = vpop.permute.xlu0 %3471
      %v3473 = vrot.slane %v3458, 4
      %v3474 = vrot.slane %v3460, 4
      %v3475 = vrot.slane %v3462, 4
      %v3476 = vrot.slane %v3464, 4
      %v3477 = vrot.slane %v3466, 4
      %v3478 = vrot.slane %v3468, 4
      %v3479 = vrot.slane %v3470, 4
      %v3480 = vrot.slane %v3472, 4
      %v3481 = vsel %vm3267, %v3473, %v3474
      %vm3482 = vcmask 252928
      %v3483 = vsel %vm3482, %v3458, %v3481
      %v3484 = vsel %vm3267, %v3475, %v3476
      %v3485 = vsel %vm3482, %v3462, %v3484
      %v3486 = vsel %vm3267, %v3477, %v3478
      %v3487 = vsel %vm3482, %v3466, %v3486
      %v3488 = vsel %vm3267, %v3479, %v3480
      %v3489 = vsel %vm3482, %v3470, %v3488
      %3494 = vst [vmem:[#allocation4 + $0x60] sm:$0xff] %v3483
      %3495 = vst [vmem:[#allocation4 + $0x68] sm:$0xff] %v3485
      %3496 = vst [vmem:[#allocation4 + $0x70] sm:$0xff] %v3487
      %3497 = vst [vmem:[#allocation4 + $0x78] sm:$0xff] %v3489
      %v3498 = vld [vmem:[#allocation3] sm:$0xff]
      %v3499 = vld [vmem:[#allocation3 + $0x8] sm:$0xf]
      %v3500 = vld [vmem:[#allocation3 + $0x10] sm:$0xff]
      %v3501 = vld [vmem:[#allocation3 + $0x18] sm:$0xf]
      %v3502 = vld [vmem:[#allocation3 + $0x20] sm:$0xff]
      %v3503 = vld [vmem:[#allocation3 + $0x28] sm:$0xf]
      %v3504 = vld [vmem:[#allocation3 + $0x30] sm:$0xff]
      %v3505 = vld [vmem:[#allocation3 + $0x38] sm:$0xf]
      %v3506 = vsel %vm3204, 1, 0
      %v3507 = vsel %vm3205, 1, 0
      %vm3508 = vcmp.eq.s32.totalorder %v3506, 1
      %vm3509 = vcmp.eq.s32.totalorder %v3507, 1
      %vm3510 = vmpackc.low %vm3509, %vm3508
      %v3511 = vsel %vm3510, 65537, 0
      %3512 = vrot.lane.b32.xlu0 %v3511, 98
      %v3513 = vpop.permute.xlu0 %3512
      %v3514 = vrot.slane %v3513, 4
      %vm3515 = vcmask 801792
      %v3516 = vsel %vm3515, %v3514, %v3513
      %vm3517 = vcmp.ne.s16.totalorder %v3516, 0
      %vm3518 = vcmp.ne.s16.totalorder %v3514, 0
      %v3519 = vsel %vm3517, %v3498, 0
      %v3520 = vsel %vm3518, %v3499, 0
      %v3521 = vsel %vm3517, %v3500, 0
      %v3522 = vsel %vm3518, %v3501, 0
      %v3523 = vsel %vm3517, %v3502, 0
      %v3524 = vsel %vm3518, %v3503, 0
      %v3525 = vsel %vm3517, %v3504, 0
      %v3526 = vsel %vm3518, %v3505, 0
      %3535 = vrot.lane.b32.xlu0 %v3519, 30
      %v3536 = vpop.permute.xlu0 %3535
      %3537 = vrot.lane.b32.xlu0 %v3520, 30
      %v3538 = vpop.permute.xlu0 %3537
      %3539 = vrot.lane.b32.xlu0 %v3521, 30
      %v3540 = vpop.permute.xlu0 %3539
      %3541 = vrot.lane.b32.xlu0 %v3522, 30
      %v3542 = vpop.permute.xlu0 %3541
      %3543 = vrot.lane.b32.xlu0 %v3523, 30
      %v3544 = vpop.permute.xlu0 %3543
      %3545 = vrot.lane.b32.xlu0 %v3524, 30
      %v3546 = vpop.permute.xlu0 %3545
      %3547 = vrot.lane.b32.xlu0 %v3525, 30
      %v3548 = vpop.permute.xlu0 %3547
      %3549 = vrot.lane.b32.xlu0 %v3526, 30
      %v3550 = vpop.permute.xlu0 %3549
      %v3551 = vrot.slane %v3536, 4
      %v3552 = vrot.slane %v3538, 4
      %v3553 = vrot.slane %v3540, 4
      %v3554 = vrot.slane %v3542, 4
      %v3555 = vrot.slane %v3544, 4
      %v3556 = vrot.slane %v3546, 4
      %v3557 = vrot.slane %v3548, 4
      %v3558 = vrot.slane %v3550, 4
      %v3559 = vsel %vm3267, %v3551, %v3552
      %vm3560 = vcmask 244736
      %v3561 = vsel %vm3560, %v3536, %v3559
      %v3562 = vsel %vm3267, %v3553, %v3554
      %v3563 = vsel %vm3560, %v3540, %v3562
      %v3564 = vsel %vm3267, %v3555, %v3556
      %v3565 = vsel %vm3560, %v3544, %v3564
      %v3566 = vsel %vm3267, %v3557, %v3558
      %v3567 = vsel %vm3560, %v3548, %v3566
      %3572 = vst [vmem:[#allocation4 + $0x80] sm:$0xff] %v3561
      %3573 = vst [vmem:[#allocation4 + $0x88] sm:$0xff] %v3563
      %3574 = vst [vmem:[#allocation4 + $0x90] sm:$0xff] %v3565
      %3575 = vst [vmem:[#allocation4 + $0x98] sm:$0xff] %v3567
      %v3576 = vld [vmem:[#allocation3] sm:$0xff]
      %v3577 = vld [vmem:[#allocation3 + $0x8] sm:$0xf]
      %v3578 = vld [vmem:[#allocation3 + $0x10] sm:$0xff]
      %v3579 = vld [vmem:[#allocation3 + $0x18] sm:$0xf]
      %v3580 = vld [vmem:[#allocation3 + $0x20] sm:$0xff]
      %v3581 = vld [vmem:[#allocation3 + $0x28] sm:$0xf]
      %v3582 = vld [vmem:[#allocation3 + $0x30] sm:$0xff]
      %v3583 = vld [vmem:[#allocation3 + $0x38] sm:$0xf]
      %3584 = vrot.lane.b32.xlu0 %v3219, 110
      %v3585 = vpop.permute.xlu0 %3584
      %v3586 = vrot.slane %v3585, 4
      %vm3587 = vcmask 900096
      %v3588 = vsel %vm3587, %v3586, %v3585
      %vm3589 = vcmp.ne.s16.totalorder %v3588, 0
      %vm3590 = vcmp.ne.s16.totalorder %v3586, 0
      %v3591 = vsel %vm3589, %v3576, 0
      %v3592 = vsel %vm3590, %v3577, 0
      %v3593 = vsel %vm3589, %v3578, 0
      %v3594 = vsel %vm3590, %v3579, 0
      %v3595 = vsel %vm3589, %v3580, 0
      %v3596 = vsel %vm3590, %v3581, 0
      %v3597 = vsel %vm3589, %v3582, 0
      %v3598 = vsel %vm3590, %v3583, 0
      %3607 = vrot.lane.b32.xlu0 %v3591, 18
      %v3608 = vpop.permute.xlu0 %3607
      %3609 = vrot.lane.b32.xlu0 %v3592, 18
      %v3610 = vpop.permute.xlu0 %3609
      %3611 = vrot.lane.b32.xlu0 %v3593, 18
      %v3612 = vpop.permute.xlu0 %3611
      %3613 = vrot.lane.b32.xlu0 %v3594, 18
      %v3614 = vpop.permute.xlu0 %3613
      %3615 = vrot.lane.b32.xlu0 %v3595, 18
      %v3616 = vpop.permute.xlu0 %3615
      %3617 = vrot.lane.b32.xlu0 %v3596, 18
      %v3618 = vpop.permute.xlu0 %3617
      %3619 = vrot.lane.b32.xlu0 %v3597, 18
      %v3620 = vpop.permute.xlu0 %3619
      %3621 = vrot.lane.b32.xlu0 %v3598, 18
      %v3622 = vpop.permute.xlu0 %3621
      %v3623 = vrot.slane %v3608, 4
      %v3624 = vrot.slane %v3610, 4
      %v3625 = vrot.slane %v3612, 4
      %v3626 = vrot.slane %v3614, 4
      %v3627 = vrot.slane %v3616, 4
      %v3628 = vrot.slane %v3618, 4
      %v3629 = vrot.slane %v3620, 4
      %v3630 = vrot.slane %v3622, 4
      %v3631 = vsel %vm3267, %v3623, %v3624
      %vm3632 = vcmask 146432
      %v3633 = vsel %vm3632, %v3608, %v3631
      %v3634 = vsel %vm3267, %v3625, %v3626
      %v3635 = vsel %vm3632, %v3612, %v3634
      %v3636 = vsel %vm3267, %v3627, %v3628
      %v3637 = vsel %vm3632, %v3616, %v3636
      %v3638 = vsel %vm3267, %v3629, %v3630
      %v3639 = vsel %vm3632, %v3620, %v3638
      %3644 = vst [vmem:[#allocation4 + $0xa0] sm:$0xff] %v3633
      %3645 = vst [vmem:[#allocation4 + $0xa8] sm:$0xff] %v3635
      %3646 = vst [vmem:[#allocation4 + $0xb0] sm:$0xff] %v3637
      %3647 = vst [vmem:[#allocation4 + $0xb8] sm:$0xff] %v3639
      %v3648 = vld [vmem:[#allocation3] sm:$0xff]
      %v3649 = vld [vmem:[#allocation3 + $0x8] sm:$0xf]
      %v3650 = vld [vmem:[#allocation3 + $0x10] sm:$0xff]
      %v3651 = vld [vmem:[#allocation3 + $0x18] sm:$0xf]
      %v3652 = vld [vmem:[#allocation3 + $0x20] sm:$0xff]
      %v3653 = vld [vmem:[#allocation3 + $0x28] sm:$0xf]
      %v3654 = vld [vmem:[#allocation3 + $0x30] sm:$0xff]
      %v3655 = vld [vmem:[#allocation3 + $0x38] sm:$0xf]
      %3656 = vrot.lane.b32.xlu0 %v3298, 111
      %v3657 = vpop.permute.xlu0 %3656
      %v3658 = vrot.slane %v3657, 4
      %vm3659 = vcmask 908288
      %v3660 = vsel %vm3659, %v3658, %v3657
      %vm3661 = vcmp.ne.s16.totalorder %v3660, 0
      %vm3662 = vcmp.ne.s16.totalorder %v3658, 0
      %v3663 = vsel %vm3661, %v3648, 0
      %v3664 = vsel %vm3662, %v3649, 0
      %v3665 = vsel %vm3661, %v3650, 0
      %v3666 = vsel %vm3662, %v3651, 0
      %v3667 = vsel %vm3661, %v3652, 0
      %v3668 = vsel %vm3662, %v3653, 0
      %v3669 = vsel %vm3661, %v3654, 0
      %v3670 = vsel %vm3662, %v3655, 0
      %3679 = vrot.lane.b32.xlu0 %v3663, 17
      %v3680 = vpop.permute.xlu0 %3679
      %3681 = vrot.lane.b32.xlu0 %v3664, 17
      %v3682 = vpop.permute.xlu0 %3681
      %3683 = vrot.lane.b32.xlu0 %v3665, 17
      %v3684 = vpop.permute.xlu0 %3683
      %3685 = vrot.lane.b32.xlu0 %v3666, 17
      %v3686 = vpop.permute.xlu0 %3685
      %3687 = vrot.lane.b32.xlu0 %v3667, 17
      %v3688 = vpop.permute.xlu0 %3687
      %3689 = vrot.lane.b32.xlu0 %v3668, 17
      %v3690 = vpop.permute.xlu0 %3689
      %3691 = vrot.lane.b32.xlu0 %v3669, 17
      %v3692 = vpop.permute.xlu0 %3691
      %3693 = vrot.lane.b32.xlu0 %v3670, 17
      %v3694 = vpop.permute.xlu0 %3693
      %v3695 = vrot.slane %v3680, 4
      %v3696 = vrot.slane %v3682, 4
      %v3697 = vrot.slane %v3684, 4
      %v3698 = vrot.slane %v3686, 4
      %v3699 = vrot.slane %v3688, 4
      %v3700 = vrot.slane %v3690, 4
      %v3701 = vrot.slane %v3692, 4
      %v3702 = vrot.slane %v3694, 4
      %v3703 = vsel %vm3267, %v3695, %v3696
      %vm3704 = vcmask 138240
      %v3705 = vsel %vm3704, %v3680, %v3703
      %v3706 = vsel %vm3267, %v3697, %v3698
      %v3707 = vsel %vm3704, %v3684, %v3706
      %v3708 = vsel %vm3267, %v3699, %v3700
      %v3709 = vsel %vm3704, %v3688, %v3708
      %v3710 = vsel %vm3267, %v3701, %v3702
      %v3711 = vsel %vm3704, %v3692, %v3710
      %3716 = vst [vmem:[#allocation4 + $0xc0] sm:$0xff] %v3705
      %3717 = vst [vmem:[#allocation4 + $0xc8] sm:$0xff] %v3707
      %3718 = vst [vmem:[#allocation4 + $0xd0] sm:$0xff] %v3709
      %3719 = vst [vmem:[#allocation4 + $0xd8] sm:$0xff] %v3711
      %v3720 = vld [vmem:[#allocation3] sm:$0xff]
      %v3721 = vld [vmem:[#allocation3 + $0x8] sm:$0xf]
      %v3722 = vld [vmem:[#allocation3 + $0x10] sm:$0xff]
      %v3723 = vld [vmem:[#allocation3 + $0x18] sm:$0xf]
      %v3724 = vld [vmem:[#allocation3 + $0x20] sm:$0xff]
      %v3725 = vld [vmem:[#allocation3 + $0x28] sm:$0xf]
      %v3726 = vld [vmem:[#allocation3 + $0x30] sm:$0xff]
      %v3727 = vld [vmem:[#allocation3 + $0x38] sm:$0xf]
      %3736 = vrot.lane.b32.xlu0 %v3720, 16
      %v3737 = vpop.permute.xlu0 %3736
      %3738 = vrot.lane.b32.xlu0 %v3721, 16
      %v3739 = vpop.permute.xlu0 %3738
      %3740 = vrot.lane.b32.xlu0 %v3722, 16
      %v3741 = vpop.permute.xlu0 %3740
      %3742 = vrot.lane.b32.xlu0 %v3723, 16
      %v3743 = vpop.permute.xlu0 %3742
      %3744 = vrot.lane.b32.xlu0 %v3724, 16
      %v3745 = vpop.permute.xlu0 %3744
      %3746 = vrot.lane.b32.xlu0 %v3725, 16
      %v3747 = vpop.permute.xlu0 %3746
      %3748 = vrot.lane.b32.xlu0 %v3726, 16
      %v3749 = vpop.permute.xlu0 %3748
      %3750 = vrot.lane.b32.xlu0 %v3727, 16
      %v3751 = vpop.permute.xlu0 %3750
      %v3752 = vrot.slane %v3737, 4
      %v3753 = vrot.slane %v3739, 4
      %v3754 = vrot.slane %v3741, 4
      %v3755 = vrot.slane %v3743, 4
      %v3756 = vrot.slane %v3745, 4
      %v3757 = vrot.slane %v3747, 4
      %v3758 = vrot.slane %v3749, 4
      %v3759 = vrot.slane %v3751, 4
      %v3760 = vsel %vm3267, %v3752, %v3753
      %vm3761 = vcmask 130048
      %v3762 = vsel %vm3761, %v3737, %v3760
      %v3763 = vsel %vm3267, %v3754, %v3755
      %v3764 = vsel %vm3761, %v3741, %v3763
      %v3765 = vsel %vm3267, %v3756, %v3757
      %v3766 = vsel %vm3761, %v3745, %v3765
      %v3767 = vsel %vm3267, %v3758, %v3759
      %v3768 = vsel %vm3761, %v3749, %v3767
      %3773 = vst [vmem:[#allocation4 + $0xe0] sm:$0xff] %v3762
      %3774 = vst [vmem:[#allocation4 + $0xe8] sm:$0xff] %v3764
      %3775 = vst [vmem:[#allocation4 + $0xf0] sm:$0xff] %v3766
      %3776 = vst [vmem:[#allocation4 + $0xf8] sm:$0xff] %v3768
      %v3777 = vld [vmem:[#allocation3] sm:$0xff]
      %v3778 = vld [vmem:[#allocation3 + $0x8] sm:$0xf]
      %v3779 = vld [vmem:[#allocation3 + $0x10] sm:$0xff]
      %v3780 = vld [vmem:[#allocation3 + $0x18] sm:$0xf]
      %v3781 = vld [vmem:[#allocation3 + $0x20] sm:$0xff]
      %v3782 = vld [vmem:[#allocation3 + $0x28] sm:$0xf]
      %v3783 = vld [vmem:[#allocation3 + $0x30] sm:$0xff]
      %v3784 = vld [vmem:[#allocation3 + $0x38] sm:$0xf]
      %3785 = vrot.lane.b32.xlu0 %v3433, 113
      %v3786 = vpop.permute.xlu0 %3785
      %v3787 = vrot.slane %v3786, 4
      %vm3788 = vcmask 924672
      %v3789 = vsel %vm3788, %v3787, %v3786
      %vm3790 = vcmp.ne.s16.totalorder %v3789, 0
      %vm3791 = vcmp.ne.s16.totalorder %v3787, 0
      %v3792 = vsel %vm3790, %v3777, 0
      %v3793 = vsel %vm3791, %v3778, 0
      %v3794 = vsel %vm3790, %v3779, 0
      %v3795 = vsel %vm3791, %v3780, 0
      %v3796 = vsel %vm3790, %v3781, 0
      %v3797 = vsel %vm3791, %v3782, 0
      %v3798 = vsel %vm3790, %v3783, 0
      %v3799 = vsel %vm3791, %v3784, 0
      %3808 = vrot.lane.b32.xlu0 %v3792, 15
      %v3809 = vpop.permute.xlu0 %3808
      %3810 = vrot.lane.b32.xlu0 %v3793, 15
      %v3811 = vpop.permute.xlu0 %3810
      %3812 = vrot.lane.b32.xlu0 %v3794, 15
      %v3813 = vpop.permute.xlu0 %3812
      %3814 = vrot.lane.b32.xlu0 %v3795, 15
      %v3815 = vpop.permute.xlu0 %3814
      %3816 = vrot.lane.b32.xlu0 %v3796, 15
      %v3817 = vpop.permute.xlu0 %3816
      %3818 = vrot.lane.b32.xlu0 %v3797, 15
      %v3819 = vpop.permute.xlu0 %3818
      %3820 = vrot.lane.b32.xlu0 %v3798, 15
      %v3821 = vpop.permute.xlu0 %3820
      %3822 = vrot.lane.b32.xlu0 %v3799, 15
      %v3823 = vpop.permute.xlu0 %3822
      %v3824 = vrot.slane %v3809, 4
      %v3825 = vrot.slane %v3811, 4
      %v3826 = vrot.slane %v3813, 4
      %v3827 = vrot.slane %v3815, 4
      %v3828 = vrot.slane %v3817, 4
      %v3829 = vrot.slane %v3819, 4
      %v3830 = vrot.slane %v3821, 4
      %v3831 = vrot.slane %v3823, 4
      %v3832 = vsel %vm3267, %v3824, %v3825
      %vm3833 = vcmask 121856
      %v3834 = vsel %vm3833, %v3809, %v3832
      %v3835 = vsel %vm3267, %v3826, %v3827
      %v3836 = vsel %vm3833, %v3813, %v3835
      %v3837 = vsel %vm3267, %v3828, %v3829
      %v3838 = vsel %vm3833, %v3817, %v3837
      %v3839 = vsel %vm3267, %v3830, %v3831
      %v3840 = vsel %vm3833, %v3821, %v3839
      %3845 = vst [vmem:[#allocation4 + $0x100] sm:$0xff] %v3834
      %3846 = vst [vmem:[#allocation4 + $0x108] sm:$0xff] %v3836
      %3847 = vst [vmem:[#allocation4 + $0x110] sm:$0xff] %v3838
      %3848 = vst [vmem:[#allocation4 + $0x118] sm:$0xff] %v3840
      %v3849 = vld [vmem:[#allocation3] sm:$0xff]
      %v3850 = vld [vmem:[#allocation3 + $0x8] sm:$0xf]
      %v3851 = vld [vmem:[#allocation3 + $0x10] sm:$0xff]
      %v3852 = vld [vmem:[#allocation3 + $0x18] sm:$0xf]
      %v3853 = vld [vmem:[#allocation3 + $0x20] sm:$0xff]
      %v3854 = vld [vmem:[#allocation3 + $0x28] sm:$0xf]
      %v3855 = vld [vmem:[#allocation3 + $0x30] sm:$0xff]
      %v3856 = vld [vmem:[#allocation3 + $0x38] sm:$0xf]
      %3857 = vrot.lane.b32.xlu0 %v3511, 114
      %v3858 = vpop.permute.xlu0 %3857
      %v3859 = vrot.slane %v3858, 4
      %vm3860 = vcmask 932864
      %v3861 = vsel %vm3860, %v3859, %v3858
      %vm3862 = vcmp.ne.s16.totalorder %v3861, 0
      %vm3863 = vcmp.ne.s16.totalorder %v3859, 0
      %v3864 = vsel %vm3862, %v3849, 0
      %v3865 = vsel %vm3863, %v3850, 0
      %v3866 = vsel %vm3862, %v3851, 0
      %v3867 = vsel %vm3863, %v3852, 0
      %v3868 = vsel %vm3862, %v3853, 0
      %v3869 = vsel %vm3863, %v3854, 0
      %v3870 = vsel %vm3862, %v3855, 0
      %v3871 = vsel %vm3863, %v3856, 0
      %3880 = vrot.lane.b32.xlu0 %v3864, 14
      %v3881 = vpop.permute.xlu0 %3880
      %3882 = vrot.lane.b32.xlu0 %v3865, 14
      %v3883 = vpop.permute.xlu0 %3882
      %3884 = vrot.lane.b32.xlu0 %v3866, 14
      %v3885 = vpop.permute.xlu0 %3884
      %3886 = vrot.lane.b32.xlu0 %v3867, 14
      %v3887 = vpop.permute.xlu0 %3886
      %3888 = vrot.lane.b32.xlu0 %v3868, 14
      %v3889 = vpop.permute.xlu0 %3888
      %3890 = vrot.lane.b32.xlu0 %v3869, 14
      %v3891 = vpop.permute.xlu0 %3890
      %3892 = vrot.lane.b32.xlu0 %v3870, 14
      %v3893 = vpop.permute.xlu0 %3892
      %3894 = vrot.lane.b32.xlu0 %v3871, 14
      %v3895 = vpop.permute.xlu0 %3894
      %v3896 = vrot.slane %v3881, 4
      %v3897 = vrot.slane %v3883, 4
      %v3898 = vrot.slane %v3885, 4
      %v3899 = vrot.slane %v3887, 4
      %v3900 = vrot.slane %v3889, 4
      %v3901 = vrot.slane %v3891, 4
      %v3902 = vrot.slane %v3893, 4
      %v3903 = vrot.slane %v3895, 4
      %v3904 = vsel %vm3267, %v3896, %v3897
      %vm3905 = vcmask 113664
      %v3906 = vsel %vm3905, %v3881, %v3904
      %v3907 = vsel %vm3267, %v3898, %v3899
      %v3908 = vsel %vm3905, %v3885, %v3907
      %v3909 = vsel %vm3267, %v3900, %v3901
      %v3910 = vsel %vm3905, %v3889, %v3909
      %v3911 = vsel %vm3267, %v3902, %v3903
      %v3912 = vsel %vm3905, %v3893, %v3911
      %3917 = vst [vmem:[#allocation4 + $0x120] sm:$0xff] %v3906
      %3918 = vst [vmem:[#allocation4 + $0x128] sm:$0xff] %v3908
      %3919 = vst [vmem:[#allocation4 + $0x130] sm:$0xff] %v3910
      %3920 = vst [vmem:[#allocation4 + $0x138] sm:$0xff] %v3912
      %v3921 = vld [vmem:[#allocation3] sm:$0xff]
      %v3922 = vld [vmem:[#allocation3 + $0x8] sm:$0xf]
      %v3923 = vld [vmem:[#allocation3 + $0x10] sm:$0xff]
      %v3924 = vld [vmem:[#allocation3 + $0x18] sm:$0xf]
      %v3925 = vld [vmem:[#allocation3 + $0x20] sm:$0xff]
      %v3926 = vld [vmem:[#allocation3 + $0x28] sm:$0xf]
      %v3927 = vld [vmem:[#allocation3 + $0x30] sm:$0xff]
      %v3928 = vld [vmem:[#allocation3 + $0x38] sm:$0xf]
      %3929 = vrot.lane.b32.xlu0 %v3219, 126
      %v3930 = vpop.permute.xlu0 %3929
      %v3931 = vrot.slane %v3930, 4
      %vm3932 = vcmask 1031168
      %v3933 = vsel %vm3932, %v3931, %v3930
      %vm3934 = vcmp.ne.s16.totalorder %v3933, 0
      %vm3935 = vcmp.ne.s16.totalorder %v3931, 0
      %v3936 = vsel %vm3934, %v3921, 0
      %v3937 = vsel %vm3935, %v3922, 0
      %v3938 = vsel %vm3934, %v3923, 0
      %v3939 = vsel %vm3935, %v3924, 0
      %v3940 = vsel %vm3934, %v3925, 0
      %v3941 = vsel %vm3935, %v3926, 0
      %v3942 = vsel %vm3934, %v3927, 0
      %v3943 = vsel %vm3935, %v3928, 0
      %3952 = vrot.lane.b32.xlu0 %v3936, 2
      %v3953 = vpop.permute.xlu0 %3952
      %3954 = vrot.lane.b32.xlu0 %v3937, 2
      %v3955 = vpop.permute.xlu0 %3954
      %3956 = vrot.lane.b32.xlu0 %v3938, 2
      %v3957 = vpop.permute.xlu0 %3956
      %3958 = vrot.lane.b32.xlu0 %v3939, 2
      %v3959 = vpop.permute.xlu0 %3958
      %3960 = vrot.lane.b32.xlu0 %v3940, 2
      %v3961 = vpop.permute.xlu0 %3960
      %3962 = vrot.lane.b32.xlu0 %v3941, 2
      %v3963 = vpop.permute.xlu0 %3962
      %3964 = vrot.lane.b32.xlu0 %v3942, 2
      %v3965 = vpop.permute.xlu0 %3964
      %3966 = vrot.lane.b32.xlu0 %v3943, 2
      %v3967 = vpop.permute.xlu0 %3966
      %v3968 = vrot.slane %v3953, 4
      %v3969 = vrot.slane %v3955, 4
      %v3970 = vrot.slane %v3957, 4
      %v3971 = vrot.slane %v3959, 4
      %v3972 = vrot.slane %v3961, 4
      %v3973 = vrot.slane %v3963, 4
      %v3974 = vrot.slane %v3965, 4
      %v3975 = vrot.slane %v3967, 4
      %v3976 = vsel %vm3267, %v3968, %v3969
      %vm3977 = vcmask 15360
      %v3978 = vsel %vm3977, %v3953, %v3976
      %v3979 = vsel %vm3267, %v3970, %v3971
      %v3980 = vsel %vm3977, %v3957, %v3979
      %v3981 = vsel %vm3267, %v3972, %v3973
      %v3982 = vsel %vm3977, %v3961, %v3981
      %v3983 = vsel %vm3267, %v3974, %v3975
      %v3984 = vsel %vm3977, %v3965, %v3983
      %3989 = vst [vmem:[#allocation4 + $0x140] sm:$0xff] %v3978
      %3990 = vst [vmem:[#allocation4 + $0x148] sm:$0xff] %v3980
      %3991 = vst [vmem:[#allocation4 + $0x150] sm:$0xff] %v3982
      %3992 = vst [vmem:[#allocation4 + $0x158] sm:$0xff] %v3984
      %v3993 = vld [vmem:[#allocation3] sm:$0xff]
      %v3994 = vld [vmem:[#allocation3 + $0x8] sm:$0xf]
      %v3995 = vld [vmem:[#allocation3 + $0x10] sm:$0xff]
      %v3996 = vld [vmem:[#allocation3 + $0x18] sm:$0xf]
      %v3997 = vld [vmem:[#allocation3 + $0x20] sm:$0xff]
      %v3998 = vld [vmem:[#allocation3 + $0x28] sm:$0xf]
      %v3999 = vld [vmem:[#allocation3 + $0x30] sm:$0xff]
      %v4000 = vld [vmem:[#allocation3 + $0x38] sm:$0xf]
      %4001 = vrot.lane.b32.xlu0 %v3298, 127
      %v4002 = vpop.permute.xlu0 %4001
      %v4003 = vrot.slane %v4002, 4
      %vm4004 = vcmask 1039360
      %v4005 = vsel %vm4004, %v4003, %v4002
      %vm4006 = vcmp.ne.s16.totalorder %v4005, 0
      %vm4007 = vcmp.ne.s16.totalorder %v4003, 0
      %v4008 = vsel %vm4006, %v3993, 0
      %v4009 = vsel %vm4007, %v3994, 0
      %v4010 = vsel %vm4006, %v3995, 0
      %v4011 = vsel %vm4007, %v3996, 0
      %v4012 = vsel %vm4006, %v3997, 0
      %v4013 = vsel %vm4007, %v3998, 0
      %v4014 = vsel %vm4006, %v3999, 0
      %v4015 = vsel %vm4007, %v4000, 0
      %4024 = vrot.lane.b32.xlu0 %v4008, 1
      %v4025 = vpop.permute.xlu0 %4024
      %4026 = vrot.lane.b32.xlu0 %v4009, 1
      %v4027 = vpop.permute.xlu0 %4026
      %4028 = vrot.lane.b32.xlu0 %v4010, 1
      %v4029 = vpop.permute.xlu0 %4028
      %4030 = vrot.lane.b32.xlu0 %v4011, 1
      %v4031 = vpop.permute.xlu0 %4030
      %4032 = vrot.lane.b32.xlu0 %v4012, 1
      %v4033 = vpop.permute.xlu0 %4032
      %4034 = vrot.lane.b32.xlu0 %v4013, 1
      %v4035 = vpop.permute.xlu0 %4034
      %4036 = vrot.lane.b32.xlu0 %v4014, 1
      %v4037 = vpop.permute.xlu0 %4036
      %4038 = vrot.lane.b32.xlu0 %v4015, 1
      %v4039 = vpop.permute.xlu0 %4038
      %v4040 = vrot.slane %v4025, 4
      %v4041 = vrot.slane %v4027, 4
      %v4042 = vrot.slane %v4029, 4
      %v4043 = vrot.slane %v4031, 4
      %v4044 = vrot.slane %v4033, 4
      %v4045 = vrot.slane %v4035, 4
      %v4046 = vrot.slane %v4037, 4
      %v4047 = vrot.slane %v4039, 4
      %v4048 = vsel %vm3267, %v4040, %v4041
      %vm4049 = vcmask 7168
      %v4050 = vsel %vm4049, %v4025, %v4048
      %v4051 = vsel %vm3267, %v4042, %v4043
      %v4052 = vsel %vm4049, %v4029, %v4051
      %v4053 = vsel %vm3267, %v4044, %v4045
      %v4054 = vsel %vm4049, %v4033, %v4053
      %v4055 = vsel %vm3267, %v4046, %v4047
      %v4056 = vsel %vm4049, %v4037, %v4055
      %4061 = vst [vmem:[#allocation4 + $0x160] sm:$0xff] %v4050
      %4062 = vst [vmem:[#allocation4 + $0x168] sm:$0xff] %v4052
      %4063 = vst [vmem:[#allocation4 + $0x170] sm:$0xff] %v4054
      %4064 = vst [vmem:[#allocation4 + $0x178] sm:$0xff] %v4056
      %v4065 = vld [vmem:[#allocation3 + $0x4] sm:$0xff]
      %v4066 = vld [vmem:[#allocation3 + $0x14] sm:$0xff]
      %v4067 = vld [vmem:[#allocation3 + $0x24] sm:$0xff]
      %v4068 = vld [vmem:[#allocation3 + $0x34] sm:$0xff]
      %4069 = vst [vmem:[#allocation4 + $0x180] sm:$0xff] %v4065
      %4070 = vst [vmem:[#allocation4 + $0x188] sm:$0xff] %v4066
      %4071 = vst [vmem:[#allocation4 + $0x190] sm:$0xff] %v4067
      %4072 = vst [vmem:[#allocation4 + $0x198] sm:$0xff] %v4068
      %v4073 = vld [vmem:[#allocation3 + $0x4] sm:$0xff]
      %v4074 = vld [vmem:[#allocation3 + $0xc] sm:$0xf]
      %v4075 = vld [vmem:[#allocation3 + $0x14] sm:$0xff]
      %v4076 = vld [vmem:[#allocation3 + $0x1c] sm:$0xf]
      %v4077 = vld [vmem:[#allocation3 + $0x24] sm:$0xff]
      %v4078 = vld [vmem:[#allocation3 + $0x2c] sm:$0xf]
      %v4079 = vld [vmem:[#allocation3 + $0x34] sm:$0xff]
      %v4080 = vld [vmem:[#allocation3 + $0x3c] sm:$0xf]
      %4081 = vrot.lane.b32.xlu0 %v3433, 1
      %v4082 = vpop.permute.xlu0 %4081
      %v4083 = vrot.slane %v4082, 4
      %v4084 = vsel %vm4049, %v4083, %v4082
      %vm4085 = vcmp.ne.s16.totalorder %v4084, 0
      %vm4086 = vcmp.ne.s16.totalorder %v4083, 0
      %v4087 = vsel %vm4085, %v4073, 0
      %v4088 = vsel %vm4086, %v4074, 0
      %v4089 = vsel %vm4085, %v4075, 0
      %v4090 = vsel %vm4086, %v4076, 0
      %v4091 = vsel %vm4085, %v4077, 0
      %v4092 = vsel %vm4086, %v4078, 0
      %v4093 = vsel %vm4085, %v4079, 0
      %v4094 = vsel %vm4086, %v4080, 0
      %4103 = vrot.lane.b32.xlu0 %v4087, 127
      %v4104 = vpop.permute.xlu0 %4103
      %4105 = vrot.lane.b32.xlu0 %v4088, 127
      %v4106 = vpop.permute.xlu0 %4105
      %4107 = vrot.lane.b32.xlu0 %v4089, 127
      %v4108 = vpop.permute.xlu0 %4107
      %4109 = vrot.lane.b32.xlu0 %v4090, 127
      %v4110 = vpop.permute.xlu0 %4109
      %4111 = vrot.lane.b32.xlu0 %v4091, 127
      %v4112 = vpop.permute.xlu0 %4111
      %4113 = vrot.lane.b32.xlu0 %v4092, 127
      %v4114 = vpop.permute.xlu0 %4113
      %4115 = vrot.lane.b32.xlu0 %v4093, 127
      %v4116 = vpop.permute.xlu0 %4115
      %4117 = vrot.lane.b32.xlu0 %v4094, 127
      %v4118 = vpop.permute.xlu0 %4117
      %v4119 = vrot.slane %v4104, 4
      %v4120 = vrot.slane %v4106, 4
      %v4121 = vrot.slane %v4108, 4
      %v4122 = vrot.slane %v4110, 4
      %v4123 = vrot.slane %v4112, 4
      %v4124 = vrot.slane %v4114, 4
      %v4125 = vrot.slane %v4116, 4
      %v4126 = vrot.slane %v4118, 4
      %v4127 = vsel %vm3267, %v4119, %v4120
      %v4128 = vsel %vm4004, %v4104, %v4127
      %v4129 = vsel %vm3267, %v4121, %v4122
      %v4130 = vsel %vm4004, %v4108, %v4129
      %v4131 = vsel %vm3267, %v4123, %v4124
      %v4132 = vsel %vm4004, %v4112, %v4131
      %v4133 = vsel %vm3267, %v4125, %v4126
      %v4134 = vsel %vm4004, %v4116, %v4133
      %4139 = vst [vmem:[#allocation4 + $0x1a0] sm:$0xff] %v4128
      %4140 = vst [vmem:[#allocation4 + $0x1a8] sm:$0xff] %v4130
      %4141 = vst [vmem:[#allocation4 + $0x1b0] sm:$0xff] %v4132
      %4142 = vst [vmem:[#allocation4 + $0x1b8] sm:$0xff] %v4134
      %v4143 = vld [vmem:[#allocation3 + $0x4] sm:$0xff]
      %v4144 = vld [vmem:[#allocation3 + $0xc] sm:$0xf]
      %v4145 = vld [vmem:[#allocation3 + $0x14] sm:$0xff]
      %v4146 = vld [vmem:[#allocation3 + $0x1c] sm:$0xf]
      %v4147 = vld [vmem:[#allocation3 + $0x24] sm:$0xff]
      %v4148 = vld [vmem:[#allocation3 + $0x2c] sm:$0xf]
      %v4149 = vld [vmem:[#allocation3 + $0x34] sm:$0xff]
      %v4150 = vld [vmem:[#allocation3 + $0x3c] sm:$0xf]
      %4151 = vrot.lane.b32.xlu0 %v3511, 2
      %v4152 = vpop.permute.xlu0 %4151
      %v4153 = vrot.slane %v4152, 4
      %v4154 = vsel %vm3977, %v4153, %v4152
      %vm4155 = vcmp.ne.s16.totalorder %v4154, 0
      %vm4156 = vcmp.ne.s16.totalorder %v4153, 0
      %v4157 = vsel %vm4155, %v4143, 0
      %v4158 = vsel %vm4156, %v4144, 0
      %v4159 = vsel %vm4155, %v4145, 0
      %v4160 = vsel %vm4156, %v4146, 0
      %v4161 = vsel %vm4155, %v4147, 0
      %v4162 = vsel %vm4156, %v4148, 0
      %v4163 = vsel %vm4155, %v4149, 0
      %v4164 = vsel %vm4156, %v4150, 0
      %4173 = vrot.lane.b32.xlu0 %v4157, 126
      %v4174 = vpop.permute.xlu0 %4173
      %4175 = vrot.lane.b32.xlu0 %v4158, 126
      %v4176 = vpop.permute.xlu0 %4175
      %4177 = vrot.lane.b32.xlu0 %v4159, 126
      %v4178 = vpop.permute.xlu0 %4177
      %4179 = vrot.lane.b32.xlu0 %v4160, 126
      %v4180 = vpop.permute.xlu0 %4179
      %4181 = vrot.lane.b32.xlu0 %v4161, 126
      %v4182 = vpop.permute.xlu0 %4181
      %4183 = vrot.lane.b32.xlu0 %v4162, 126
      %v4184 = vpop.permute.xlu0 %4183
      %4185 = vrot.lane.b32.xlu0 %v4163, 126
      %v4186 = vpop.permute.xlu0 %4185
      %4187 = vrot.lane.b32.xlu0 %v4164, 126
      %v4188 = vpop.permute.xlu0 %4187
      %v4189 = vrot.slane %v4174, 4
      %v4190 = vrot.slane %v4176, 4
      %v4191 = vrot.slane %v4178, 4
      %v4192 = vrot.slane %v4180, 4
      %v4193 = vrot.slane %v4182, 4
      %v4194 = vrot.slane %v4184, 4
      %v4195 = vrot.slane %v4186, 4
      %v4196 = vrot.slane %v4188, 4
      %v4197 = vsel %vm3267, %v4189, %v4190
      %v4198 = vsel %vm3932, %v4174, %v4197
      %v4199 = vsel %vm3267, %v4191, %v4192
      %v4200 = vsel %vm3932, %v4178, %v4199
      %v4201 = vsel %vm3267, %v4193, %v4194
      %v4202 = vsel %vm3932, %v4182, %v4201
      %v4203 = vsel %vm3267, %v4195, %v4196
      %v4204 = vsel %vm3932, %v4186, %v4203
      %4209 = vst [vmem:[#allocation4 + $0x1c0] sm:$0xff] %v4198
      %4210 = vst [vmem:[#allocation4 + $0x1c8] sm:$0xff] %v4200
      %4211 = vst [vmem:[#allocation4 + $0x1d0] sm:$0xff] %v4202
      %4212 = vst [vmem:[#allocation4 + $0x1d8] sm:$0xff] %v4204
      %v4213 = vld [vmem:[#allocation3 + $0x4] sm:$0xff]
      %v4214 = vld [vmem:[#allocation3 + $0xc] sm:$0xf]
      %v4215 = vld [vmem:[#allocation3 + $0x14] sm:$0xff]
      %v4216 = vld [vmem:[#allocation3 + $0x1c] sm:$0xf]
      %v4217 = vld [vmem:[#allocation3 + $0x24] sm:$0xff]
      %v4218 = vld [vmem:[#allocation3 + $0x2c] sm:$0xf]
      %v4219 = vld [vmem:[#allocation3 + $0x34] sm:$0xff]
      %v4220 = vld [vmem:[#allocation3 + $0x3c] sm:$0xf]
      %4221 = vrot.lane.b32.xlu0 %v3219, 14
      %v4222 = vpop.permute.xlu0 %4221
      %v4223 = vrot.slane %v4222, 4
      %v4224 = vsel %vm3905, %v4223, %v4222
      %vm4225 = vcmp.ne.s16.totalorder %v4224, 0
      %vm4226 = vcmp.ne.s16.totalorder %v4223, 0
      %v4227 = vsel %vm4225, %v4213, 0
      %v4228 = vsel %vm4226, %v4214, 0
      %v4229 = vsel %vm4225, %v4215, 0
      %v4230 = vsel %vm4226, %v4216, 0
      %v4231 = vsel %vm4225, %v4217, 0
      %v4232 = vsel %vm4226, %v4218, 0
      %v4233 = vsel %vm4225, %v4219, 0
      %v4234 = vsel %vm4226, %v4220, 0
      %4243 = vrot.lane.b32.xlu0 %v4227, 114
      %v4244 = vpop.permute.xlu0 %4243
      %4245 = vrot.lane.b32.xlu0 %v4228, 114
      %v4246 = vpop.permute.xlu0 %4245
      %4247 = vrot.lane.b32.xlu0 %v4229, 114
      %v4248 = vpop.permute.xlu0 %4247
      %4249 = vrot.lane.b32.xlu0 %v4230, 114
      %v4250 = vpop.permute.xlu0 %4249
      %4251 = vrot.lane.b32.xlu0 %v4231, 114
      %v4252 = vpop.permute.xlu0 %4251
      %4253 = vrot.lane.b32.xlu0 %v4232, 114
      %v4254 = vpop.permute.xlu0 %4253
      %4255 = vrot.lane.b32.xlu0 %v4233, 114
      %v4256 = vpop.permute.xlu0 %4255
      %4257 = vrot.lane.b32.xlu0 %v4234, 114
      %v4258 = vpop.permute.xlu0 %4257
      %v4259 = vrot.slane %v4244, 4
      %v4260 = vrot.slane %v4246, 4
      %v4261 = vrot.slane %v4248, 4
      %v4262 = vrot.slane %v4250, 4
      %v4263 = vrot.slane %v4252, 4
      %v4264 = vrot.slane %v4254, 4
      %v4265 = vrot.slane %v4256, 4
      %v4266 = vrot.slane %v4258, 4
      %v4267 = vsel %vm3267, %v4259, %v4260
      %v4268 = vsel %vm3860, %v4244, %v4267
      %v4269 = vsel %vm3267, %v4261, %v4262
      %v4270 = vsel %vm3860, %v4248, %v4269
      %v4271 = vsel %vm3267, %v4263, %v4264
      %v4272 = vsel %vm3860, %v4252, %v4271
      %v4273 = vsel %vm3267, %v4265, %v4266
      %v4274 = vsel %vm3860, %v4256, %v4273
      %4279 = vst [vmem:[#allocation4 + $0x1e0] sm:$0xff] %v4268
      %4280 = vst [vmem:[#allocation4 + $0x1e8] sm:$0xff] %v4270
      %4281 = vst [vmem:[#allocation4 + $0x1f0] sm:$0xff] %v4272
      %4282 = vst [vmem:[#allocation4 + $0x1f8] sm:$0xff] %v4274
      %v4283 = vld [vmem:[#allocation3 + $0x4] sm:$0xff]
      %v4284 = vld [vmem:[#allocation3 + $0xc] sm:$0xf]
      %v4285 = vld [vmem:[#allocation3 + $0x14] sm:$0xff]
      %v4286 = vld [vmem:[#allocation3 + $0x1c] sm:$0xf]
      %v4287 = vld [vmem:[#allocation3 + $0x24] sm:$0xff]
      %v4288 = vld [vmem:[#allocation3 + $0x2c] sm:$0xf]
      %v4289 = vld [vmem:[#allocation3 + $0x34] sm:$0xff]
      %v4290 = vld [vmem:[#allocation3 + $0x3c] sm:$0xf]
      %4291 = vrot.lane.b32.xlu0 %v3298, 15
      %v4292 = vpop.permute.xlu0 %4291
      %v4293 = vrot.slane %v4292, 4
      %v4294 = vsel %vm3833, %v4293, %v4292
      %vm4295 = vcmp.ne.s16.totalorder %v4294, 0
      %vm4296 = vcmp.ne.s16.totalorder %v4293, 0
      %v4297 = vsel %vm4295, %v4283, 0
      %v4298 = vsel %vm4296, %v4284, 0
      %v4299 = vsel %vm4295, %v4285, 0
      %v4300 = vsel %vm4296, %v4286, 0
      %v4301 = vsel %vm4295, %v4287, 0
      %v4302 = vsel %vm4296, %v4288, 0
      %v4303 = vsel %vm4295, %v4289, 0
      %v4304 = vsel %vm4296, %v4290, 0
      %4313 = vrot.lane.b32.xlu0 %v4297, 113
      %v4314 = vpop.permute.xlu0 %4313
      %4315 = vrot.lane.b32.xlu0 %v4298, 113
      %v4316 = vpop.permute.xlu0 %4315
      %4317 = vrot.lane.b32.xlu0 %v4299, 113
      %v4318 = vpop.permute.xlu0 %4317
      %4319 = vrot.lane.b32.xlu0 %v4300, 113
      %v4320 = vpop.permute.xlu0 %4319
      %4321 = vrot.lane.b32.xlu0 %v4301, 113
      %v4322 = vpop.permute.xlu0 %4321
      %4323 = vrot.lane.b32.xlu0 %v4302, 113
      %v4324 = vpop.permute.xlu0 %4323
      %4325 = vrot.lane.b32.xlu0 %v4303, 113
      %v4326 = vpop.permute.xlu0 %4325
      %4327 = vrot.lane.b32.xlu0 %v4304, 113
      %v4328 = vpop.permute.xlu0 %4327
      %v4329 = vrot.slane %v4314, 4
      %v4330 = vrot.slane %v4316, 4
      %v4331 = vrot.slane %v4318, 4
      %v4332 = vrot.slane %v4320, 4
      %v4333 = vrot.slane %v4322, 4
      %v4334 = vrot.slane %v4324, 4
      %v4335 = vrot.slane %v4326, 4
      %v4336 = vrot.slane %v4328, 4
      %v4337 = vsel %vm3267, %v4329, %v4330
      %v4338 = vsel %vm3788, %v4314, %v4337
      %v4339 = vsel %vm3267, %v4331, %v4332
      %v4340 = vsel %vm3788, %v4318, %v4339
      %v4341 = vsel %vm3267, %v4333, %v4334
      %v4342 = vsel %vm3788, %v4322, %v4341
      %v4343 = vsel %vm3267, %v4335, %v4336
      %v4344 = vsel %vm3788, %v4326, %v4343
      %4349 = vst [vmem:[#allocation4 + $0x200] sm:$0xff] %v4338
      %4350 = vst [vmem:[#allocation4 + $0x208] sm:$0xff] %v4340
      %4351 = vst [vmem:[#allocation4 + $0x210] sm:$0xff] %v4342
      %4352 = vst [vmem:[#allocation4 + $0x218] sm:$0xff] %v4344
      %v4353 = vld [vmem:[#allocation3 + $0x4] sm:$0xff]
      %v4354 = vld [vmem:[#allocation3 + $0xc] sm:$0xf]
      %v4355 = vld [vmem:[#allocation3 + $0x14] sm:$0xff]
      %v4356 = vld [vmem:[#allocation3 + $0x1c] sm:$0xf]
      %v4357 = vld [vmem:[#allocation3 + $0x24] sm:$0xff]
      %v4358 = vld [vmem:[#allocation3 + $0x2c] sm:$0xf]
      %v4359 = vld [vmem:[#allocation3 + $0x34] sm:$0xff]
      %v4360 = vld [vmem:[#allocation3 + $0x3c] sm:$0xf]
      %4369 = vrot.lane.b32.xlu0 %v4353, 112
      %v4370 = vpop.permute.xlu0 %4369
      %4371 = vrot.lane.b32.xlu0 %v4354, 112
      %v4372 = vpop.permute.xlu0 %4371
      %4373 = vrot.lane.b32.xlu0 %v4355, 112
      %v4374 = vpop.permute.xlu0 %4373
      %4375 = vrot.lane.b32.xlu0 %v4356, 112
      %v4376 = vpop.permute.xlu0 %4375
      %4377 = vrot.lane.b32.xlu0 %v4357, 112
      %v4378 = vpop.permute.xlu0 %4377
      %4379 = vrot.lane.b32.xlu0 %v4358, 112
      %v4380 = vpop.permute.xlu0 %4379
      %4381 = vrot.lane.b32.xlu0 %v4359, 112
      %v4382 = vpop.permute.xlu0 %4381
      %4383 = vrot.lane.b32.xlu0 %v4360, 112
      %v4384 = vpop.permute.xlu0 %4383
      %v4385 = vrot.slane %v4370, 4
      %v4386 = vrot.slane %v4372, 4
      %v4387 = vrot.slane %v4374, 4
      %v4388 = vrot.slane %v4376, 4
      %v4389 = vrot.slane %v4378, 4
      %v4390 = vrot.slane %v4380, 4
      %v4391 = vrot.slane %v4382, 4
      %v4392 = vrot.slane %v4384, 4
      %v4393 = vsel %vm3267, %v4385, %v4386
      %vm4394 = vcmask 916480
      %v4395 = vsel %vm4394, %v4370, %v4393
      %v4396 = vsel %vm3267, %v4387, %v4388
      %v4397 = vsel %vm4394, %v4374, %v4396
      %v4398 = vsel %vm3267, %v4389, %v4390
      %v4399 = vsel %vm4394, %v4378, %v4398
      %v4400 = vsel %vm3267, %v4391, %v4392
      %v4401 = vsel %vm4394, %v4382, %v4400
      %4406 = vst [vmem:[#allocation4 + $0x220] sm:$0xff] %v4395
      %4407 = vst [vmem:[#allocation4 + $0x228] sm:$0xff] %v4397
      %4408 = vst [vmem:[#allocation4 + $0x230] sm:$0xff] %v4399
      %4409 = vst [vmem:[#allocation4 + $0x238] sm:$0xff] %v4401
      %v4410 = vld [vmem:[#allocation3 + $0x4] sm:$0xff]
      %v4411 = vld [vmem:[#allocation3 + $0xc] sm:$0xf]
      %v4412 = vld [vmem:[#allocation3 + $0x14] sm:$0xff]
      %v4413 = vld [vmem:[#allocation3 + $0x1c] sm:$0xf]
      %v4414 = vld [vmem:[#allocation3 + $0x24] sm:$0xff]
      %v4415 = vld [vmem:[#allocation3 + $0x2c] sm:$0xf]
      %v4416 = vld [vmem:[#allocation3 + $0x34] sm:$0xff]
      %v4417 = vld [vmem:[#allocation3 + $0x3c] sm:$0xf]
      %4418 = vrot.lane.b32.xlu0 %v3433, 17
      %v4419 = vpop.permute.xlu0 %4418
      %v4420 = vrot.slane %v4419, 4
      %v4421 = vsel %vm3704, %v4420, %v4419
      %vm4422 = vcmp.ne.s16.totalorder %v4421, 0
      %vm4423 = vcmp.ne.s16.totalorder %v4420, 0
      %v4424 = vsel %vm4422, %v4410, 0
      %v4425 = vsel %vm4423, %v4411, 0
      %v4426 = vsel %vm4422, %v4412, 0
      %v4427 = vsel %vm4423, %v4413, 0
      %v4428 = vsel %vm4422, %v4414, 0
      %v4429 = vsel %vm4423, %v4415, 0
      %v4430 = vsel %vm4422, %v4416, 0
      %v4431 = vsel %vm4423, %v4417, 0
      %4440 = vrot.lane.b32.xlu0 %v4424, 111
      %v4441 = vpop.permute.xlu0 %4440
      %4442 = vrot.lane.b32.xlu0 %v4425, 111
      %v4443 = vpop.permute.xlu0 %4442
      %4444 = vrot.lane.b32.xlu0 %v4426, 111
      %v4445 = vpop.permute.xlu0 %4444
      %4446 = vrot.lane.b32.xlu0 %v4427, 111
      %v4447 = vpop.permute.xlu0 %4446
      %4448 = vrot.lane.b32.xlu0 %v4428, 111
      %v4449 = vpop.permute.xlu0 %4448
      %4450 = vrot.lane.b32.xlu0 %v4429, 111
      %v4451 = vpop.permute.xlu0 %4450
      %4452 = vrot.lane.b32.xlu0 %v4430, 111
      %v4453 = vpop.permute.xlu0 %4452
      %4454 = vrot.lane.b32.xlu0 %v4431, 111
      %v4455 = vpop.permute.xlu0 %4454
      %v4456 = vrot.slane %v4441, 4
      %v4457 = vrot.slane %v4443, 4
      %v4458 = vrot.slane %v4445, 4
      %v4459 = vrot.slane %v4447, 4
      %v4460 = vrot.slane %v4449, 4
      %v4461 = vrot.slane %v4451, 4
      %v4462 = vrot.slane %v4453, 4
      %v4463 = vrot.slane %v4455, 4
      %v4464 = vsel %vm3267, %v4456, %v4457
      %v4465 = vsel %vm3659, %v4441, %v4464
      %v4466 = vsel %vm3267, %v4458, %v4459
      %v4467 = vsel %vm3659, %v4445, %v4466
      %v4468 = vsel %vm3267, %v4460, %v4461
      %v4469 = vsel %vm3659, %v4449, %v4468
      %v4470 = vsel %vm3267, %v4462, %v4463
      %v4471 = vsel %vm3659, %v4453, %v4470
      %4476 = vst [vmem:[#allocation4 + $0x240] sm:$0xff] %v4465
      %4477 = vst [vmem:[#allocation4 + $0x248] sm:$0xff] %v4467
      %4478 = vst [vmem:[#allocation4 + $0x250] sm:$0xff] %v4469
      %4479 = vst [vmem:[#allocation4 + $0x258] sm:$0xff] %v4471
      %v4480 = vld [vmem:[#allocation3 + $0x4] sm:$0xff]
      %v4481 = vld [vmem:[#allocation3 + $0xc] sm:$0xf]
      %v4482 = vld [vmem:[#allocation3 + $0x14] sm:$0xff]
      %v4483 = vld [vmem:[#allocation3 + $0x1c] sm:$0xf]
      %v4484 = vld [vmem:[#allocation3 + $0x24] sm:$0xff]
      %v4485 = vld [vmem:[#allocation3 + $0x2c] sm:$0xf]
      %v4486 = vld [vmem:[#allocation3 + $0x34] sm:$0xff]
      %v4487 = vld [vmem:[#allocation3 + $0x3c] sm:$0xf]
      %4488 = vrot.lane.b32.xlu0 %v3511, 18
      %v4489 = vpop.permute.xlu0 %4488
      %v4490 = vrot.slane %v4489, 4
      %v4491 = vsel %vm3632, %v4490, %v4489
      %vm4492 = vcmp.ne.s16.totalorder %v4491, 0
      %vm4493 = vcmp.ne.s16.totalorder %v4490, 0
      %v4494 = vsel %vm4492, %v4480, 0
      %v4495 = vsel %vm4493, %v4481, 0
      %v4496 = vsel %vm4492, %v4482, 0
      %v4497 = vsel %vm4493, %v4483, 0
      %v4498 = vsel %vm4492, %v4484, 0
      %v4499 = vsel %vm4493, %v4485, 0
      %v4500 = vsel %vm4492, %v4486, 0
      %v4501 = vsel %vm4493, %v4487, 0
      %4510 = vrot.lane.b32.xlu0 %v4494, 110
      %v4511 = vpop.permute.xlu0 %4510
      %4512 = vrot.lane.b32.xlu0 %v4495, 110
      %v4513 = vpop.permute.xlu0 %4512
      %4514 = vrot.lane.b32.xlu0 %v4496, 110
      %v4515 = vpop.permute.xlu0 %4514
      %4516 = vrot.lane.b32.xlu0 %v4497, 110
      %v4517 = vpop.permute.xlu0 %4516
      %4518 = vrot.lane.b32.xlu0 %v4498, 110
      %v4519 = vpop.permute.xlu0 %4518
      %4520 = vrot.lane.b32.xlu0 %v4499, 110
      %v4521 = vpop.permute.xlu0 %4520
      %4522 = vrot.lane.b32.xlu0 %v4500, 110
      %v4523 = vpop.permute.xlu0 %4522
      %4524 = vrot.lane.b32.xlu0 %v4501, 110
      %v4525 = vpop.permute.xlu0 %4524
      %v4526 = vrot.slane %v4511, 4
      %v4527 = vrot.slane %v4513, 4
      %v4528 = vrot.slane %v4515, 4
      %v4529 = vrot.slane %v4517, 4
      %v4530 = vrot.slane %v4519, 4
      %v4531 = vrot.slane %v4521, 4
      %v4532 = vrot.slane %v4523, 4
      %v4533 = vrot.slane %v4525, 4
      %v4534 = vsel %vm3267, %v4526, %v4527
      %v4535 = vsel %vm3587, %v4511, %v4534
      %v4536 = vsel %vm3267, %v4528, %v4529
      %v4537 = vsel %vm3587, %v4515, %v4536
      %v4538 = vsel %vm3267, %v4530, %v4531
      %v4539 = vsel %vm3587, %v4519, %v4538
      %v4540 = vsel %vm3267, %v4532, %v4533
      %v4541 = vsel %vm3587, %v4523, %v4540
      %4546 = vst [vmem:[#allocation4 + $0x260] sm:$0xff] %v4535
      %4547 = vst [vmem:[#allocation4 + $0x268] sm:$0xff] %v4537
      %4548 = vst [vmem:[#allocation4 + $0x270] sm:$0xff] %v4539
      %4549 = vst [vmem:[#allocation4 + $0x278] sm:$0xff] %v4541
      %v4550 = vld [vmem:[#allocation3 + $0x4] sm:$0xff]
      %v4551 = vld [vmem:[#allocation3 + $0xc] sm:$0xf]
      %v4552 = vld [vmem:[#allocation3 + $0x14] sm:$0xff]
      %v4553 = vld [vmem:[#allocation3 + $0x1c] sm:$0xf]
      %v4554 = vld [vmem:[#allocation3 + $0x24] sm:$0xff]
      %v4555 = vld [vmem:[#allocation3 + $0x2c] sm:$0xf]
      %v4556 = vld [vmem:[#allocation3 + $0x34] sm:$0xff]
      %v4557 = vld [vmem:[#allocation3 + $0x3c] sm:$0xf]
      %4558 = vrot.lane.b32.xlu0 %v3219, 30
      %v4559 = vpop.permute.xlu0 %4558
      %v4560 = vrot.slane %v4559, 4
      %v4561 = vsel %vm3560, %v4560, %v4559
      %vm4562 = vcmp.ne.s16.totalorder %v4561, 0
      %vm4563 = vcmp.ne.s16.totalorder %v4560, 0
      %v4564 = vsel %vm4562, %v4550, 0
      %v4565 = vsel %vm4563, %v4551, 0
      %v4566 = vsel %vm4562, %v4552, 0
      %v4567 = vsel %vm4563, %v4553, 0
      %v4568 = vsel %vm4562, %v4554, 0
      %v4569 = vsel %vm4563, %v4555, 0
      %v4570 = vsel %vm4562, %v4556, 0
      %v4571 = vsel %vm4563, %v4557, 0
      %4580 = vrot.lane.b32.xlu0 %v4564, 98
      %v4581 = vpop.permute.xlu0 %4580
      %4582 = vrot.lane.b32.xlu0 %v4565, 98
      %v4583 = vpop.permute.xlu0 %4582
      %4584 = vrot.lane.b32.xlu0 %v4566, 98
      %v4585 = vpop.permute.xlu0 %4584
      %4586 = vrot.lane.b32.xlu0 %v4567, 98
      %v4587 = vpop.permute.xlu0 %4586
      %4588 = vrot.lane.b32.xlu0 %v4568, 98
      %v4589 = vpop.permute.xlu0 %4588
      %4590 = vrot.lane.b32.xlu0 %v4569, 98
      %v4591 = vpop.permute.xlu0 %4590
      %4592 = vrot.lane.b32.xlu0 %v4570, 98
      %v4593 = vpop.permute.xlu0 %4592
      %4594 = vrot.lane.b32.xlu0 %v4571, 98
      %v4595 = vpop.permute.xlu0 %4594
      %v4596 = vrot.slane %v4581, 4
      %v4597 = vrot.slane %v4583, 4
      %v4598 = vrot.slane %v4585, 4
      %v4599 = vrot.slane %v4587, 4
      %v4600 = vrot.slane %v4589, 4
      %v4601 = vrot.slane %v4591, 4
      %v4602 = vrot.slane %v4593, 4
      %v4603 = vrot.slane %v4595, 4
      %v4604 = vsel %vm3267, %v4596, %v4597
      %v4605 = vsel %vm3515, %v4581, %v4604
      %v4606 = vsel %vm3267, %v4598, %v4599
      %v4607 = vsel %vm3515, %v4585, %v4606
      %v4608 = vsel %vm3267, %v4600, %v4601
      %v4609 = vsel %vm3515, %v4589, %v4608
      %v4610 = vsel %vm3267, %v4602, %v4603
      %v4611 = vsel %vm3515, %v4593, %v4610
      %4616 = vst [vmem:[#allocation4 + $0x280] sm:$0xff] %v4605
      %4617 = vst [vmem:[#allocation4 + $0x288] sm:$0xff] %v4607
      %4618 = vst [vmem:[#allocation4 + $0x290] sm:$0xff] %v4609
      %4619 = vst [vmem:[#allocation4 + $0x298] sm:$0xff] %v4611
      %v4620 = vld [vmem:[#allocation3 + $0x4] sm:$0xff]
      %v4621 = vld [vmem:[#allocation3 + $0xc] sm:$0xf]
      %v4622 = vld [vmem:[#allocation3 + $0x14] sm:$0xff]
      %v4623 = vld [vmem:[#allocation3 + $0x1c] sm:$0xf]
      %v4624 = vld [vmem:[#allocation3 + $0x24] sm:$0xff]
      %v4625 = vld [vmem:[#allocation3 + $0x2c] sm:$0xf]
      %v4626 = vld [vmem:[#allocation3 + $0x34] sm:$0xff]
      %v4627 = vld [vmem:[#allocation3 + $0x3c] sm:$0xf]
      %4628 = vrot.lane.b32.xlu0 %v3298, 31
      %v4629 = vpop.permute.xlu0 %4628
      %v4630 = vrot.slane %v4629, 4
      %v4631 = vsel %vm3482, %v4630, %v4629
      %vm4632 = vcmp.ne.s16.totalorder %v4631, 0
      %vm4633 = vcmp.ne.s16.totalorder %v4630, 0
      %v4634 = vsel %vm4632, %v4620, 0
      %v4635 = vsel %vm4633, %v4621, 0
      %v4636 = vsel %vm4632, %v4622, 0
      %v4637 = vsel %vm4633, %v4623, 0
      %v4638 = vsel %vm4632, %v4624, 0
      %v4639 = vsel %vm4633, %v4625, 0
      %v4640 = vsel %vm4632, %v4626, 0
      %v4641 = vsel %vm4633, %v4627, 0
      %4650 = vrot.lane.b32.xlu0 %v4634, 97
      %v4651 = vpop.permute.xlu0 %4650
      %4652 = vrot.lane.b32.xlu0 %v4635, 97
      %v4653 = vpop.permute.xlu0 %4652
      %4654 = vrot.lane.b32.xlu0 %v4636, 97
      %v4655 = vpop.permute.xlu0 %4654
      %4656 = vrot.lane.b32.xlu0 %v4637, 97
      %v4657 = vpop.permute.xlu0 %4656
      %4658 = vrot.lane.b32.xlu0 %v4638, 97
      %v4659 = vpop.permute.xlu0 %4658
      %4660 = vrot.lane.b32.xlu0 %v4639, 97
      %v4661 = vpop.permute.xlu0 %4660
      %4662 = vrot.lane.b32.xlu0 %v4640, 97
      %v4663 = vpop.permute.xlu0 %4662
      %4664 = vrot.lane.b32.xlu0 %v4641, 97
      %v4665 = vpop.permute.xlu0 %4664
      %v4666 = vrot.slane %v4651, 4
      %v4667 = vrot.slane %v4653, 4
      %v4668 = vrot.slane %v4655, 4
      %v4669 = vrot.slane %v4657, 4
      %v4670 = vrot.slane %v4659, 4
      %v4671 = vrot.slane %v4661, 4
      %v4672 = vrot.slane %v4663, 4
      %v4673 = vrot.slane %v4665, 4
      %v4674 = vsel %vm3267, %v4666, %v4667
      %v4675 = vsel %vm3437, %v4651, %v4674
      %v4676 = vsel %vm3267, %v4668, %v4669
      %v4677 = vsel %vm3437, %v4655, %v4676
      %v4678 = vsel %vm3267, %v4670, %v4671
      %v4679 = vsel %vm3437, %v4659, %v4678
      %v4680 = vsel %vm3267, %v4672, %v4673
      %v4681 = vsel %vm3437, %v4663, %v4680
      %4686 = vst [vmem:[#allocation4 + $0x2a0] sm:$0xff] %v4675
      %4687 = vst [vmem:[#allocation4 + $0x2a8] sm:$0xff] %v4677
      %4688 = vst [vmem:[#allocation4 + $0x2b0] sm:$0xff] %v4679
      %4689 = vst [vmem:[#allocation4 + $0x2b8] sm:$0xff] %v4681
      %v4690 = vld [vmem:[#allocation3 + $0x4] sm:$0xff]
      %v4691 = vld [vmem:[#allocation3 + $0xc] sm:$0xf]
      %v4692 = vld [vmem:[#allocation3 + $0x14] sm:$0xff]
      %v4693 = vld [vmem:[#allocation3 + $0x1c] sm:$0xf]
      %v4694 = vld [vmem:[#allocation3 + $0x24] sm:$0xff]
      %v4695 = vld [vmem:[#allocation3 + $0x2c] sm:$0xf]
      %v4696 = vld [vmem:[#allocation3 + $0x34] sm:$0xff]
      %v4697 = vld [vmem:[#allocation3 + $0x3c] sm:$0xf]
      %4706 = vrot.lane.b32.xlu0 %v4690, 96
      %v4707 = vpop.permute.xlu0 %4706
      %4708 = vrot.lane.b32.xlu0 %v4691, 96
      %v4709 = vpop.permute.xlu0 %4708
      %4710 = vrot.lane.b32.xlu0 %v4692, 96
      %v4711 = vpop.permute.xlu0 %4710
      %4712 = vrot.lane.b32.xlu0 %v4693, 96
      %v4713 = vpop.permute.xlu0 %4712
      %4714 = vrot.lane.b32.xlu0 %v4694, 96
      %v4715 = vpop.permute.xlu0 %4714
      %4716 = vrot.lane.b32.xlu0 %v4695, 96
      %v4717 = vpop.permute.xlu0 %4716
      %4718 = vrot.lane.b32.xlu0 %v4696, 96
      %v4719 = vpop.permute.xlu0 %4718
      %4720 = vrot.lane.b32.xlu0 %v4697, 96
      %v4721 = vpop.permute.xlu0 %4720
      %v4722 = vrot.slane %v4707, 4
      %v4723 = vrot.slane %v4709, 4
      %v4724 = vrot.slane %v4711, 4
      %v4725 = vrot.slane %v4713, 4
      %v4726 = vrot.slane %v4715, 4
      %v4727 = vrot.slane %v4717, 4
      %v4728 = vrot.slane %v4719, 4
      %v4729 = vrot.slane %v4721, 4
      %v4730 = vsel %vm3267, %v4722, %v4723
      %vm4731 = vcmask 785408
      %v4732 = vsel %vm4731, %v4707, %v4730
      %v4733 = vsel %vm3267, %v4724, %v4725
      %v4734 = vsel %vm4731, %v4711, %v4733
      %v4735 = vsel %vm3267, %v4726, %v4727
      %v4736 = vsel %vm4731, %v4715, %v4735
      %v4737 = vsel %vm3267, %v4728, %v4729
      %v4738 = vsel %vm4731, %v4719, %v4737
      %4743 = vst [vmem:[#allocation4 + $0x2c0] sm:$0xff] %v4732
      %4744 = vst [vmem:[#allocation4 + $0x2c8] sm:$0xff] %v4734
      %4745 = vst [vmem:[#allocation4 + $0x2d0] sm:$0xff] %v4736
      %4746 = vst [vmem:[#allocation4 + $0x2d8] sm:$0xff] %v4738
      %v4747 = vld [vmem:[#allocation3 + $0x4] sm:$0xff]
      %v4748 = vld [vmem:[#allocation3 + $0xc] sm:$0xf]
      %v4749 = vld [vmem:[#allocation3 + $0x14] sm:$0xff]
      %v4750 = vld [vmem:[#allocation3 + $0x1c] sm:$0xf]
      %v4751 = vld [vmem:[#allocation3 + $0x24] sm:$0xff]
      %v4752 = vld [vmem:[#allocation3 + $0x2c] sm:$0xf]
      %v4753 = vld [vmem:[#allocation3 + $0x34] sm:$0xff]
      %v4754 = vld [vmem:[#allocation3 + $0x3c] sm:$0xf]
      %4755 = vrot.lane.b32.xlu0 %v3433, 33
      %v4756 = vpop.permute.xlu0 %4755
      %v4757 = vrot.slane %v4756, 4
      %v4758 = vsel %vm3347, %v4757, %v4756
      %vm4759 = vcmp.ne.s16.totalorder %v4758, 0
      %vm4760 = vcmp.ne.s16.totalorder %v4757, 0
      %v4761 = vsel %vm4759, %v4747, 0
      %v4762 = vsel %vm4760, %v4748, 0
      %v4763 = vsel %vm4759, %v4749, 0
      %v4764 = vsel %vm4760, %v4750, 0
      %v4765 = vsel %vm4759, %v4751, 0
      %v4766 = vsel %vm4760, %v4752, 0
      %v4767 = vsel %vm4759, %v4753, 0
      %v4768 = vsel %vm4760, %v4754, 0
      %4777 = vrot.lane.b32.xlu0 %v4761, 95
      %v4778 = vpop.permute.xlu0 %4777
      %4779 = vrot.lane.b32.xlu0 %v4762, 95
      %v4780 = vpop.permute.xlu0 %4779
      %4781 = vrot.lane.b32.xlu0 %v4763, 95
      %v4782 = vpop.permute.xlu0 %4781
      %4783 = vrot.lane.b32.xlu0 %v4764, 95
      %v4784 = vpop.permute.xlu0 %4783
      %4785 = vrot.lane.b32.xlu0 %v4765, 95
      %v4786 = vpop.permute.xlu0 %4785
      %4787 = vrot.lane.b32.xlu0 %v4766, 95
      %v4788 = vpop.permute.xlu0 %4787
      %4789 = vrot.lane.b32.xlu0 %v4767, 95
      %v4790 = vpop.permute.xlu0 %4789
      %4791 = vrot.lane.b32.xlu0 %v4768, 95
      %v4792 = vpop.permute.xlu0 %4791
      %v4793 = vrot.slane %v4778, 4
      %v4794 = vrot.slane %v4780, 4
      %v4795 = vrot.slane %v4782, 4
      %v4796 = vrot.slane %v4784, 4
      %v4797 = vrot.slane %v4786, 4
      %v4798 = vrot.slane %v4788, 4
      %v4799 = vrot.slane %v4790, 4
      %v4800 = vrot.slane %v4792, 4
      %v4801 = vsel %vm3267, %v4793, %v4794
      %v4802 = vsel %vm3302, %v4778, %v4801
      %v4803 = vsel %vm3267, %v4795, %v4796
      %v4804 = vsel %vm3302, %v4782, %v4803
      %v4805 = vsel %vm3267, %v4797, %v4798
      %v4806 = vsel %vm3302, %v4786, %v4805
      %v4807 = vsel %vm3267, %v4799, %v4800
      %v4808 = vsel %vm3302, %v4790, %v4807
      %4813 = vst [vmem:[#allocation4 + $0x2e0] sm:$0xff] %v4802
      %4814 = vst [vmem:[#allocation4 + $0x2e8] sm:$0xff] %v4804
      %4815 = vst [vmem:[#allocation4 + $0x2f0] sm:$0xff] %v4806
      %4816 = vst [vmem:[#allocation4 + $0x2f8] sm:$0xff] %v4808
      %v4817 = vld [vmem:[#allocation3 + $0x4] sm:$0xff]
      %v4818 = vld [vmem:[#allocation3 + $0xc] sm:$0xf]
      %v4819 = vld [vmem:[#allocation3 + $0x14] sm:$0xff]
      %v4820 = vld [vmem:[#allocation3 + $0x1c] sm:$0xf]
      %v4821 = vld [vmem:[#allocation3 + $0x24] sm:$0xff]
      %v4822 = vld [vmem:[#allocation3 + $0x2c] sm:$0xf]
      %v4823 = vld [vmem:[#allocation3 + $0x34] sm:$0xff]
      %v4824 = vld [vmem:[#allocation3 + $0x3c] sm:$0xf]
      %4825 = vrot.lane.b32.xlu0 %v3511, 34
      %v4826 = vpop.permute.xlu0 %4825
      %v4827 = vrot.slane %v4826, 4
      %v4828 = vsel %vm3269, %v4827, %v4826
      %vm4829 = vcmp.ne.s16.totalorder %v4828, 0
      %vm4830 = vcmp.ne.s16.totalorder %v4827, 0
      %v4831 = vsel %vm4829, %v4817, 0
      %v4832 = vsel %vm4830, %v4818, 0
      %v4833 = vsel %vm4829, %v4819, 0
      %v4834 = vsel %vm4830, %v4820, 0
      %v4835 = vsel %vm4829, %v4821, 0
      %v4836 = vsel %vm4830, %v4822, 0
      %v4837 = vsel %vm4829, %v4823, 0
      %v4838 = vsel %vm4830, %v4824, 0
      %4847 = vrot.lane.b32.xlu0 %v4831, 94
      %v4848 = vpop.permute.xlu0 %4847
      %4849 = vrot.lane.b32.xlu0 %v4832, 94
      %v4850 = vpop.permute.xlu0 %4849
      %4851 = vrot.lane.b32.xlu0 %v4833, 94
      %v4852 = vpop.permute.xlu0 %4851
      %4853 = vrot.lane.b32.xlu0 %v4834, 94
      %v4854 = vpop.permute.xlu0 %4853
      %4855 = vrot.lane.b32.xlu0 %v4835, 94
      %v4856 = vpop.permute.xlu0 %4855
      %4857 = vrot.lane.b32.xlu0 %v4836, 94
      %v4858 = vpop.permute.xlu0 %4857
      %4859 = vrot.lane.b32.xlu0 %v4837, 94
      %v4860 = vpop.permute.xlu0 %4859
      %4861 = vrot.lane.b32.xlu0 %v4838, 94
      %v4862 = vpop.permute.xlu0 %4861
      %v4863 = vrot.slane %v4848, 4
      %v4864 = vrot.slane %v4850, 4
      %v4865 = vrot.slane %v4852, 4
      %v4866 = vrot.slane %v4854, 4
      %v4867 = vrot.slane %v4856, 4
      %v4868 = vrot.slane %v4858, 4
      %v4869 = vrot.slane %v4860, 4
      %v4870 = vrot.slane %v4862, 4
      %v4871 = vsel %vm3267, %v4863, %v4864
      %v4872 = vsel %vm3223, %v4848, %v4871
      %v4873 = vsel %vm3267, %v4865, %v4866
      %v4874 = vsel %vm3223, %v4852, %v4873
      %v4875 = vsel %vm3267, %v4867, %v4868
      %v4876 = vsel %vm3223, %v4856, %v4875
      %v4877 = vsel %vm3267, %v4869, %v4870
      %v4878 = vsel %vm3223, %v4860, %v4877
      %4883 = vst [vmem:[#allocation4 + $0x300] sm:$0xff] %v4872
      %4884 = vst [vmem:[#allocation4 + $0x308] sm:$0xff] %v4874
      %4885 = vst [vmem:[#allocation4 + $0x310] sm:$0xff] %v4876
      %4886 = vst [vmem:[#allocation4 + $0x318] sm:$0xff] %v4878
      %v4887 = vld [vmem:[%s5] sm:$0xf]
      %v4888 = vld [vmem:[%s5 + $0x4] sm:$0xf]
      %v4889 = vld [vmem:[%s5 + $0x8] sm:$0xf]
      %v4890 = vld [vmem:[%s5 + $0xc] sm:$0xf]
      %v4891 = vld [vmem:[%s5 + $0x10] sm:$0xf]
      %v4892 = vld [vmem:[%s5 + $0x14] sm:$0xf]
      %v4893 = vld [vmem:[%s5 + $0x18] sm:$0xf]
      %v4894 = vld [vmem:[%s5 + $0x1c] sm:$0xf]
      %v4895 = vld [vmem:[%s5 + $0x20] sm:$0xf]
      %v4896 = vld [vmem:[%s5 + $0x24] sm:$0xf]
      %v4897 = vld [vmem:[%s5 + $0x28] sm:$0xf]
      %v4898 = vld [vmem:[%s5 + $0x2c] sm:$0xf]
      %v4899 = vld [vmem:[%s5 + $0x30] sm:$0xf]
      %v4900 = vld [vmem:[%s5 + $0x34] sm:$0xf]
      %v4901 = vld [vmem:[%s5 + $0x38] sm:$0xf]
      %v4902 = vld [vmem:[%s5 + $0x3c] sm:$0xf]
      %v4903 = vld [vmem:[%s5 + $0x40] sm:$0xf]
      %v4904 = vld [vmem:[%s5 + $0x44] sm:$0xf]
      %v4905 = vld [vmem:[%s5 + $0x48] sm:$0xf]
      %v4906 = vld [vmem:[%s5 + $0x4c] sm:$0xf]
      %v4907 = vld [vmem:[%s5 + $0x50] sm:$0xf]
      %v4908 = vld [vmem:[%s5 + $0x54] sm:$0xf]
      %v4909 = vld [vmem:[%s5 + $0x58] sm:$0xf]
      %v4910 = vld [vmem:[%s5 + $0x5c] sm:$0xf]
      %v4911 = vld [vmem:[%s5 + $0x60] sm:$0xf]
      %v4912 = vld [vmem:[%s5 + $0x64] sm:$0xf]
      %v4913 = vld [vmem:[%s5 + $0x68] sm:$0xf]
      %v4914 = vld [vmem:[%s5 + $0x6c] sm:$0xf]
      %v4915 = vld [vmem:[%s5 + $0x70] sm:$0xf]
      %v4916 = vld [vmem:[%s5 + $0x74] sm:$0xf]
      %v4917 = vld [vmem:[%s5 + $0x78] sm:$0xf]
      %v4918 = vld [vmem:[%s5 + $0x7c] sm:$0xf]
      %v4919 = vld [vmem:[%s5 + $0x80] sm:$0xf]
      %v4920 = vld [vmem:[%s5 + $0x84] sm:$0xf]
      %v4921 = vld [vmem:[%s5 + $0x88] sm:$0xf]
      %v4922 = vld [vmem:[%s5 + $0x8c] sm:$0xf]
      %v4923 = vld [vmem:[%s5 + $0x90] sm:$0xf]
      %v4924 = vld [vmem:[%s5 + $0x94] sm:$0xf]
      %v4925 = vld [vmem:[%s5 + $0x98] sm:$0xf]
      %v4926 = vld [vmem:[%s5 + $0x9c] sm:$0xf]
      %v4927 = vld [vmem:[%s5 + $0xa0] sm:$0xf]
      %v4928 = vld [vmem:[%s5 + $0xa4] sm:$0xf]
      %v4929 = vld [vmem:[%s5 + $0xa8] sm:$0xf]
      %v4930 = vld [vmem:[%s5 + $0xac] sm:$0xf]
      %v4931 = vld [vmem:[%s5 + $0xb0] sm:$0xf]
      %v4932 = vld [vmem:[%s5 + $0xb4] sm:$0xf]
      %v4933 = vld [vmem:[%s5 + $0xb8] sm:$0xf]
      %v4934 = vld [vmem:[%s5 + $0xbc] sm:$0xf]
      %v4935 = vld [vmem:[%s5 + $0xc0] sm:$0xf]
      %v4936 = vld [vmem:[%s5 + $0xc4] sm:$0xf]
      %v4937 = vld [vmem:[%s5 + $0xc8] sm:$0xf]
      %v4938 = vld [vmem:[%s5 + $0xcc] sm:$0xf]
      %v4939 = vld [vmem:[%s5 + $0xd0] sm:$0xf]
      %v4940 = vld [vmem:[%s5 + $0xd4] sm:$0xf]
      %v4941 = vld [vmem:[%s5 + $0xd8] sm:$0xf]
      %v4942 = vld [vmem:[%s5 + $0xdc] sm:$0xf]
      %v4943 = vld [vmem:[%s5 + $0xe0] sm:$0xf]
      %v4944 = vld [vmem:[%s5 + $0xe4] sm:$0xf]
      %v4945 = vld [vmem:[%s5 + $0xe8] sm:$0xf]
      %v4946 = vld [vmem:[%s5 + $0xec] sm:$0xf]
      %v4947 = vld [vmem:[%s5 + $0xf0] sm:$0xf]
      %v4948 = vld [vmem:[%s5 + $0xf4] sm:$0xf]
      %v4949 = vld [vmem:[%s5 + $0xf8] sm:$0xf]
      %v4950 = vld [vmem:[%s5 + $0xfc] sm:$0xf]
      %v4951 = vld [vmem:[%s5 + $0x100] sm:$0xf]
      %v4952 = vld [vmem:[%s5 + $0x104] sm:$0xf]
      %v4953 = vld [vmem:[%s5 + $0x108] sm:$0xf]
      %v4954 = vld [vmem:[%s5 + $0x10c] sm:$0xf]
      %v4955 = vld [vmem:[%s5 + $0x110] sm:$0xf]
      %v4956 = vld [vmem:[%s5 + $0x114] sm:$0xf]
      %v4957 = vld [vmem:[%s5 + $0x118] sm:$0xf]
      %v4958 = vld [vmem:[%s5 + $0x11c] sm:$0xf]
      %v4959 = vld [vmem:[%s5 + $0x120] sm:$0xf]
      %v4960 = vld [vmem:[%s5 + $0x124] sm:$0xf]
      %v4961 = vld [vmem:[%s5 + $0x128] sm:$0xf]
      %v4962 = vld [vmem:[%s5 + $0x12c] sm:$0xf]
      %v4963 = vld [vmem:[%s5 + $0x130] sm:$0xf]
      %v4964 = vld [vmem:[%s5 + $0x134] sm:$0xf]
      %v4965 = vld [vmem:[%s5 + $0x138] sm:$0xf]
      %v4966 = vld [vmem:[%s5 + $0x13c] sm:$0xf]
      %v4967 = vld [vmem:[%s5 + $0x140] sm:$0xf]
      %v4968 = vld [vmem:[%s5 + $0x144] sm:$0xf]
      %v4969 = vld [vmem:[%s5 + $0x148] sm:$0xf]
      %v4970 = vld [vmem:[%s5 + $0x14c] sm:$0xf]
      %v4971 = vld [vmem:[%s5 + $0x150] sm:$0xf]
      %v4972 = vld [vmem:[%s5 + $0x154] sm:$0xf]
      %v4973 = vld [vmem:[%s5 + $0x158] sm:$0xf]
      %v4974 = vld [vmem:[%s5 + $0x15c] sm:$0xf]
      %v4975 = vld [vmem:[%s5 + $0x160] sm:$0xf]
      %v4976 = vld [vmem:[%s5 + $0x164] sm:$0xf]
      %v4977 = vld [vmem:[%s5 + $0x168] sm:$0xf]
      %v4978 = vld [vmem:[%s5 + $0x16c] sm:$0xf]
      %v4979 = vld [vmem:[%s5 + $0x170] sm:$0xf]
      %v4980 = vld [vmem:[%s5 + $0x174] sm:$0xf]
      %v4981 = vld [vmem:[%s5 + $0x178] sm:$0xf]
      %v4982 = vld [vmem:[%s5 + $0x17c] sm:$0xf]
      %v4983 = vld [vmem:[%s5 + $0x180] sm:$0xf]
      %v4984 = vld [vmem:[%s5 + $0x184] sm:$0xf]
      %v4985 = vld [vmem:[%s5 + $0x188] sm:$0xf]
      %v4986 = vld [vmem:[%s5 + $0x18c] sm:$0xf]
      %v4987 = vld [vmem:[#allocation4] sm:$0xff]
      %v4988 = vld [vmem:[#allocation4 + $0x8] sm:$0xff]
      %v4989 = vld [vmem:[#allocation4 + $0x10] sm:$0xff]
      %v4990 = vld [vmem:[#allocation4 + $0x18] sm:$0xff]
      %v4991 = vld [vmem:[#allocation4 + $0x20] sm:$0xff]
      %v4992 = vld [vmem:[#allocation4 + $0x28] sm:$0xff]
      %v4993 = vld [vmem:[#allocation4 + $0x30] sm:$0xff]
      %v4994 = vld [vmem:[#allocation4 + $0x38] sm:$0xff]
      %v4995 = vld [vmem:[#allocation4 + $0x40] sm:$0xff]
      %v4996 = vld [vmem:[#allocation4 + $0x48] sm:$0xff]
      %v4997 = vld [vmem:[#allocation4 + $0x50] sm:$0xff]
      %v4998 = vld [vmem:[#allocation4 + $0x58] sm:$0xff]
      %v4999 = vld [vmem:[#allocation4 + $0x60] sm:$0xff]
      %v5000 = vld [vmem:[#allocation4 + $0x68] sm:$0xff]
      %v5001 = vld [vmem:[#allocation4 + $0x70] sm:$0xff]
      %v5002 = vld [vmem:[#allocation4 + $0x78] sm:$0xff]
      %v5003 = vld [vmem:[#allocation4 + $0x80] sm:$0xff]
      %v5004 = vld [vmem:[#allocation4 + $0x88] sm:$0xff]
      %v5005 = vld [vmem:[#allocation4 + $0x90] sm:$0xff]
      %v5006 = vld [vmem:[#allocation4 + $0x98] sm:$0xff]
      %v5007 = vld [vmem:[#allocation4 + $0xa0] sm:$0xff]
      %v5008 = vld [vmem:[#allocation4 + $0xa8] sm:$0xff]
      %v5009 = vld [vmem:[#allocation4 + $0xb0] sm:$0xff]
      %v5010 = vld [vmem:[#allocation4 + $0xb8] sm:$0xff]
      %v5011 = vld [vmem:[#allocation4 + $0xc0] sm:$0xff]
      %v5012 = vld [vmem:[#allocation4 + $0xc8] sm:$0xff]
      %v5013 = vld [vmem:[#allocation4 + $0xd0] sm:$0xff]
      %v5014 = vld [vmem:[#allocation4 + $0xd8] sm:$0xff]
      %v5015 = vld [vmem:[#allocation4 + $0xe0] sm:$0xff]
      %v5016 = vld [vmem:[#allocation4 + $0xe8] sm:$0xff]
      %v5017 = vld [vmem:[#allocation4 + $0xf0] sm:$0xff]
      %v5018 = vld [vmem:[#allocation4 + $0xf8] sm:$0xff]
      %v5019 = vld [vmem:[#allocation4 + $0x100] sm:$0xff]
      %v5020 = vld [vmem:[#allocation4 + $0x108] sm:$0xff]
      %v5021 = vld [vmem:[#allocation4 + $0x110] sm:$0xff]
      %v5022 = vld [vmem:[#allocation4 + $0x118] sm:$0xff]
      %v5023 = vld [vmem:[#allocation4 + $0x120] sm:$0xff]
      %v5024 = vld [vmem:[#allocation4 + $0x128] sm:$0xff]
      %v5025 = vld [vmem:[#allocation4 + $0x130] sm:$0xff]
      %v5026 = vld [vmem:[#allocation4 + $0x138] sm:$0xff]
      %v5027 = vld [vmem:[#allocation4 + $0x140] sm:$0xff]
      %v5028 = vld [vmem:[#allocation4 + $0x148] sm:$0xff]
      %v5029 = vld [vmem:[#allocation4 + $0x150] sm:$0xff]
      %v5030 = vld [vmem:[#allocation4 + $0x158] sm:$0xff]
      %v5031 = vld [vmem:[#allocation4 + $0x160] sm:$0xff]
      %v5032 = vld [vmem:[#allocation4 + $0x168] sm:$0xff]
      %v5033 = vld [vmem:[#allocation4 + $0x170] sm:$0xff]
      %v5034 = vld [vmem:[#allocation4 + $0x178] sm:$0xff]
      %v5035 = vld [vmem:[#allocation4 + $0x180] sm:$0xff]
      %v5036 = vld [vmem:[#allocation4 + $0x188] sm:$0xff]
      %v5037 = vld [vmem:[#allocation4 + $0x190] sm:$0xff]
      %v5038 = vld [vmem:[#allocation4 + $0x198] sm:$0xff]
      %v5039 = vld [vmem:[#allocation4 + $0x1a0] sm:$0xff]
      %v5040 = vld [vmem:[#allocation4 + $0x1a8] sm:$0xff]
      %v5041 = vld [vmem:[#allocation4 + $0x1b0] sm:$0xff]
      %v5042 = vld [vmem:[#allocation4 + $0x1b8] sm:$0xff]
      %v5043 = vld [vmem:[#allocation4 + $0x1c0] sm:$0xff]
      %v5044 = vld [vmem:[#allocation4 + $0x1c8] sm:$0xff]
      %v5045 = vld [vmem:[#allocation4 + $0x1d0] sm:$0xff]
      %v5046 = vld [vmem:[#allocation4 + $0x1d8] sm:$0xff]
      %v5047 = vld [vmem:[#allocation4 + $0x1e0] sm:$0xff]
      %v5048 = vld [vmem:[#allocation4 + $0x1e8] sm:$0xff]
      %v5049 = vld [vmem:[#allocation4 + $0x1f0] sm:$0xff]
      %v5050 = vld [vmem:[#allocation4 + $0x1f8] sm:$0xff]
      %v5051 = vld [vmem:[#allocation4 + $0x200] sm:$0xff]
      %v5052 = vld [vmem:[#allocation4 + $0x208] sm:$0xff]
      %v5053 = vld [vmem:[#allocation4 + $0x210] sm:$0xff]
      %v5054 = vld [vmem:[#allocation4 + $0x218] sm:$0xff]
      %v5055 = vld [vmem:[#allocation4 + $0x220] sm:$0xff]
      %v5056 = vld [vmem:[#allocation4 + $0x228] sm:$0xff]
      %v5057 = vld [vmem:[#allocation4 + $0x230] sm:$0xff]
      %v5058 = vld [vmem:[#allocation4 + $0x238] sm:$0xff]
      %v5059 = vld [vmem:[#allocation4 + $0x240] sm:$0xff]
      %v5060 = vld [vmem:[#allocation4 + $0x248] sm:$0xff]
      %v5061 = vld [vmem:[#allocation4 + $0x250] sm:$0xff]
      %v5062 = vld [vmem:[#allocation4 + $0x258] sm:$0xff]
      %v5063 = vld [vmem:[#allocation4 + $0x260] sm:$0xff]
      %v5064 = vld [vmem:[#allocation4 + $0x268] sm:$0xff]
      %v5065 = vld [vmem:[#allocation4 + $0x270] sm:$0xff]
      %v5066 = vld [vmem:[#allocation4 + $0x278] sm:$0xff]
      %v5067 = vld [vmem:[#allocation4 + $0x280] sm:$0xff]
      %v5068 = vld [vmem:[#allocation4 + $0x288] sm:$0xff]
      %v5069 = vld [vmem:[#allocation4 + $0x290] sm:$0xff]
      %v5070 = vld [vmem:[#allocation4 + $0x298] sm:$0xff]
      %v5071 = vld [vmem:[#allocation4 + $0x2a0] sm:$0xff]
      %v5072 = vld [vmem:[#allocation4 + $0x2a8] sm:$0xff]
      %v5073 = vld [vmem:[#allocation4 + $0x2b0] sm:$0xff]
      %v5074 = vld [vmem:[#allocation4 + $0x2b8] sm:$0xff]
      %v5075 = vld [vmem:[#allocation4 + $0x2c0] sm:$0xff]
      %v5076 = vld [vmem:[#allocation4 + $0x2c8] sm:$0xff]
      %v5077 = vld [vmem:[#allocation4 + $0x2d0] sm:$0xff]
      %v5078 = vld [vmem:[#allocation4 + $0x2d8] sm:$0xff]
      %v5079 = vld [vmem:[#allocation4 + $0x2e0] sm:$0xff]
      %v5080 = vld [vmem:[#allocation4 + $0x2e8] sm:$0xff]
      %v5081 = vld [vmem:[#allocation4 + $0x2f0] sm:$0xff]
      %v5082 = vld [vmem:[#allocation4 + $0x2f8] sm:$0xff]
      %v5083 = vld [vmem:[#allocation4 + $0x300] sm:$0xff]
      %v5084 = vld [vmem:[#allocation4 + $0x308] sm:$0xff]
      %v5085 = vld [vmem:[#allocation4 + $0x310] sm:$0xff]
      %v5086 = vld [vmem:[#allocation4 + $0x318] sm:$0xff]
      %v5087 = vld [vmem:[%s6] sm:$0xf]
      %5089 = vset.pattern.permute.xlu0 0
      %5090 = vperm.xlu0 %5089, %v5087
      %v5091 = vpop.permute.xlu0 %5090
      %v5193 = vunpack.c.l.b16 %v4887
      %v5194 = vunpack.c.l.b16 %v4888
      %v5195 = vunpack.c.l.b16 %v4889
      %v5196 = vunpack.c.l.b16 %v4890
      %v5197 = vunpack.c.l.b16 %v4891
      %v5198 = vunpack.c.l.b16 %v4892
      %v5199 = vunpack.c.l.b16 %v4893
      %v5200 = vunpack.c.l.b16 %v4894
      %v5201 = vunpack.c.l.b16 %v4895
      %v5202 = vunpack.c.l.b16 %v4896
      %v5203 = vunpack.c.l.b16 %v4897
      %v5204 = vunpack.c.l.b16 %v4898
      %v5205 = vunpack.c.l.b16 %v4899
      %v5206 = vunpack.c.l.b16 %v4900
      %v5207 = vunpack.c.l.b16 %v4901
      %v5208 = vunpack.c.l.b16 %v4902
      %v5209 = vunpack.c.l.b16 %v4903
      %v5210 = vunpack.c.l.b16 %v4904
      %v5211 = vunpack.c.l.b16 %v4905
      %v5212 = vunpack.c.l.b16 %v4906
      %v5213 = vunpack.c.l.b16 %v4907
      %v5214 = vunpack.c.l.b16 %v4908
      %v5215 = vunpack.c.l.b16 %v4909
      %v5216 = vunpack.c.l.b16 %v4910
      %v5217 = vunpack.c.l.b16 %v4911
      %v5218 = vunpack.c.l.b16 %v4912
      %v5219 = vunpack.c.l.b16 %v4913
      %v5220 = vunpack.c.l.b16 %v4914
      %v5221 = vunpack.c.l.b16 %v4915
      %v5222 = vunpack.c.l.b16 %v4916
      %v5223 = vunpack.c.l.b16 %v4917
      %v5224 = vunpack.c.l.b16 %v4918
      %v5225 = vunpack.c.l.b16 %v4919
      %v5226 = vunpack.c.l.b16 %v4920
      %v5227 = vunpack.c.l.b16 %v4921
      %v5228 = vunpack.c.l.b16 %v4922
      %v5229 = vunpack.c.l.b16 %v4923
      %v5230 = vunpack.c.l.b16 %v4924
      %v5231 = vunpack.c.l.b16 %v4925
      %v5232 = vunpack.c.l.b16 %v4926
      %v5233 = vunpack.c.l.b16 %v4927
      %v5234 = vunpack.c.l.b16 %v4928
      %v5235 = vunpack.c.l.b16 %v4929
      %v5236 = vunpack.c.l.b16 %v4930
      %v5237 = vunpack.c.l.b16 %v4931
      %v5238 = vunpack.c.l.b16 %v4932
      %v5239 = vunpack.c.l.b16 %v4933
      %v5240 = vunpack.c.l.b16 %v4934
      %v5241 = vunpack.c.l.b16 %v4935
      %v5242 = vunpack.c.l.b16 %v4936
      %v5243 = vunpack.c.l.b16 %v4937
      %v5244 = vunpack.c.l.b16 %v4938
      %v5245 = vunpack.c.l.b16 %v4939
      %v5246 = vunpack.c.l.b16 %v4940
      %v5247 = vunpack.c.l.b16 %v4941
      %v5248 = vunpack.c.l.b16 %v4942
      %v5249 = vunpack.c.l.b16 %v4943
      %v5250 = vunpack.c.l.b16 %v4944
      %v5251 = vunpack.c.l.b16 %v4945
      %v5252 = vunpack.c.l.b16 %v4946
      %v5253 = vunpack.c.l.b16 %v4947
      %v5254 = vunpack.c.l.b16 %v4948
      %v5255 = vunpack.c.l.b16 %v4949
      %v5256 = vunpack.c.l.b16 %v4950
      %v5257 = vunpack.c.l.b16 %v4951
      %v5258 = vunpack.c.l.b16 %v4952
      %v5259 = vunpack.c.l.b16 %v4953
      %v5260 = vunpack.c.l.b16 %v4954
      %v5261 = vunpack.c.l.b16 %v4955
      %v5262 = vunpack.c.l.b16 %v4956
      %v5263 = vunpack.c.l.b16 %v4957
      %v5264 = vunpack.c.l.b16 %v4958
      %v5265 = vunpack.c.l.b16 %v4959
      %v5266 = vunpack.c.l.b16 %v4960
      %v5267 = vunpack.c.l.b16 %v4961
      %v5268 = vunpack.c.l.b16 %v4962
      %v5269 = vunpack.c.l.b16 %v4963
      %v5270 = vunpack.c.l.b16 %v4964
      %v5271 = vunpack.c.l.b16 %v4965
      %v5272 = vunpack.c.l.b16 %v4966
      %v5273 = vunpack.c.l.b16 %v4967
      %v5274 = vunpack.c.l.b16 %v4968
      %v5275 = vunpack.c.l.b16 %v4969
      %v5276 = vunpack.c.l.b16 %v4970
      %v5277 = vunpack.c.l.b16 %v4971
      %v5278 = vunpack.c.l.b16 %v4972
      %v5279 = vunpack.c.l.b16 %v4973
      %v5280 = vunpack.c.l.b16 %v4974
      %v5281 = vunpack.c.l.b16 %v4975
      %v5282 = vunpack.c.l.b16 %v4976
      %v5283 = vunpack.c.l.b16 %v4977
      %v5284 = vunpack.c.l.b16 %v4978
      %v5285 = vunpack.c.l.b16 %v4979
      %v5286 = vunpack.c.l.b16 %v4980
      %v5287 = vunpack.c.l.b16 %v4981
      %v5288 = vunpack.c.l.b16 %v4982
      %v5289 = vunpack.c.l.b16 %v4983
      %v5290 = vunpack.c.l.b16 %v4984
      %v5291 = vunpack.c.l.b16 %v4985
      %v5292 = vunpack.c.l.b16 %v4986
      %v5293 = vpack.c.b16 %v5194, %v5193
      %v5294 = vpack.c.b16 %v5196, %v5195
      %v5295 = vpack.c.b16 %v5198, %v5197
      %v5296 = vpack.c.b16 %v5200, %v5199
      %v5297 = vpack.c.b16 %v5202, %v5201
      %v5298 = vpack.c.b16 %v5204, %v5203
      %v5299 = vpack.c.b16 %v5206, %v5205
      %v5300 = vpack.c.b16 %v5208, %v5207
      %v5301 = vpack.c.b16 %v5210, %v5209
      %v5302 = vpack.c.b16 %v5212, %v5211
      %v5303 = vpack.c.b16 %v5214, %v5213
      %v5304 = vpack.c.b16 %v5216, %v5215
      %v5305 = vpack.c.b16 %v5218, %v5217
      %v5306 = vpack.c.b16 %v5220, %v5219
      %v5307 = vpack.c.b16 %v5222, %v5221
      %v5308 = vpack.c.b16 %v5224, %v5223
      %v5309 = vpack.c.b16 %v5226, %v5225
      %v5310 = vpack.c.b16 %v5228, %v5227
      %v5311 = vpack.c.b16 %v5230, %v5229
      %v5312 = vpack.c.b16 %v5232, %v5231
      %v5313 = vpack.c.b16 %v5234, %v5233
      %v5314 = vpack.c.b16 %v5236, %v5235
      %v5315 = vpack.c.b16 %v5238, %v5237
      %v5316 = vpack.c.b16 %v5240, %v5239
      %v5317 = vpack.c.b16 %v5242, %v5241
      %v5318 = vpack.c.b16 %v5244, %v5243
      %v5319 = vpack.c.b16 %v5246, %v5245
      %v5320 = vpack.c.b16 %v5248, %v5247
      %v5321 = vpack.c.b16 %v5250, %v5249
      %v5322 = vpack.c.b16 %v5252, %v5251
      %v5323 = vpack.c.b16 %v5254, %v5253
      %v5324 = vpack.c.b16 %v5256, %v5255
      %v5325 = vpack.c.b16 %v5258, %v5257
      %v5326 = vpack.c.b16 %v5260, %v5259
      %v5327 = vpack.c.b16 %v5262, %v5261
      %v5328 = vpack.c.b16 %v5264, %v5263
      %v5329 = vpack.c.b16 %v5266, %v5265
      %v5330 = vpack.c.b16 %v5268, %v5267
      %v5331 = vpack.c.b16 %v5270, %v5269
      %v5332 = vpack.c.b16 %v5272, %v5271
      %v5333 = vpack.c.b16 %v5274, %v5273
      %v5334 = vpack.c.b16 %v5276, %v5275
      %v5335 = vpack.c.b16 %v5278, %v5277
      %v5336 = vpack.c.b16 %v5280, %v5279
      %v5337 = vpack.c.b16 %v5282, %v5281
      %v5338 = vpack.c.b16 %v5284, %v5283
      %v5339 = vpack.c.b16 %v5286, %v5285
      %v5340 = vpack.c.b16 %v5288, %v5287
      %v5341 = vpack.c.b16 %v5290, %v5289
      %v5342 = vpack.c.b16 %v5292, %v5291
      %5393 = vxpose.xlu0.c.b16.start [1/8] %v5293, 128
      %5394 = vxpose.xlu0.c.b16.cont [2/8] %v5294, 128
      %5395 = vxpose.xlu0.c.b16.cont [3/8] %v5295, 128
      %5396 = vxpose.xlu0.c.b16.cont [4/8] %v5296, 128
      %5397 = vxpose.xlu0.c.b16.cont [5/8] %v5297, 128
      %5398 = vxpose.xlu0.c.b16.cont [6/8] %v5298, 128
      %5399 = vxpose.xlu0.c.b16.cont [7/8] %v5299, 128
      %5400 = vxpose.xlu0.c.b16.end [8/8] %v5300, 128
      %v5401 = vpop.trf.xlu0
      %v5402 = vpop.trf.xlu0
      %v5403 = vpop.trf.xlu0
      %v5404 = vpop.trf.xlu0
      %v5405 = vpop.trf.xlu0
      %v5406 = vpop.trf.xlu0
      %v5407 = vpop.trf.xlu0
      %v5408 = vpop.trf.xlu0
      %5409 = vxpose.xlu0.c.b16.start [1/8] %v5301, 128
      %5410 = vxpose.xlu0.c.b16.cont [2/8] %v5302, 128
      %5411 = vxpose.xlu0.c.b16.cont [3/8] %v5303, 128
      %5412 = vxpose.xlu0.c.b16.cont [4/8] %v5304, 128
      %5413 = vxpose.xlu0.c.b16.cont [5/8] %v5305, 128
      %5414 = vxpose.xlu0.c.b16.cont [6/8] %v5306, 128
      %5415 = vxpose.xlu0.c.b16.cont [7/8] %v5307, 128
      %5416 = vxpose.xlu0.c.b16.end [8/8] %v5308, 128
      %v5417 = vpop.trf.xlu0
      %v5418 = vpop.trf.xlu0
      %v5419 = vpop.trf.xlu0
      %v5420 = vpop.trf.xlu0
      %v5421 = vpop.trf.xlu0
      %v5422 = vpop.trf.xlu0
      %v5423 = vpop.trf.xlu0
      %v5424 = vpop.trf.xlu0
      %5425 = vxpose.xlu0.c.b16.start [1/8] %v5309, 128
      %5426 = vxpose.xlu0.c.b16.cont [2/8] %v5310, 128
      %5427 = vxpose.xlu0.c.b16.cont [3/8] %v5311, 128
      %5428 = vxpose.xlu0.c.b16.cont [4/8] %v5312, 128
      %5429 = vxpose.xlu0.c.b16.cont [5/8] %v5313, 128
      %5430 = vxpose.xlu0.c.b16.cont [6/8] %v5314, 128
      %5431 = vxpose.xlu0.c.b16.cont [7/8] %v5315, 128
      %5432 = vxpose.xlu0.c.b16.end [8/8] %v5316, 128
      %v5433 = vpop.trf.xlu0
      %v5434 = vpop.trf.xlu0
      %v5435 = vpop.trf.xlu0
      %v5436 = vpop.trf.xlu0
      %v5437 = vpop.trf.xlu0
      %v5438 = vpop.trf.xlu0
      %v5439 = vpop.trf.xlu0
      %v5440 = vpop.trf.xlu0
      %5441 = vxpose.xlu0.c.b16.start [1/8] %v5317, 128
      %5442 = vxpose.xlu0.c.b16.cont [2/8] %v5318, 128
      %5443 = vxpose.xlu0.c.b16.cont [3/8] %v5319, 128
      %5444 = vxpose.xlu0.c.b16.cont [4/8] %v5320, 128
      %5445 = vxpose.xlu0.c.b16.cont [5/8] %v5321, 128
      %5446 = vxpose.xlu0.c.b16.cont [6/8] %v5322, 128
      %5447 = vxpose.xlu0.c.b16.cont [7/8] %v5323, 128
      %5448 = vxpose.xlu0.c.b16.end [8/8] %v5324, 128
      %v5449 = vpop.trf.xlu0
      %v5450 = vpop.trf.xlu0
      %v5451 = vpop.trf.xlu0
      %v5452 = vpop.trf.xlu0
      %v5453 = vpop.trf.xlu0
      %v5454 = vpop.trf.xlu0
      %v5455 = vpop.trf.xlu0
      %v5456 = vpop.trf.xlu0
      %5457 = vxpose.xlu0.c.b16.start [1/8] %v5325, 128
      %5458 = vxpose.xlu0.c.b16.cont [2/8] %v5326, 128
      %5459 = vxpose.xlu0.c.b16.cont [3/8] %v5327, 128
      %5460 = vxpose.xlu0.c.b16.cont [4/8] %v5328, 128
      %5461 = vxpose.xlu0.c.b16.cont [5/8] %v5329, 128
      %5462 = vxpose.xlu0.c.b16.cont [6/8] %v5330, 128
      %5463 = vxpose.xlu0.c.b16.cont [7/8] %v5331, 128
      %5464 = vxpose.xlu0.c.b16.end [8/8] %v5332, 128
      %v5465 = vpop.trf.xlu0
      %v5466 = vpop.trf.xlu0
      %v5467 = vpop.trf.xlu0
      %v5468 = vpop.trf.xlu0
      %v5469 = vpop.trf.xlu0
      %v5470 = vpop.trf.xlu0
      %v5471 = vpop.trf.xlu0
      %v5472 = vpop.trf.xlu0
      %5473 = vxpose.xlu0.c.b16.start [1/8] %v5333, 128
      %5474 = vxpose.xlu0.c.b16.cont [2/8] %v5334, 128
      %5475 = vxpose.xlu0.c.b16.cont [3/8] %v5335, 128
      %5476 = vxpose.xlu0.c.b16.cont [4/8] %v5336, 128
      %5477 = vxpose.xlu0.c.b16.cont [5/8] %v5337, 128
      %5478 = vxpose.xlu0.c.b16.cont [6/8] %v5338, 128
      %5479 = vxpose.xlu0.c.b16.cont [7/8] %v5339, 128
      %5480 = vxpose.xlu0.c.b16.end [8/8] %v5340, 128
      %v5481 = vpop.trf.xlu0
      %v5482 = vpop.trf.xlu0
      %v5483 = vpop.trf.xlu0
      %v5484 = vpop.trf.xlu0
      %v5485 = vpop.trf.xlu0
      %v5486 = vpop.trf.xlu0
      %v5487 = vpop.trf.xlu0
      %v5488 = vpop.trf.xlu0
      %5489 = vxpose.xlu0.c.b16.start [1/8] %v5341, 128
      %5490 = vxpose.xlu0.c.b16.cont [2/8] %v5342, 128
      %5491 = vxpose.xlu0.c.b16.cont [3/8] 0, 128
      %5492 = vxpose.xlu0.c.b16.cont [4/8] 0, 128
      %5493 = vxpose.xlu0.c.b16.cont [5/8] 0, 128
      %5494 = vxpose.xlu0.c.b16.cont [6/8] 0, 128
      %5495 = vxpose.xlu0.c.b16.cont [7/8] 0, 128
      %5496 = vxpose.xlu0.c.b16.end [8/8] 0, 128
      %v5497 = vpop.trf.xlu0
      %v5498 = vpop.trf.xlu0
      %v5499 = vpop.trf.xlu0
      %v5500 = vpop.trf.xlu0
      %v5501 = vpop.trf.xlu0
      %v5502 = vpop.trf.xlu0
      %v5503 = vpop.trf.xlu0
      %v5504 = vpop.trf.xlu0
      %v5605 = vunpack.c.l.b16 %v4987
      %v5606 = vunpack.c.h.b16 %v4987
      %v5607 = vunpack.c.l.b16 %v4988
      %v5608 = vunpack.c.h.b16 %v4988
      %v5609 = vunpack.c.l.b16 %v4989
      %v5610 = vunpack.c.h.b16 %v4989
      %v5611 = vunpack.c.l.b16 %v4990
      %v5612 = vunpack.c.h.b16 %v4990
      %v5613 = vunpack.c.l.b16 %v4991
      %v5614 = vunpack.c.h.b16 %v4991
      %v5615 = vunpack.c.l.b16 %v4992
      %v5616 = vunpack.c.h.b16 %v4992
      %v5617 = vunpack.c.l.b16 %v4993
      %v5618 = vunpack.c.h.b16 %v4993
      %v5619 = vunpack.c.l.b16 %v4994
      %v5620 = vunpack.c.h.b16 %v4994
      %v5621 = vunpack.c.l.b16 %v4995
      %v5622 = vunpack.c.h.b16 %v4995
      %v5623 = vunpack.c.l.b16 %v4996
      %v5624 = vunpack.c.h.b16 %v4996
      %v5625 = vunpack.c.l.b16 %v4997
      %v5626 = vunpack.c.h.b16 %v4997
      %v5627 = vunpack.c.l.b16 %v4998
      %v5628 = vunpack.c.h.b16 %v4998
      %v5629 = vunpack.c.l.b16 %v4999
      %v5630 = vunpack.c.h.b16 %v4999
      %v5631 = vunpack.c.l.b16 %v5000
      %v5632 = vunpack.c.h.b16 %v5000
      %v5633 = vunpack.c.l.b16 %v5001
      %v5634 = vunpack.c.h.b16 %v5001
      %v5635 = vunpack.c.l.b16 %v5002
      %v5636 = vunpack.c.h.b16 %v5002
      %v5637 = vunpack.c.l.b16 %v5003
      %v5638 = vunpack.c.h.b16 %v5003
      %v5639 = vunpack.c.l.b16 %v5004
      %v5640 = vunpack.c.h.b16 %v5004
      %v5641 = vunpack.c.l.b16 %v5005
      %v5642 = vunpack.c.h.b16 %v5005
      %v5643 = vunpack.c.l.b16 %v5006
      %v5644 = vunpack.c.h.b16 %v5006
      %v5645 = vunpack.c.l.b16 %v5007
      %v5646 = vunpack.c.h.b16 %v5007
      %v5647 = vunpack.c.l.b16 %v5008
      %v5648 = vunpack.c.h.b16 %v5008
      %v5649 = vunpack.c.l.b16 %v5009
      %v5650 = vunpack.c.h.b16 %v5009
      %v5651 = vunpack.c.l.b16 %v5010
      %v5652 = vunpack.c.h.b16 %v5010
      %v5653 = vunpack.c.l.b16 %v5011
      %v5654 = vunpack.c.h.b16 %v5011
      %v5655 = vunpack.c.l.b16 %v5012
      %v5656 = vunpack.c.h.b16 %v5012
      %v5657 = vunpack.c.l.b16 %v5013
      %v5658 = vunpack.c.h.b16 %v5013
      %v5659 = vunpack.c.l.b16 %v5014
      %v5660 = vunpack.c.h.b16 %v5014
      %v5661 = vunpack.c.l.b16 %v5015
      %v5662 = vunpack.c.h.b16 %v5015
      %v5663 = vunpack.c.l.b16 %v5016
      %v5664 = vunpack.c.h.b16 %v5016
      %v5665 = vunpack.c.l.b16 %v5017
      %v5666 = vunpack.c.h.b16 %v5017
      %v5667 = vunpack.c.l.b16 %v5018
      %v5668 = vunpack.c.h.b16 %v5018
      %v5669 = vunpack.c.l.b16 %v5019
      %v5670 = vunpack.c.h.b16 %v5019
      %v5671 = vunpack.c.l.b16 %v5020
      %v5672 = vunpack.c.h.b16 %v5020
      %v5673 = vunpack.c.l.b16 %v5021
      %v5674 = vunpack.c.h.b16 %v5021
      %v5675 = vunpack.c.l.b16 %v5022
      %v5676 = vunpack.c.h.b16 %v5022
      %v5677 = vunpack.c.l.b16 %v5023
      %v5678 = vunpack.c.h.b16 %v5023
      %v5679 = vunpack.c.l.b16 %v5024
      %v5680 = vunpack.c.h.b16 %v5024
      %v5681 = vunpack.c.l.b16 %v5025
      %v5682 = vunpack.c.h.b16 %v5025
      %v5683 = vunpack.c.l.b16 %v5026
      %v5684 = vunpack.c.h.b16 %v5026
      %v5685 = vunpack.c.l.b16 %v5027
      %v5686 = vunpack.c.h.b16 %v5027
      %v5687 = vunpack.c.l.b16 %v5028
      %v5688 = vunpack.c.h.b16 %v5028
      %v5689 = vunpack.c.l.b16 %v5029
      %v5690 = vunpack.c.h.b16 %v5029
      %v5691 = vunpack.c.l.b16 %v5030
      %v5692 = vunpack.c.h.b16 %v5030
      %v5693 = vunpack.c.l.b16 %v5031
      %v5694 = vunpack.c.h.b16 %v5031
      %v5695 = vunpack.c.l.b16 %v5032
      %v5696 = vunpack.c.h.b16 %v5032
      %v5697 = vunpack.c.l.b16 %v5033
      %v5698 = vunpack.c.h.b16 %v5033
      %v5699 = vunpack.c.l.b16 %v5034
      %v5700 = vunpack.c.h.b16 %v5034
      %v5701 = vunpack.c.l.b16 %v5035
      %v5702 = vunpack.c.h.b16 %v5035
      %v5703 = vunpack.c.l.b16 %v5036
      %v5704 = vunpack.c.h.b16 %v5036
      %v5705 = vunpack.c.l.b16 %v5037
      %v5706 = vunpack.c.h.b16 %v5037
      %v5707 = vunpack.c.l.b16 %v5038
      %v5708 = vunpack.c.h.b16 %v5038
      %v5709 = vunpack.c.l.b16 %v5039
      %v5710 = vunpack.c.h.b16 %v5039
      %v5711 = vunpack.c.l.b16 %v5040
      %v5712 = vunpack.c.h.b16 %v5040
      %v5713 = vunpack.c.l.b16 %v5041
      %v5714 = vunpack.c.h.b16 %v5041
      %v5715 = vunpack.c.l.b16 %v5042
      %v5716 = vunpack.c.h.b16 %v5042
      %v5717 = vunpack.c.l.b16 %v5043
      %v5718 = vunpack.c.h.b16 %v5043
      %v5719 = vunpack.c.l.b16 %v5044
      %v5720 = vunpack.c.h.b16 %v5044
      %v5721 = vunpack.c.l.b16 %v5045
      %v5722 = vunpack.c.h.b16 %v5045
      %v5723 = vunpack.c.l.b16 %v5046
      %v5724 = vunpack.c.h.b16 %v5046
      %v5725 = vunpack.c.l.b16 %v5047
      %v5726 = vunpack.c.h.b16 %v5047
      %v5727 = vunpack.c.l.b16 %v5048
      %v5728 = vunpack.c.h.b16 %v5048
      %v5729 = vunpack.c.l.b16 %v5049
      %v5730 = vunpack.c.h.b16 %v5049
      %v5731 = vunpack.c.l.b16 %v5050
      %v5732 = vunpack.c.h.b16 %v5050
      %v5733 = vunpack.c.l.b16 %v5051
      %v5734 = vunpack.c.h.b16 %v5051
      %v5735 = vunpack.c.l.b16 %v5052
      %v5736 = vunpack.c.h.b16 %v5052
      %v5737 = vunpack.c.l.b16 %v5053
      %v5738 = vunpack.c.h.b16 %v5053
      %v5739 = vunpack.c.l.b16 %v5054
      %v5740 = vunpack.c.h.b16 %v5054
      %v5741 = vunpack.c.l.b16 %v5055
      %v5742 = vunpack.c.h.b16 %v5055
      %v5743 = vunpack.c.l.b16 %v5056
      %v5744 = vunpack.c.h.b16 %v5056
      %v5745 = vunpack.c.l.b16 %v5057
      %v5746 = vunpack.c.h.b16 %v5057
      %v5747 = vunpack.c.l.b16 %v5058
      %v5748 = vunpack.c.h.b16 %v5058
      %v5749 = vunpack.c.l.b16 %v5059
      %v5750 = vunpack.c.h.b16 %v5059
      %v5751 = vunpack.c.l.b16 %v5060
      %v5752 = vunpack.c.h.b16 %v5060
      %v5753 = vunpack.c.l.b16 %v5061
      %v5754 = vunpack.c.h.b16 %v5061
      %v5755 = vunpack.c.l.b16 %v5062
      %v5756 = vunpack.c.h.b16 %v5062
      %v5757 = vunpack.c.l.b16 %v5063
      %v5758 = vunpack.c.h.b16 %v5063
      %v5759 = vunpack.c.l.b16 %v5064
      %v5760 = vunpack.c.h.b16 %v5064
      %v5761 = vunpack.c.l.b16 %v5065
      %v5762 = vunpack.c.h.b16 %v5065
      %v5763 = vunpack.c.l.b16 %v5066
      %v5764 = vunpack.c.h.b16 %v5066
      %v5765 = vunpack.c.l.b16 %v5067
      %v5766 = vunpack.c.h.b16 %v5067
      %v5767 = vunpack.c.l.b16 %v5068
      %v5768 = vunpack.c.h.b16 %v5068
      %v5769 = vunpack.c.l.b16 %v5069
      %v5770 = vunpack.c.h.b16 %v5069
      %v5771 = vunpack.c.l.b16 %v5070
      %v5772 = vunpack.c.h.b16 %v5070
      %v5773 = vunpack.c.l.b16 %v5071
      %v5774 = vunpack.c.h.b16 %v5071
      %v5775 = vunpack.c.l.b16 %v5072
      %v5776 = vunpack.c.h.b16 %v5072
      %v5777 = vunpack.c.l.b16 %v5073
      %v5778 = vunpack.c.h.b16 %v5073
      %v5779 = vunpack.c.l.b16 %v5074
      %v5780 = vunpack.c.h.b16 %v5074
      %v5781 = vunpack.c.l.b16 %v5075
      %v5782 = vunpack.c.h.b16 %v5075
      %v5783 = vunpack.c.l.b16 %v5076
      %v5784 = vunpack.c.h.b16 %v5076
      %v5785 = vunpack.c.l.b16 %v5077
      %v5786 = vunpack.c.h.b16 %v5077
      %v5787 = vunpack.c.l.b16 %v5078
      %v5788 = vunpack.c.h.b16 %v5078
      %v5789 = vunpack.c.l.b16 %v5079
      %v5790 = vunpack.c.h.b16 %v5079
      %v5791 = vunpack.c.l.b16 %v5080
      %v5792 = vunpack.c.h.b16 %v5080
      %v5793 = vunpack.c.l.b16 %v5081
      %v5794 = vunpack.c.h.b16 %v5081
      %v5795 = vunpack.c.l.b16 %v5082
      %v5796 = vunpack.c.h.b16 %v5082
      %v5797 = vunpack.c.l.b16 %v5083
      %v5798 = vunpack.c.h.b16 %v5083
      %v5799 = vunpack.c.l.b16 %v5084
      %v5800 = vunpack.c.h.b16 %v5084
      %v5801 = vunpack.c.l.b16 %v5085
      %v5802 = vunpack.c.h.b16 %v5085
      %v5803 = vunpack.c.l.b16 %v5086
      %v5804 = vunpack.c.h.b16 %v5086
      %v5805 = vpack.c.b16 %v5607, %v5605
      %v5806 = vpack.c.b16 %v5608, %v5606
      %v5807 = vpack.c.b16 %v5611, %v5609
      %v5808 = vpack.c.b16 %v5612, %v5610
      %v5809 = vpack.c.b16 %v5615, %v5613
      %v5810 = vpack.c.b16 %v5616, %v5614
      %v5811 = vpack.c.b16 %v5619, %v5617
      %v5812 = vpack.c.b16 %v5620, %v5618
      %v5813 = vpack.c.b16 %v5623, %v5621
      %v5814 = vpack.c.b16 %v5624, %v5622
      %v5815 = vpack.c.b16 %v5627, %v5625
      %v5816 = vpack.c.b16 %v5628, %v5626
      %v5817 = vpack.c.b16 %v5631, %v5629
      %v5818 = vpack.c.b16 %v5632, %v5630
      %v5819 = vpack.c.b16 %v5635, %v5633
      %v5820 = vpack.c.b16 %v5636, %v5634
      %v5821 = vpack.c.b16 %v5639, %v5637
      %v5822 = vpack.c.b16 %v5640, %v5638
      %v5823 = vpack.c.b16 %v5643, %v5641
      %v5824 = vpack.c.b16 %v5644, %v5642
      %v5825 = vpack.c.b16 %v5647, %v5645
      %v5826 = vpack.c.b16 %v5648, %v5646
      %v5827 = vpack.c.b16 %v5651, %v5649
      %v5828 = vpack.c.b16 %v5652, %v5650
      %v5829 = vpack.c.b16 %v5655, %v5653
      %v5830 = vpack.c.b16 %v5656, %v5654
      %v5831 = vpack.c.b16 %v5659, %v5657
      %v5832 = vpack.c.b16 %v5660, %v5658
      %v5833 = vpack.c.b16 %v5663, %v5661
      %v5834 = vpack.c.b16 %v5664, %v5662
      %v5835 = vpack.c.b16 %v5667, %v5665
      %v5836 = vpack.c.b16 %v5668, %v5666
      %v5837 = vpack.c.b16 %v5671, %v5669
      %v5838 = vpack.c.b16 %v5672, %v5670
      %v5839 = vpack.c.b16 %v5675, %v5673
      %v5840 = vpack.c.b16 %v5676, %v5674
      %v5841 = vpack.c.b16 %v5679, %v5677
      %v5842 = vpack.c.b16 %v5680, %v5678
      %v5843 = vpack.c.b16 %v5683, %v5681
      %v5844 = vpack.c.b16 %v5684, %v5682
      %v5845 = vpack.c.b16 %v5687, %v5685
      %v5846 = vpack.c.b16 %v5688, %v5686
      %v5847 = vpack.c.b16 %v5691, %v5689
      %v5848 = vpack.c.b16 %v5692, %v5690
      %v5849 = vpack.c.b16 %v5695, %v5693
      %v5850 = vpack.c.b16 %v5696, %v5694
      %v5851 = vpack.c.b16 %v5699, %v5697
      %v5852 = vpack.c.b16 %v5700, %v5698
      %v5853 = vpack.c.b16 %v5703, %v5701
      %v5854 = vpack.c.b16 %v5704, %v5702
      %v5855 = vpack.c.b16 %v5707, %v5705
      %v5856 = vpack.c.b16 %v5708, %v5706
      %v5857 = vpack.c.b16 %v5711, %v5709
      %v5858 = vpack.c.b16 %v5712, %v5710
      %v5859 = vpack.c.b16 %v5715, %v5713
      %v5860 = vpack.c.b16 %v5716, %v5714
      %v5861 = vpack.c.b16 %v5719, %v5717
      %v5862 = vpack.c.b16 %v5720, %v5718
      %v5863 = vpack.c.b16 %v5723, %v5721
      %v5864 = vpack.c.b16 %v5724, %v5722
      %v5865 = vpack.c.b16 %v5727, %v5725
      %v5866 = vpack.c.b16 %v5728, %v5726
      %v5867 = vpack.c.b16 %v5731, %v5729
      %v5868 = vpack.c.b16 %v5732, %v5730
      %v5869 = vpack.c.b16 %v5735, %v5733
      %v5870 = vpack.c.b16 %v5736, %v5734
      %v5871 = vpack.c.b16 %v5739, %v5737
      %v5872 = vpack.c.b16 %v5740, %v5738
      %v5873 = vpack.c.b16 %v5743, %v5741
      %v5874 = vpack.c.b16 %v5744, %v5742
      %v5875 = vpack.c.b16 %v5747, %v5745
      %v5876 = vpack.c.b16 %v5748, %v5746
      %v5877 = vpack.c.b16 %v5751, %v5749
      %v5878 = vpack.c.b16 %v5752, %v5750
      %v5879 = vpack.c.b16 %v5755, %v5753
      %v5880 = vpack.c.b16 %v5756, %v5754
      %v5881 = vpack.c.b16 %v5759, %v5757
      %v5882 = vpack.c.b16 %v5760, %v5758
      %v5883 = vpack.c.b16 %v5763, %v5761
      %v5884 = vpack.c.b16 %v5764, %v5762
      %v5885 = vpack.c.b16 %v5767, %v5765
      %v5886 = vpack.c.b16 %v5768, %v5766
      %v5887 = vpack.c.b16 %v5771, %v5769
      %v5888 = vpack.c.b16 %v5772, %v5770
      %v5889 = vpack.c.b16 %v5775, %v5773
      %v5890 = vpack.c.b16 %v5776, %v5774
      %v5891 = vpack.c.b16 %v5779, %v5777
      %v5892 = vpack.c.b16 %v5780, %v5778
      %v5893 = vpack.c.b16 %v5783, %v5781
      %v5894 = vpack.c.b16 %v5784, %v5782
      %v5895 = vpack.c.b16 %v5787, %v5785
      %v5896 = vpack.c.b16 %v5788, %v5786
      %v5897 = vpack.c.b16 %v5791, %v5789
      %v5898 = vpack.c.b16 %v5792, %v5790
      %v5899 = vpack.c.b16 %v5795, %v5793
      %v5900 = vpack.c.b16 %v5796, %v5794
      %v5901 = vpack.c.b16 %v5799, %v5797
      %v5902 = vpack.c.b16 %v5800, %v5798
      %v5903 = vpack.c.b16 %v5803, %v5801
      %v5904 = vpack.c.b16 %v5804, %v5802
      %vm6005 = vcmask 261120
      %v6007 = vsel %vm6005, %v5497, 0
      %6009 = vmatprep.subr.bf16.mxu0 %v5820
      %6010 = vmatpush1.bf16.msra.mxu0 %v5819
      %6011 = vmatprep.subr.bf16.mxu0 %v5818
      %6012 = vmatpush1.bf16.msra.mxu0 %v5817
      %6013 = vmatprep.subr.bf16.mxu0 %v5816
      %6014 = vmatpush1.bf16.msra.mxu0 %v5815
      %6015 = vmatprep.subr.bf16.mxu0 %v5814
      %6016 = vmatpush1.bf16.msra.mxu0 %v5813
      %6017 = vmatprep.subr.bf16.mxu0 %v5812
      %6018 = vmatpush1.bf16.msra.mxu0 %v5811
      %6019 = vmatprep.subr.bf16.mxu0 %v5810
      %6020 = vmatpush1.bf16.msra.mxu0 %v5809
      %6021 = vmatprep.subr.bf16.mxu0 %v5808
      %6022 = vmatpush1.bf16.msra.mxu0 %v5807
      %6023 = vmatprep.subr.bf16.mxu0 %v5806
      %6024 = vmatpush1.bf16.msra.mxu0 %v5805
      %6025 = vmatprep.subr.bf16.mxu0 %v5836
      %6026 = vmatpush2.bf16.msra.mxu0 %v5835
      %6027 = vmatprep.subr.bf16.mxu0 %v5834
      %6028 = vmatpush2.bf16.msra.mxu0 %v5833
      %6029 = vmatprep.subr.bf16.mxu0 %v5832
      %6030 = vmatpush2.bf16.msra.mxu0 %v5831
      %6031 = vmatprep.subr.bf16.mxu0 %v5830
      %6032 = vmatpush2.bf16.msra.mxu0 %v5829
      %6033 = vmatprep.subr.bf16.mxu0 %v5828
      %6034 = vmatpush2.bf16.msra.mxu0 %v5827
      %6035 = vmatprep.subr.bf16.mxu0 %v5826
      %6036 = vmatpush2.bf16.msra.mxu0 %v5825
      %6037 = vmatprep.subr.bf16.mxu0 %v5824
      %6038 = vmatpush2.bf16.msra.mxu0 %v5823
      %6039 = vmatprep.subr.bf16.mxu0 %v5822
      %6040 = vmatpush2.bf16.msra.mxu0 %v5821
      %6041 = vmatprep.mubr.bf16.mxu0 %v5417
      %6042 = vmatmul.mubr.bf16.gmra.mxu0 %v5401
      %v6043 = vpop.f32.mrf.mxu0
      %v6044 = vadd.f32 %v5091, %v6043
      %v6045 = vpop.f32.mrf.mxu0
      %v6046 = vadd.f32 %v5091, %v6045
      %v6047 = vpop.f32.mrf.mxu0
      %v6048 = vpop.f32.mrf.mxu0
      %6049 = vdwg.mxu0
      %6050 = vmatprep.subr.bf16.mxu0 %v5852
      %6051 = vmatpush1.bf16.msra.mxu0 %v5851
      %6052 = vmatprep.subr.bf16.mxu0 %v5850
      %6053 = vmatpush1.bf16.msra.mxu0 %v5849
      %6054 = vmatprep.subr.bf16.mxu0 %v5848
      %6055 = vmatpush1.bf16.msra.mxu0 %v5847
      %6056 = vmatprep.subr.bf16.mxu0 %v5846
      %6057 = vmatpush1.bf16.msra.mxu0 %v5845
      %6058 = vmatprep.subr.bf16.mxu0 %v5844
      %6059 = vmatpush1.bf16.msra.mxu0 %v5843
      %6060 = vmatprep.subr.bf16.mxu0 %v5842
      %6061 = vmatpush1.bf16.msra.mxu0 %v5841
      %6062 = vmatprep.subr.bf16.mxu0 %v5840
      %6063 = vmatpush1.bf16.msra.mxu0 %v5839
      %6064 = vmatprep.subr.bf16.mxu0 %v5838
      %6065 = vmatpush1.bf16.msra.mxu0 %v5837
      %6066 = vmatprep.subr.bf16.mxu0 %v5868
      %6067 = vmatpush2.bf16.msra.mxu0 %v5867
      %6068 = vmatprep.subr.bf16.mxu0 %v5866
      %6069 = vmatpush2.bf16.msra.mxu0 %v5865
      %6070 = vmatprep.subr.bf16.mxu0 %v5864
      %6071 = vmatpush2.bf16.msra.mxu0 %v5863
      %6072 = vmatprep.subr.bf16.mxu0 %v5862
      %6073 = vmatpush2.bf16.msra.mxu0 %v5861
      %6074 = vmatprep.subr.bf16.mxu0 %v5860
      %6075 = vmatpush2.bf16.msra.mxu0 %v5859
      %6076 = vmatprep.subr.bf16.mxu0 %v5858
      %6077 = vmatpush2.bf16.msra.mxu0 %v5857
      %6078 = vmatprep.subr.bf16.mxu0 %v5856
      %6079 = vmatpush2.bf16.msra.mxu0 %v5855
      %6080 = vmatprep.subr.bf16.mxu0 %v5854
      %6081 = vmatpush2.bf16.msra.mxu0 %v5853
      %6082 = vmatprep.mubr.bf16.mxu0 %v5449
      %6083 = vmatmul.mubr.bf16.gmra.mxu0 %v5433
      %v6084 = vpop.f32.mrf.mxu0
      %v6085 = vadd.f32 %v6044, %v6084
      %v6086 = vpop.f32.mrf.mxu0
      %v6087 = vadd.f32 %v6046, %v6086
      %v6088 = vpop.f32.mrf.mxu0
      %v6089 = vpop.f32.mrf.mxu0
      %6090 = vdwg.mxu0
      %6091 = vmatprep.subr.bf16.mxu0 %v5884
      %6092 = vmatpush1.bf16.msra.mxu0 %v5883
      %6093 = vmatprep.subr.bf16.mxu0 %v5882
      %6094 = vmatpush1.bf16.msra.mxu0 %v5881
      %6095 = vmatprep.subr.bf16.mxu0 %v5880
      %6096 = vmatpush1.bf16.msra.mxu0 %v5879
      %6097 = vmatprep.subr.bf16.mxu0 %v5878
      %6098 = vmatpush1.bf16.msra.mxu0 %v5877
      %6099 = vmatprep.subr.bf16.mxu0 %v5876
      %6100 = vmatpush1.bf16.msra.mxu0 %v5875
      %6101 = vmatprep.subr.bf16.mxu0 %v5874
      %6102 = vmatpush1.bf16.msra.mxu0 %v5873
      %6103 = vmatprep.subr.bf16.mxu0 %v5872
      %6104 = vmatpush1.bf16.msra.mxu0 %v5871
      %6105 = vmatprep.subr.bf16.mxu0 %v5870
      %6106 = vmatpush1.bf16.msra.mxu0 %v5869
      %6107 = vmatprep.subr.bf16.mxu0 %v5900
      %6108 = vmatpush2.bf16.msra.mxu0 %v5899
      %6109 = vmatprep.subr.bf16.mxu0 %v5898
      %6110 = vmatpush2.bf16.msra.mxu0 %v5897
      %6111 = vmatprep.subr.bf16.mxu0 %v5896
      %6112 = vmatpush2.bf16.msra.mxu0 %v5895
      %6113 = vmatprep.subr.bf16.mxu0 %v5894
      %6114 = vmatpush2.bf16.msra.mxu0 %v5893
      %6115 = vmatprep.subr.bf16.mxu0 %v5892
      %6116 = vmatpush2.bf16.msra.mxu0 %v5891
      %6117 = vmatprep.subr.bf16.mxu0 %v5890
      %6118 = vmatpush2.bf16.msra.mxu0 %v5889
      %6119 = vmatprep.subr.bf16.mxu0 %v5888
      %6120 = vmatpush2.bf16.msra.mxu0 %v5887
      %6121 = vmatprep.subr.bf16.mxu0 %v5886
      %6122 = vmatpush2.bf16.msra.mxu0 %v5885
      %6123 = vmatprep.mubr.bf16.mxu0 %v5481
      %6124 = vmatmul.mubr.bf16.gmra.mxu0 %v5465
      %v6125 = vpop.f32.mrf.mxu0
      %v6126 = vadd.f32 %v6085, %v6125
      %v6127 = vpop.f32.mrf.mxu0
      %v6128 = vadd.f32 %v6087, %v6127
      %v6129 = vpop.f32.mrf.mxu0
      %v6130 = vpop.f32.mrf.mxu0
      %6131 = vdwg.mxu0
      %6132 = vmatprep.subr.bf16.mxu0 0
      %6133 = vmatpush1.bf16.msra.mxu0 0
      %6134 = vmatprep.subr.bf16.mxu0 0
      %6135 = vmatpush1.bf16.msra.mxu0 0
      %6136 = vmatprep.subr.bf16.mxu0 0
      %6137 = vmatpush1.bf16.msra.mxu0 0
      %6138 = vmatprep.subr.bf16.mxu0 0
      %6139 = vmatpush1.bf16.msra.mxu0 0
      %6140 = vmatprep.subr.bf16.mxu0 0
      %6141 = vmatpush1.bf16.msra.mxu0 0
      %6142 = vmatprep.subr.bf16.mxu0 0
      %6143 = vmatpush1.bf16.msra.mxu0 0
      %6144 = vmatprep.subr.bf16.mxu0 %v5904
      %6145 = vmatpush1.bf16.msra.mxu0 %v5903
      %6146 = vmatprep.subr.bf16.mxu0 %v5902
      %6147 = vmatpush1.bf16.msra.mxu0 %v5901
      %6148 = vmatprep.subr.bf16.mxu0 0
      %6149 = vmatpush2.bf16.msra.mxu0 0
      %6150 = vmatprep.subr.bf16.mxu0 0
      %6151 = vmatpush2.bf16.msra.mxu0 0
      %6152 = vmatprep.subr.bf16.mxu0 0
      %6153 = vmatpush2.bf16.msra.mxu0 0
      %6154 = vmatprep.subr.bf16.mxu0 0
      %6155 = vmatpush2.bf16.msra.mxu0 0
      %6156 = vmatprep.subr.bf16.mxu0 0
      %6157 = vmatpush2.bf16.msra.mxu0 0
      %6158 = vmatprep.subr.bf16.mxu0 0
      %6159 = vmatpush2.bf16.msra.mxu0 0
      %6160 = vmatprep.subr.bf16.mxu0 0
      %6161 = vmatpush2.bf16.msra.mxu0 0
      %6162 = vmatprep.subr.bf16.mxu0 0
      %6163 = vmatpush2.bf16.msra.mxu0 0
      %6164 = vmatprep.mubr.bf16.mxu0 0
      %6165 = vmatmul.mubr.bf16.gmra.mxu0 %v6007
      %v6166 = vpop.f32.mrf.mxu0
      %v6167 = vadd.f32 %v6126, %v6166
      %v6168 = vpop.f32.mrf.mxu0
      %v6169 = vadd.f32 %v6128, %v6168
      %v6170 = vpop.f32.mrf.mxu0
      %v6171 = vpop.f32.mrf.mxu0
      %6172 = vdwg.mxu0
      %v6175 = vcombine.low %v6167, %v6169
      %6177 = vst [vmem:[%s278] sm:$0xff] %v6175
      %p6178 = scmp.lt.s32.totalorder %s18, 1
      %s6179 = scalar_select %p6178, %s18, 1
      %s6180 = smul.addr %s6179, 2
      %s6181 = smul.addr %s6180, 4
      %s6182 = scalar_lea.vmem %s7, %s6181
      // Predicated region
      $region49: #{srcnn_pallas.1} parent=47 // pred_check
        %p6183 = pneg %p188
      $region50: #{srcnn_pallas.1} parent=47 // pred_check_branch
        %6185 = sbr.rel (%p6183) target = $region52
      $region51: #{srcnn_pallas.1} parent=47 // pred_region
        _
      $region52: #{srcnn_pallas.1} parent=47 // pred_fallthru
        _
    $region48: #{srcnn_pallas.1} parent=5 // pred_fallthru
      _
    %p6186 = scmp.le.s32.totalorder 2, %s13
    // Predicated region
    $region53: #{srcnn_pallas.1} parent=5 // pred_check
      %p6187 = pneg %p6186
    $region54: #{srcnn_pallas.1} parent=5 // pred_check_branch
      %6189 = sbr.rel (%p6187) target = $region56
    $region55: #{srcnn_pallas.1} parent=5 // pred_region
      %s6190 = ssub.s32 %s13, 2
      // Predicated region
      $region57: #{srcnn_pallas.1} parent=55 // pred_check
        %p6191 = pneg %p194
      $region58: #{srcnn_pallas.1} parent=55 // pred_check_branch
        %6193 = sbr.rel (%p6191) target = $region60
      $region59: #{srcnn_pallas.1} parent=55 // pred_region
        %p6194 = scmp.lt.s32.totalorder %s19, 1
        %s6195 = scalar_select %p6194, %s19, 1
        %s6196 = smul.addr %s6195, 2
        %s6197 = smul.addr %s6196, 4
        %s6198 = scalar_lea.vmem %s7, %s6197
      $region60: #{srcnn_pallas.1} parent=55 // pred_fallthru
        _
    $region56: #{srcnn_pallas.1} parent=5 // pred_fallthru
      _
  $region6: #{srcnn_pallas.1} parent=0 // loop_footer
    %s17 = sadd.s32 1, %s13
  $region7: #{srcnn_pallas.1} parent=0 // loop_footer_branch
    %12 = sbr.rel target = $region3
  $region8: #{srcnn_pallas.1} parent=0 // loop_exit
    _

</llo_original>
